<compile_context>
chip_gen: v7x
topology: tpu7x:2x2x1
jax: 0.10.0
libtpu: 0.0.40
codegen_flags: <defaults>
</compile_context>

<pallas_src>
import functools
import math

import jax
import jax.numpy as jnp
from jax.experimental import pallas as pl
from jax.experimental.pallas import tpu as pltpu


_RRELU_EVAL_SLOPE = (1.0 / 8.0 + 1.0 / 3.0) / 2.0     # nn.RReLU eval-mode slope


def _leaky(x, slope):
    return jnp.where(x > 0, x, x * slope)


def _mhsa_kernel(ts_ref, seq_ref, len_ref,
                 wt_ref, ws_ref, bkqv_ref,
                 wo_ref, bo_ref, wnh_ref, wns_ref, bn_ref,
                 o_ref, *, heads, hidden, out_dim, inv_scale, slope):
    f32, bf16 = jnp.float32, jnp.bfloat16
    tb, seq_len, t_feats = ts_ref.shape
    in_feats = seq_ref.shape[-1]
    nf = 3 * hidden * heads
    ein = functools.partial(jnp.einsum, preferred_element_type=f32)

    # ---- fused K/Q/V projection for ALL heads: bf16 MXU operands, f32 accumulate.
    # x = [ts | seq] is never materialized: x @ W == ts @ W_t + seq @ W_s.
    ts = ts_ref[...].astype(bf16)                                      # (tb, T, t_feats)
    sq = seq_ref[...]                                                  # (tb, T, in_feats) f32
    wt = jnp.broadcast_to(wt_ref[...].astype(bf16), (tb, t_feats, nf))
    ws = jnp.broadcast_to(ws_ref[...].astype(bf16), (tb, in_feats, nf))
    kqv = ein('btd,bdn->btn', ts, wt) + ein('btf,bfn->btn', sq.astype(bf16), ws)
    kqv = _leaky(kqv + bkqv_ref[...], slope)                           # (tb, T, 3*H*heads) f32

    # ---- per-sequence masks from lengths (valid timesteps / last valid timestep)
    length = len_ref[...]                                              # (tb, 1, 1) int32
    t_idx = jax.lax.broadcasted_iota(jnp.int32, (tb, 1, seq_len), 2)   # (tb, 1, T)
    valid = t_idx < length                                             # (tb, 1, T) bool
    last = (t_idx == length - 1).astype(f32)                           # (tb, 1, T) one-hot

    # ---- per-head attention + out linear, out_net folded in (all f32, all in VMEM)
    final = jnp.broadcast_to(bn_ref[...], (tb, 1, out_dim)).astype(f32)
    for h in range(heads):
        base = 3 * hidden * h
        k = kqv[:, :, base:base + hidden]                              # (tb, T, H)
        q = kqv[:, :, base + hidden:base + 2 * hidden]
        v = kqv[:, :, base + 2 * hidden:base + 3 * hidden]

        q_last = ein('bst,bth->bsh', last, q)                          # exact last-row pick
        s = ein('bsh,bth->bst', q_last, k) * inv_scale                 # (tb, 1, T)
        s = jnp.where(valid, s, jnp.float32(-1e30))                    # masked_softmax
        p = jnp.exp(s - jnp.max(s, axis=-1, keepdims=True))
        p = p * valid.astype(f32)
        attn = p / jnp.sum(p, axis=-1, keepdims=True)
        ctx = ein('bst,bth->bsh', attn, v)                             # (tb, 1, H)

        wo = jnp.broadcast_to(wo_ref[h], (tb, hidden, out_dim))
        head_out = _leaky(ein('bsh,bho->bso', ctx, wo) + bo_ref[h], slope)

        wnh = jnp.broadcast_to(wnh_ref[h], (tb, out_dim, out_dim))
        final = final + ein('bso,bop->bsp', head_out, wnh)

    # concat([head outputs, last seq vector]) @ W_net folded into the running sum
    seq_last = ein('bst,btf->bsf', last, sq)                           # (tb, 1, in_feats)
    wns = jnp.broadcast_to(wns_ref[...], (tb, in_feats, out_dim))
    final = final + ein('bsf,bfp->bsp', seq_last, wns)

    o_ref[...] = _leaky(final, slope).astype(o_ref.dtype)


def _pick_batch_tile(batch, per_seq_bytes, tb_max=64, vmem_budget=4 << 20):
    """Balanced batch tiles: as big as the VMEM budget allows, >=2 blocks when the
    batch is large enough (so v7x's two TensorCores both get work), and never more
    than (n_blocks - 1) rows of padding."""
    tb_max = int(max(1, min(tb_max, vmem_budget // max(per_seq_bytes, 1))))
    if batch <= tb_max:
        if batch >= 16 and batch % 2 == 0:
            return batch // 2
        return batch
    n_blocks = -(-batch // tb_max)
    return -(-batch // n_blocks)


def mhsa_forward(ts, seq, lengths, params, *, heads, hidden, out_dim):
    """MultiHeadSelfAttn forward on padded sequences.

    ts:      (B, T, t_feats)  float32
    seq:     (B, T, in_feats) float32
    lengths: (B,)             int32, valid length of each sequence (>= 1)
    Returns  (B, out_dim)     float32
    """
    wt, ws, bkqv, wo, bo, wnh, wns, bn = params
    batch, seq_len, t_feats = ts.shape
    in_feats = seq.shape[-1]
    nf = 3 * hidden * heads
    assert wt.shape == (t_feats, nf) and ws.shape == (in_feats, nf)

    per_seq_bytes = 4 * seq_len * (t_feats + in_feats + 3 * nf)
    tb = _pick_batch_tile(batch, per_seq_bytes)
    n_blocks = -(-batch // tb)
    batch_p = n_blocks * tb
    if batch_p != batch:                       # only when B is not a multiple of tb
        pad = batch_p - batch
        ts = jnp.pad(ts, ((0, pad), (0, 0), (0, 0)))
        seq = jnp.pad(seq, ((0, pad), (0, 0), (0, 0)))
        lengths = jnp.pad(lengths, (0, pad), constant_values=1)
    len3 = lengths.reshape(batch_p, 1, 1).astype(jnp.int32)

    kernel = functools.partial(
        _mhsa_kernel, heads=heads, hidden=hidden, out_dim=out_dim,
        inv_scale=1.0 / math.sqrt(hidden), slope=_RRELU_EVAL_SLOPE)

    out = pl.pallas_call(
        kernel,
        out_shape=jax.ShapeDtypeStruct((batch_p, 1, out_dim), jnp.float32),
        grid_spec=pltpu.PrefetchScalarGridSpec(
            num_scalar_prefetch=0,
            grid=(n_blocks,),
            in_specs=[
                pl.BlockSpec((tb, seq_len, t_feats), lambda i: (i, 0, 0)),    # ts
                pl.BlockSpec((tb, seq_len, in_feats), lambda i: (i, 0, 0)),   # seq
                pl.BlockSpec((tb, 1, 1), lambda i: (i, 0, 0)),                # lengths
                pl.BlockSpec((t_feats, nf), lambda i: (0, 0)),                # W_kqv (ts rows)
                pl.BlockSpec((in_feats, nf), lambda i: (0, 0)),               # W_kqv (seq rows)
                pl.BlockSpec((1, 1, nf), lambda i: (0, 0, 0)),                # b_kqv
                pl.BlockSpec((heads, hidden, out_dim), lambda i: (0, 0, 0)),  # per-head W_out
                pl.BlockSpec((heads, 1, out_dim), lambda i: (0, 0, 0)),       # per-head b_out
                pl.BlockSpec((heads, out_dim, out_dim), lambda i: (0, 0, 0)), # W_net (head rows)
                pl.BlockSpec((in_feats, out_dim), lambda i: (0, 0)),          # W_net (seq rows)
                pl.BlockSpec((1, 1, out_dim), lambda i: (0, 0, 0)),           # b_net
            ],
            out_specs=pl.BlockSpec((tb, 1, out_dim), lambda i: (i, 0, 0)),
        ),
        compiler_params=pltpu.CompilerParams(
            dimension_semantics=("parallel",),
        ),
    )(ts, seq, len3, wt, ws, bkqv, wo, bo, wnh, wns, bn)

    return out.reshape(batch_p, out_dim)[:batch]


def init_params(key, in_feats, t_feats, hidden, out_dim, heads):
    """nn.Linear-style init, stored once in the fused / pre-transposed / pre-split
    layout the kernel consumes (hoisted out of the forward pass)."""
    in_dim = in_feats + t_feats
    k_kqv, k_out, k_net = jax.random.split(key, 3)

    def linear(k, fan_in, w_shape, b_shape):
        kw, kb = jax.random.split(k)
        bound = 1.0 / math.sqrt(fan_in)
        w = jax.random.uniform(kw, w_shape, jnp.float32, -bound, bound)
        b = jax.random.uniform(kb, b_shape, jnp.float32, -bound, bound)
        return w, b

    # per-head key/query/value projections, fused along the output dim [K_h|Q_h|V_h]
    w_kqv, b_kqv = linear(k_kqv, in_dim, (heads, 3, in_dim, hidden), (heads, 3, hidden))
    w_fused = jnp.transpose(w_kqv, (2, 0, 1, 3)).reshape(in_dim, heads * 3 * hidden)
    wt, ws = w_fused[:t_feats], w_fused[t_feats:]          # x = [ts | seq] feature order
    bkqv = b_kqv.reshape(1, 1, heads * 3 * hidden)

    # per-head out projection (hidden -> out_dim)
    wo, bo = linear(k_out, hidden, (heads, hidden, out_dim), (heads, 1, out_dim))

    # out_net Linear(in_feats + out_dim*heads -> out_dim), split along its input rows
    # to match concat([head_0 .. head_{H-1}, seq_last])
    w_net, bn = linear(k_net, in_feats + out_dim * heads,
                       (in_feats + out_dim * heads, out_dim), (1, 1, out_dim))
    wnh = w_net[:heads * out_dim].reshape(heads, out_dim, out_dim)
    wns = w_net[heads * out_dim:]
    return (wt, ws, bkqv, wo, bo, wnh, wns, bn)


def mhsa_reference(ts, seq, lengths, params, *, heads, hidden, out_dim):
    """Pure-jnp forward mirroring the kernel numerics (bf16 MXU operands for the
    K/Q/V projection, f32 everywhere else)."""
    wt, ws, bkqv, wo, bo, wnh, wns, bn = params
    f32, bf16 = jnp.float32, jnp.bfloat16
    slope = _RRELU_EVAL_SLOPE
    batch, seq_len, _ = ts.shape
    ein = functools.partial(jnp.einsum, preferred_element_type=f32)
    inv_scale = 1.0 / math.sqrt(hidden)

    kqv = ein('btd,dn->btn', ts.astype(bf16), wt.astype(bf16)) \
        + ein('btf,fn->btn', seq.astype(bf16), ws.astype(bf16))
    kqv = _leaky(kqv + bkqv, slope)

    t_idx = jnp.arange(seq_len, dtype=jnp.int32)[None, None, :]
    length = lengths.reshape(batch, 1, 1).astype(jnp.int32)
    valid = t_idx < length
    last = (t_idx == length - 1).astype(f32)

    final = jnp.broadcast_to(bn, (batch, 1, out_dim)).astype(f32)
    for h in range(heads):
        base = 3 * hidden * h
        k = kqv[:, :, base:base + hidden]
        q = kqv[:, :, base + hidden:base + 2 * hidden]
        v = kqv[:, :, base + 2 * hidden:base + 3 * hidden]
        q_last = ein('bst,bth->bsh', last, q)
        s = ein('bsh,bth->bst', q_last, k) * inv_scale
        s = jnp.where(valid, s, jnp.float32(-1e30))
        p = jnp.exp(s - jnp.max(s, axis=-1, keepdims=True)) * valid.astype(f32)
        attn = p / jnp.sum(p, axis=-1, keepdims=True)
        ctx = ein('bst,bth->bsh', attn, v)
        head_out = _leaky(ein('bsh,ho->bso', ctx, wo[h]) + bo[h], slope)
        final = final + ein('bso,op->bsp', head_out, wnh[h])
    seq_last = ein('bst,btf->bsf', last, seq)
    final = final + ein('bsf,fp->bsp', seq_last, wns)
    return _leaky(final, slope).reshape(batch, out_dim)


if __name__ == "__main__":
    in_feats, t_feats, hidden, out_dim, heads = 16, 16, 32, 32, 2
    batch, seq_len = 4, 8

    key = jax.random.PRNGKey(0)
    k_ts, k_seq, k_p = jax.random.split(key, 3)
    ts = jax.random.normal(k_ts, (batch, seq_len, t_feats), jnp.float32)
    seq = jax.random.normal(k_seq, (batch, seq_len, in_feats), jnp.float32)
    lengths = jnp.array([8, 5, 3, 6], dtype=jnp.int32)
    params = init_params(k_p, in_feats, t_feats, hidden, out_dim, heads)

    out = mhsa_forward(ts, seq, lengths, params,
                       heads=heads, hidden=hidden, out_dim=out_dim)
    out = jax.block_until_ready(out)
    assert out.shape == (batch, out_dim)

    ref = mhsa_reference(ts, seq, lengths, params,
                         heads=heads, hidden=hidden, out_dim=out_dim)
    assert jnp.allclose(out, ref, atol=1e-2, rtol=1e-2), \
        float(jnp.max(jnp.abs(out - ref)))

    print("KERNEL_OK")
</pallas_src>

<mosaic_0001>
module attributes {stable_mosaic.version = 11 : i64} {
  func.func @_mhsa_kernel(%arg0: i32, %arg1: memref<4x8x16xf32, #tpu.memory_space<vmem>>, %arg2: memref<4x8x16xf32, #tpu.memory_space<vmem>>, %arg3: memref<4x1x1xi32, #tpu.memory_space<vmem>>, %arg4: memref<16x192xf32, #tpu.memory_space<vmem>>, %arg5: memref<16x192xf32, #tpu.memory_space<vmem>>, %arg6: memref<1x1x192xf32, #tpu.memory_space<vmem>>, %arg7: memref<2x32x32xf32, #tpu.memory_space<vmem>>, %arg8: memref<2x1x32xf32, #tpu.memory_space<vmem>>, %arg9: memref<2x32x32xf32, #tpu.memory_space<vmem>>, %arg10: memref<16x32xf32, #tpu.memory_space<vmem>>, %arg11: memref<1x1x32xf32, #tpu.memory_space<vmem>>, %arg12: memref<4x1x32xf32, #tpu.memory_space<vmem>>) attributes {dimension_semantics = [#tpu.dimension_semantics<parallel>], iteration_bounds = array<i64: 1>, scalar_prefetch = 0 : i64, scratch_operands = 0 : i64, tpu.core_type = #tpu.core_type<tc>, window_params = [{transform_indices = @transform_0, window_bounds = array<i64: 4, 8, 16>}, {transform_indices = @transform_1, window_bounds = array<i64: 4, 8, 16>}, {transform_indices = @transform_2, window_bounds = array<i64: 4, 1, 1>}, {pipeline_mode = #tpu.pipeline_mode<synchronous>, transform_indices = @transform_3, window_bounds = array<i64: 16, 192>}, {pipeline_mode = #tpu.pipeline_mode<synchronous>, transform_indices = @transform_4, window_bounds = array<i64: 16, 192>}, {pipeline_mode = #tpu.pipeline_mode<synchronous>, transform_indices = @transform_5, window_bounds = array<i64: 1, 1, 192>}, {pipeline_mode = #tpu.pipeline_mode<synchronous>, transform_indices = @transform_6, window_bounds = array<i64: 2, 32, 32>}, {pipeline_mode = #tpu.pipeline_mode<synchronous>, transform_indices = @transform_7, window_bounds = array<i64: 2, 1, 32>}, {pipeline_mode = #tpu.pipeline_mode<synchronous>, transform_indices = @transform_8, window_bounds = array<i64: 2, 32, 32>}, {pipeline_mode = #tpu.pipeline_mode<synchronous>, transform_indices = @transform_9, window_bounds = array<i64: 16, 32>}, {pipeline_mode = #tpu.pipeline_mode<synchronous>, transform_indices = @transform_10, window_bounds = array<i64: 1, 1, 32>}, {transform_indices = @transform_11, window_bounds = array<i64: 4, 1, 32>}]} {
    %c0 = arith.constant 0 : index
    %c0_0 = arith.constant 0 : index
    %c0_1 = arith.constant 0 : index
    %0 = vector.load %arg1[%c0, %c0_0, %c0_1] : memref<4x8x16xf32, #tpu.memory_space<vmem>>, vector<4x8x16xf32>
    %1 = arith.truncf %0 : vector<4x8x16xf32> to vector<4x8x16xbf16>
    %c0_2 = arith.constant 0 : index
    %c0_3 = arith.constant 0 : index
    %c0_4 = arith.constant 0 : index
    %2 = vector.load %arg2[%c0_2, %c0_3, %c0_4] : memref<4x8x16xf32, #tpu.memory_space<vmem>>, vector<4x8x16xf32>
    %c0_5 = arith.constant 0 : index
    %c0_6 = arith.constant 0 : index
    %3 = vector.load %arg4[%c0_5, %c0_6] : memref<16x192xf32, #tpu.memory_space<vmem>>, vector<16x192xf32>
    %4 = arith.truncf %3 : vector<16x192xf32> to vector<16x192xbf16>
    %5 = vector.shape_cast %4 : vector<16x192xbf16> to vector<1x16x192xbf16>
    %6 = vector.broadcast %5 : vector<1x16x192xbf16> to vector<4x16x192xbf16>
    %c0_7 = arith.constant 0 : index
    %c0_8 = arith.constant 0 : index
    %7 = vector.load %arg5[%c0_7, %c0_8] : memref<16x192xf32, #tpu.memory_space<vmem>>, vector<16x192xf32>
    %8 = arith.truncf %7 : vector<16x192xf32> to vector<16x192xbf16>
    %9 = vector.shape_cast %8 : vector<16x192xbf16> to vector<1x16x192xbf16>
    %10 = vector.broadcast %9 : vector<1x16x192xbf16> to vector<4x16x192xbf16>
    "tpu.trace_start"() <{level = 10 : i32, message = "btd,bdn->btn"}> : () -> ()
    %cst = arith.constant dense<0.000000e+00> : vector<4x8x192xf32>
    %11 = tpu.matmul %1, %6, %cst {dimension_numbers = #tpu.dot_dimension_numbers<[2], [1], [1], [2], [0, 0, 0, 1, 1, 2], [0], [0]>} : vector<4x8x16xbf16>, vector<4x16x192xbf16>, vector<4x8x192xf32> -> vector<4x8x192xf32>
    "tpu.trace_stop"() : () -> ()
    %12 = arith.truncf %2 : vector<4x8x16xf32> to vector<4x8x16xbf16>
    "tpu.trace_start"() <{level = 10 : i32, message = "btf,bfn->btn"}> : () -> ()
    %cst_9 = arith.constant dense<0.000000e+00> : vector<4x8x192xf32>
    %13 = tpu.matmul %12, %10, %cst_9 {dimension_numbers = #tpu.dot_dimension_numbers<[2], [1], [1], [2], [0, 0, 0, 1, 1, 2], [0], [0]>} : vector<4x8x16xbf16>, vector<4x16x192xbf16>, vector<4x8x192xf32> -> vector<4x8x192xf32>
    "tpu.trace_stop"() : () -> ()
    %14 = arith.addf %11, %13 : vector<4x8x192xf32>
    %c0_10 = arith.constant 0 : index
    %c0_11 = arith.constant 0 : index
    %c0_12 = arith.constant 0 : index
    %15 = vector.load %arg6[%c0_10, %c0_11, %c0_12] : memref<1x1x192xf32, #tpu.memory_space<vmem>>, vector<1x1x192xf32>
    %16 = vector.broadcast %15 : vector<1x1x192xf32> to vector<4x8x192xf32>
    %17 = arith.addf %14, %16 : vector<4x8x192xf32>
    %cst_13 = arith.constant 0.000000e+00 : f32
    %18 = vector.broadcast %cst_13 : f32 to vector<4x8x192xf32>
    %19 = arith.cmpf ogt, %17, %18 : vector<4x8x192xf32>
    %cst_14 = arith.constant 0.229166672 : f32
    %20 = vector.broadcast %cst_14 : f32 to vector<4x8x192xf32>
    %21 = arith.mulf %17, %20 : vector<4x8x192xf32>
    %22 = arith.select %19, %17, %21 : vector<4x8x192xi1>, vector<4x8x192xf32>
    %c0_15 = arith.constant 0 : index
    %c0_16 = arith.constant 0 : index
    %c0_17 = arith.constant 0 : index
    %23 = vector.load %arg3[%c0_15, %c0_16, %c0_17] : memref<4x1x1xi32, #tpu.memory_space<vmem>>, vector<4x1x1xi32>
    %24 = tpu.iota {dimensions = array<i32: 2>} : vector<4x1x8xi32>
    %25 = vector.broadcast %23 : vector<4x1x1xi32> to vector<4x1x8xi32>
    %26 = arith.cmpi slt, %24, %25 : vector<4x1x8xi32>
    %c1_i32 = arith.constant 1 : i32
    %27 = vector.broadcast %c1_i32 : i32 to vector<4x1x1xi32>
    %28 = arith.subi %23, %27 : vector<4x1x1xi32>
    %29 = vector.broadcast %28 : vector<4x1x1xi32> to vector<4x1x8xi32>
    %30 = arith.cmpi eq, %24, %29 : vector<4x1x8xi32>
    %31 = arith.extui %30 : vector<4x1x8xi1> to vector<4x1x8xi32>
    %32 = arith.sitofp %31 : vector<4x1x8xi32> to vector<4x1x8xf32>
    %c0_18 = arith.constant 0 : index
    %c0_19 = arith.constant 0 : index
    %c0_20 = arith.constant 0 : index
    %33 = vector.load %arg11[%c0_18, %c0_19, %c0_20] : memref<1x1x32xf32, #tpu.memory_space<vmem>>, vector<1x1x32xf32>
    %34 = vector.shape_cast %33 : vector<1x1x32xf32> to vector<1x1x32xf32>
    %35 = vector.broadcast %34 : vector<1x1x32xf32> to vector<4x1x32xf32>
    %36 = vector.extract_strided_slice %22 {offsets = [0, 0, 0], sizes = [4, 8, 32], strides = [1, 1, 1]} : vector<4x8x192xf32> to vector<4x8x32xf32>
    %37 = vector.extract_strided_slice %22 {offsets = [0, 0, 32], sizes = [4, 8, 32], strides = [1, 1, 1]} : vector<4x8x192xf32> to vector<4x8x32xf32>
    %38 = vector.extract_strided_slice %22 {offsets = [0, 0, 64], sizes = [4, 8, 32], strides = [1, 1, 1]} : vector<4x8x192xf32> to vector<4x8x32xf32>
    "tpu.trace_start"() <{level = 10 : i32, message = "bst,bth->bsh"}> : () -> ()
    %cst_21 = arith.constant dense<0.000000e+00> : vector<4x1x32xf32>
    %39 = tpu.matmul %32, %37, %cst_21 {dimension_numbers = #tpu.dot_dimension_numbers<[2], [1], [1], [2], [0, 0, 0, 1, 1, 2], [0], [0]>} : vector<4x1x8xf32>, vector<4x8x32xf32>, vector<4x1x32xf32> -> vector<4x1x32xf32>
    "tpu.trace_stop"() : () -> ()
    "tpu.trace_start"() <{level = 10 : i32, message = "bsh,bth->bst"}> : () -> ()
    %cst_22 = arith.constant dense<0.000000e+00> : vector<4x1x8xf32>
    %40 = tpu.matmul %39, %36, %cst_22 {dimension_numbers = #tpu.dot_dimension_numbers<[2], [2], [1], [1], [0, 0, 0, 1, 1, 1], [0], [0]>} : vector<4x1x32xf32>, vector<4x8x32xf32>, vector<4x1x8xf32> -> vector<4x1x8xf32>
    "tpu.trace_stop"() : () -> ()
    %cst_23 = arith.constant 0.176776692 : f32
    %41 = vector.broadcast %cst_23 : f32 to vector<4x1x8xf32>
    %42 = arith.mulf %40, %41 : vector<4x1x8xf32>
    %cst_24 = arith.constant -1.000000e+30 : f32
    %43 = vector.broadcast %cst_24 : f32 to vector<4x1x8xf32>
    %44 = arith.select %26, %42, %43 : vector<4x1x8xi1>, vector<4x1x8xf32>
    %cst_25 = arith.constant dense<0xFF800000> : vector<4x1xf32>
    %45 = vector.multi_reduction <maximumf>, %44, %cst_25 [2] : vector<4x1x8xf32> to vector<4x1xf32>
    %46 = vector.shape_cast %45 : vector<4x1xf32> to vector<4x1x1xf32>
    %47 = vector.broadcast %46 : vector<4x1x1xf32> to vector<4x1x8xf32>
    %48 = arith.subf %44, %47 : vector<4x1x8xf32>
    %49 = math.exp %48 : vector<4x1x8xf32>
    %50 = arith.extui %26 : vector<4x1x8xi1> to vector<4x1x8xi32>
    %51 = arith.sitofp %50 : vector<4x1x8xi32> to vector<4x1x8xf32>
    %52 = arith.mulf %49, %51 : vector<4x1x8xf32>
    %cst_26 = arith.constant dense<0.000000e+00> : vector<4x1xf32>
    %53 = vector.multi_reduction <add>, %52, %cst_26 [2] : vector<4x1x8xf32> to vector<4x1xf32>
    %54 = vector.shape_cast %53 : vector<4x1xf32> to vector<4x1x1xf32>
    %55 = vector.broadcast %54 : vector<4x1x1xf32> to vector<4x1x8xf32>
    %56 = arith.divf %52, %55 : vector<4x1x8xf32>
    "tpu.trace_start"() <{level = 10 : i32, message = "bst,bth->bsh"}> : () -> ()
    %cst_27 = arith.constant dense<0.000000e+00> : vector<4x1x32xf32>
    %57 = tpu.matmul %56, %38, %cst_27 {dimension_numbers = #tpu.dot_dimension_numbers<[2], [1], [1], [2], [0, 0, 0, 1, 1, 2], [0], [0]>} : vector<4x1x8xf32>, vector<4x8x32xf32>, vector<4x1x32xf32> -> vector<4x1x32xf32>
    "tpu.trace_stop"() : () -> ()
    %c0_28 = arith.constant 0 : index
    %c0_29 = arith.constant 0 : index
    %c0_30 = arith.constant 0 : index
    %58 = vector.load %arg7[%c0_28, %c0_29, %c0_30] : memref<2x32x32xf32, #tpu.memory_space<vmem>>, vector<1x32x32xf32>
    %59 = vector.shape_cast %58 : vector<1x32x32xf32> to vector<32x32xf32>
    %60 = vector.shape_cast %59 : vector<32x32xf32> to vector<1x32x32xf32>
    %61 = vector.broadcast %60 : vector<1x32x32xf32> to vector<4x32x32xf32>
    "tpu.trace_start"() <{level = 10 : i32, message = "bsh,bho->bso"}> : () -> ()
    %cst_31 = arith.constant dense<0.000000e+00> : vector<4x1x32xf32>
    %62 = tpu.matmul %57, %61, %cst_31 {dimension_numbers = #tpu.dot_dimension_numbers<[2], [1], [1], [2], [0, 0, 0, 1, 1, 2], [0], [0]>} : vector<4x1x32xf32>, vector<4x32x32xf32>, vector<4x1x32xf32> -> vector<4x1x32xf32>
    "tpu.trace_stop"() : () -> ()
    %c0_32 = arith.constant 0 : index
    %c0_33 = arith.constant 0 : index
    %c0_34 = arith.constant 0 : index
    %63 = vector.load %arg8[%c0_32, %c0_33, %c0_34] : memref<2x1x32xf32, #tpu.memory_space<vmem>>, vector<1x1x32xf32>
    %64 = vector.shape_cast %63 : vector<1x1x32xf32> to vector<1x32xf32>
    %65 = vector.shape_cast %64 : vector<1x32xf32> to vector<1x1x32xf32>
    %66 = vector.broadcast %65 : vector<1x1x32xf32> to vector<4x1x32xf32>
    %67 = arith.addf %62, %66 : vector<4x1x32xf32>
    %cst_35 = arith.constant 0.000000e+00 : f32
    %68 = vector.broadcast %cst_35 : f32 to vector<4x1x32xf32>
    %69 = arith.cmpf ogt, %67, %68 : vector<4x1x32xf32>
    %cst_36 = arith.constant 0.229166672 : f32
    %70 = vector.broadcast %cst_36 : f32 to vector<4x1x32xf32>
    %71 = arith.mulf %67, %70 : vector<4x1x32xf32>
    %72 = arith.select %69, %67, %71 : vector<4x1x32xi1>, vector<4x1x32xf32>
    %c0_37 = arith.constant 0 : index
    %c0_38 = arith.constant 0 : index
    %c0_39 = arith.constant 0 : index
    %73 = vector.load %arg9[%c0_37, %c0_38, %c0_39] : memref<2x32x32xf32, #tpu.memory_space<vmem>>, vector<1x32x32xf32>
    %74 = vector.shape_cast %73 : vector<1x32x32xf32> to vector<32x32xf32>
    %75 = vector.shape_cast %74 : vector<32x32xf32> to vector<1x32x32xf32>
    %76 = vector.broadcast %75 : vector<1x32x32xf32> to vector<4x32x32xf32>
    "tpu.trace_start"() <{level = 10 : i32, message = "bso,bop->bsp"}> : () -> ()
    %cst_40 = arith.constant dense<0.000000e+00> : vector<4x1x32xf32>
    %77 = tpu.matmul %72, %76, %cst_40 {dimension_numbers = #tpu.dot_dimension_numbers<[2], [1], [1], [2], [0, 0, 0, 1, 1, 2], [0], [0]>} : vector<4x1x32xf32>, vector<4x32x32xf32>, vector<4x1x32xf32> -> vector<4x1x32xf32>
    "tpu.trace_stop"() : () -> ()
    %78 = arith.addf %35, %77 : vector<4x1x32xf32>
    %79 = vector.extract_strided_slice %22 {offsets = [0, 0, 96], sizes = [4, 8, 32], strides = [1, 1, 1]} : vector<4x8x192xf32> to vector<4x8x32xf32>
    %80 = vector.extract_strided_slice %22 {offsets = [0, 0, 128], sizes = [4, 8, 32], strides = [1, 1, 1]} : vector<4x8x192xf32> to vector<4x8x32xf32>
    %81 = vector.extract_strided_slice %22 {offsets = [0, 0, 160], sizes = [4, 8, 32], strides = [1, 1, 1]} : vector<4x8x192xf32> to vector<4x8x32xf32>
    "tpu.trace_start"() <{level = 10 : i32, message = "bst,bth->bsh"}> : () -> ()
    %cst_41 = arith.constant dense<0.000000e+00> : vector<4x1x32xf32>
    %82 = tpu.matmul %32, %80, %cst_41 {dimension_numbers = #tpu.dot_dimension_numbers<[2], [1], [1], [2], [0, 0, 0, 1, 1, 2], [0], [0]>} : vector<4x1x8xf32>, vector<4x8x32xf32>, vector<4x1x32xf32> -> vector<4x1x32xf32>
    "tpu.trace_stop"() : () -> ()
    "tpu.trace_start"() <{level = 10 : i32, message = "bsh,bth->bst"}> : () -> ()
    %cst_42 = arith.constant dense<0.000000e+00> : vector<4x1x8xf32>
    %83 = tpu.matmul %82, %79, %cst_42 {dimension_numbers = #tpu.dot_dimension_numbers<[2], [2], [1], [1], [0, 0, 0, 1, 1, 1], [0], [0]>} : vector<4x1x32xf32>, vector<4x8x32xf32>, vector<4x1x8xf32> -> vector<4x1x8xf32>
    "tpu.trace_stop"() : () -> ()
    %cst_43 = arith.constant 0.176776692 : f32
    %84 = vector.broadcast %cst_43 : f32 to vector<4x1x8xf32>
    %85 = arith.mulf %83, %84 : vector<4x1x8xf32>
    %cst_44 = arith.constant -1.000000e+30 : f32
    %86 = vector.broadcast %cst_44 : f32 to vector<4x1x8xf32>
    %87 = arith.select %26, %85, %86 : vector<4x1x8xi1>, vector<4x1x8xf32>
    %cst_45 = arith.constant dense<0xFF800000> : vector<4x1xf32>
    %88 = vector.multi_reduction <maximumf>, %87, %cst_45 [2] : vector<4x1x8xf32> to vector<4x1xf32>
    %89 = vector.shape_cast %88 : vector<4x1xf32> to vector<4x1x1xf32>
    %90 = vector.broadcast %89 : vector<4x1x1xf32> to vector<4x1x8xf32>
    %91 = arith.subf %87, %90 : vector<4x1x8xf32>
    %92 = math.exp %91 : vector<4x1x8xf32>
    %93 = arith.extui %26 : vector<4x1x8xi1> to vector<4x1x8xi32>
    %94 = arith.sitofp %93 : vector<4x1x8xi32> to vector<4x1x8xf32>
    %95 = arith.mulf %92, %94 : vector<4x1x8xf32>
    %cst_46 = arith.constant dense<0.000000e+00> : vector<4x1xf32>
    %96 = vector.multi_reduction <add>, %95, %cst_46 [2] : vector<4x1x8xf32> to vector<4x1xf32>
    %97 = vector.shape_cast %96 : vector<4x1xf32> to vector<4x1x1xf32>
    %98 = vector.broadcast %97 : vector<4x1x1xf32> to vector<4x1x8xf32>
    %99 = arith.divf %95, %98 : vector<4x1x8xf32>
    "tpu.trace_start"() <{level = 10 : i32, message = "bst,bth->bsh"}> : () -> ()
    %cst_47 = arith.constant dense<0.000000e+00> : vector<4x1x32xf32>
    %100 = tpu.matmul %99, %81, %cst_47 {dimension_numbers = #tpu.dot_dimension_numbers<[2], [1], [1], [2], [0, 0, 0, 1, 1, 2], [0], [0]>} : vector<4x1x8xf32>, vector<4x8x32xf32>, vector<4x1x32xf32> -> vector<4x1x32xf32>
    "tpu.trace_stop"() : () -> ()
    %c1 = arith.constant 1 : index
    %c0_48 = arith.constant 0 : index
    %c0_49 = arith.constant 0 : index
    %101 = vector.load %arg7[%c1, %c0_48, %c0_49] : memref<2x32x32xf32, #tpu.memory_space<vmem>>, vector<1x32x32xf32>
    %102 = vector.shape_cast %101 : vector<1x32x32xf32> to vector<32x32xf32>
    %103 = vector.shape_cast %102 : vector<32x32xf32> to vector<1x32x32xf32>
    %104 = vector.broadcast %103 : vector<1x32x32xf32> to vector<4x32x32xf32>
    "tpu.trace_start"() <{level = 10 : i32, message = "bsh,bho->bso"}> : () -> ()
    %cst_50 = arith.constant dense<0.000000e+00> : vector<4x1x32xf32>
    %105 = tpu.matmul %100, %104, %cst_50 {dimension_numbers = #tpu.dot_dimension_numbers<[2], [1], [1], [2], [0, 0, 0, 1, 1, 2], [0], [0]>} : vector<4x1x32xf32>, vector<4x32x32xf32>, vector<4x1x32xf32> -> vector<4x1x32xf32>
    "tpu.trace_stop"() : () -> ()
    %c1_51 = arith.constant 1 : index
    %c0_52 = arith.constant 0 : index
    %c0_53 = arith.constant 0 : index
    %106 = vector.load %arg8[%c1_51, %c0_52, %c0_53] : memref<2x1x32xf32, #tpu.memory_space<vmem>>, vector<1x1x32xf32>
    %107 = vector.shape_cast %106 : vector<1x1x32xf32> to vector<1x32xf32>
    %108 = vector.shape_cast %107 : vector<1x32xf32> to vector<1x1x32xf32>
    %109 = vector.broadcast %108 : vector<1x1x32xf32> to vector<4x1x32xf32>
    %110 = arith.addf %105, %109 : vector<4x1x32xf32>
    %cst_54 = arith.constant 0.000000e+00 : f32
    %111 = vector.broadcast %cst_54 : f32 to vector<4x1x32xf32>
    %112 = arith.cmpf ogt, %110, %111 : vector<4x1x32xf32>
    %cst_55 = arith.constant 0.229166672 : f32
    %113 = vector.broadcast %cst_55 : f32 to vector<4x1x32xf32>
    %114 = arith.mulf %110, %113 : vector<4x1x32xf32>
    %115 = arith.select %112, %110, %114 : vector<4x1x32xi1>, vector<4x1x32xf32>
    %c1_56 = arith.constant 1 : index
    %c0_57 = arith.constant 0 : index
    %c0_58 = arith.constant 0 : index
    %116 = vector.load %arg9[%c1_56, %c0_57, %c0_58] : memref<2x32x32xf32, #tpu.memory_space<vmem>>, vector<1x32x32xf32>
    %117 = vector.shape_cast %116 : vector<1x32x32xf32> to vector<32x32xf32>
    %118 = vector.shape_cast %117 : vector<32x32xf32> to vector<1x32x32xf32>
    %119 = vector.broadcast %118 : vector<1x32x32xf32> to vector<4x32x32xf32>
    "tpu.trace_start"() <{level = 10 : i32, message = "bso,bop->bsp"}> : () -> ()
    %cst_59 = arith.constant dense<0.000000e+00> : vector<4x1x32xf32>
    %120 = tpu.matmul %115, %119, %cst_59 {dimension_numbers = #tpu.dot_dimension_numbers<[2], [1], [1], [2], [0, 0, 0, 1, 1, 2], [0], [0]>} : vector<4x1x32xf32>, vector<4x32x32xf32>, vector<4x1x32xf32> -> vector<4x1x32xf32>
    "tpu.trace_stop"() : () -> ()
    %121 = arith.addf %78, %120 : vector<4x1x32xf32>
    "tpu.trace_start"() <{level = 10 : i32, message = "bst,btf->bsf"}> : () -> ()
    %cst_60 = arith.constant dense<0.000000e+00> : vector<4x1x16xf32>
    %122 = tpu.matmul %32, %2, %cst_60 {dimension_numbers = #tpu.dot_dimension_numbers<[2], [1], [1], [2], [0, 0, 0, 1, 1, 2], [0], [0]>} : vector<4x1x8xf32>, vector<4x8x16xf32>, vector<4x1x16xf32> -> vector<4x1x16xf32>
    "tpu.trace_stop"() : () -> ()
    %c0_61 = arith.constant 0 : index
    %c0_62 = arith.constant 0 : index
    %123 = vector.load %arg10[%c0_61, %c0_62] : memref<16x32xf32, #tpu.memory_space<vmem>>, vector<16x32xf32>
    %124 = vector.shape_cast %123 : vector<16x32xf32> to vector<1x16x32xf32>
    %125 = vector.broadcast %124 : vector<1x16x32xf32> to vector<4x16x32xf32>
    "tpu.trace_start"() <{level = 10 : i32, message = "bsf,bfp->bsp"}> : () -> ()
    %cst_63 = arith.constant dense<0.000000e+00> : vector<4x1x32xf32>
    %126 = tpu.matmul %122, %125, %cst_63 {dimension_numbers = #tpu.dot_dimension_numbers<[2], [1], [1], [2], [0, 0, 0, 1, 1, 2], [0], [0]>} : vector<4x1x16xf32>, vector<4x16x32xf32>, vector<4x1x32xf32> -> vector<4x1x32xf32>
    "tpu.trace_stop"() : () -> ()
    %127 = arith.addf %121, %126 : vector<4x1x32xf32>
    %cst_64 = arith.constant 0.000000e+00 : f32
    %128 = vector.broadcast %cst_64 : f32 to vector<4x1x32xf32>
    %129 = arith.cmpf ogt, %127, %128 : vector<4x1x32xf32>
    %cst_65 = arith.constant 0.229166672 : f32
    %130 = vector.broadcast %cst_65 : f32 to vector<4x1x32xf32>
    %131 = arith.mulf %127, %130 : vector<4x1x32xf32>
    %132 = arith.select %129, %127, %131 : vector<4x1x32xi1>, vector<4x1x32xf32>
    %c0_66 = arith.constant 0 : index
    %c0_67 = arith.constant 0 : index
    %c0_68 = arith.constant 0 : index
    %133 = vector.load %arg12[%c0_66, %c0_67, %c0_68] : memref<4x1x32xf32, #tpu.memory_space<vmem>>, vector<4x1x32xf32>
    tpu.vector_store %arg12[%c0_66, %c0_67, %c0_68], %132 {strides = array<i32>} : memref<4x1x32xf32, #tpu.memory_space<vmem>>, vector<4x1x32xf32>,
    return
  }
  func.func @transform_0(%arg0: i32) -> (i32, i32, i32) {
    %c0_i32 = arith.constant 0 : i32
    %c0_i32_0 = arith.constant 0 : i32
    %c0_i32_1 = arith.constant 0 : i32
    return %arg0, %c0_i32, %c0_i32_0 : i32, i32, i32
  }
  func.func @transform_1(%arg0: i32) -> (i32, i32, i32) {
    %c0_i32 = arith.constant 0 : i32
    %c0_i32_0 = arith.constant 0 : i32
    %c0_i32_1 = arith.constant 0 : i32
    return %arg0, %c0_i32, %c0_i32_0 : i32, i32, i32
  }
  func.func @transform_2(%arg0: i32) -> (i32, i32, i32) {
    %c0_i32 = arith.constant 0 : i32
    %c0_i32_0 = arith.constant 0 : i32
    %c0_i32_1 = arith.constant 0 : i32
    return %arg0, %c0_i32, %c0_i32_0 : i32, i32, i32
  }
  func.func @transform_3(%arg0: i32) -> (i32, i32) {
    %c0_i32 = arith.constant 0 : i32
    %c0_i32_0 = arith.constant 0 : i32
    %c0_i32_1 = arith.constant 0 : i32
    return %c0_i32, %c0_i32_0 : i32, i32
  }
  func.func @transform_4(%arg0: i32) -> (i32, i32) {
    %c0_i32 = arith.constant 0 : i32
    %c0_i32_0 = arith.constant 0 : i32
    %c0_i32_1 = arith.constant 0 : i32
    return %c0_i32, %c0_i32_0 : i32, i32
  }
  func.func @transform_5(%arg0: i32) -> (i32, i32, i32) {
    %c0_i32 = arith.constant 0 : i32
    %c0_i32_0 = arith.constant 0 : i32
    %c0_i32_1 = arith.constant 0 : i32
    %c0_i32_2 = arith.constant 0 : i32
    return %c0_i32, %c0_i32_0, %c0_i32_1 : i32, i32, i32
  }
  func.func @transform_6(%arg0: i32) -> (i32, i32, i32) {
    %c0_i32 = arith.constant 0 : i32
    %c0_i32_0 = arith.constant 0 : i32
    %c0_i32_1 = arith.constant 0 : i32
    %c0_i32_2 = arith.constant 0 : i32
    return %c0_i32, %c0_i32_0, %c0_i32_1 : i32, i32, i32
  }
  func.func @transform_7(%arg0: i32) -> (i32, i32, i32) {
    %c0_i32 = arith.constant 0 : i32
    %c0_i32_0 = arith.constant 0 : i32
    %c0_i32_1 = arith.constant 0 : i32
    %c0_i32_2 = arith.constant 0 : i32
    return %c0_i32, %c0_i32_0, %c0_i32_1 : i32, i32, i32
  }
  func.func @transform_8(%arg0: i32) -> (i32, i32, i32) {
    %c0_i32 = arith.constant 0 : i32
    %c0_i32_0 = arith.constant 0 : i32
    %c0_i32_1 = arith.constant 0 : i32
    %c0_i32_2 = arith.constant 0 : i32
    return %c0_i32, %c0_i32_0, %c0_i32_1 : i32, i32, i32
  }
  func.func @transform_9(%arg0: i32) -> (i32, i32) {
    %c0_i32 = arith.constant 0 : i32
    %c0_i32_0 = arith.constant 0 : i32
    %c0_i32_1 = arith.constant 0 : i32
    return %c0_i32, %c0_i32_0 : i32, i32
  }
  func.func @transform_10(%arg0: i32) -> (i32, i32, i32) {
    %c0_i32 = arith.constant 0 : i32
    %c0_i32_0 = arith.constant 0 : i32
    %c0_i32_1 = arith.constant 0 : i32
    %c0_i32_2 = arith.constant 0 : i32
    return %c0_i32, %c0_i32_0, %c0_i32_1 : i32, i32, i32
  }
  func.func @transform_11(%arg0: i32) -> (i32, i32, i32) {
    %c0_i32 = arith.constant 0 : i32
    %c0_i32_0 = arith.constant 0 : i32
    %c0_i32_1 = arith.constant 0 : i32
    return %arg0, %c0_i32, %c0_i32_0 : i32, i32, i32
  }
}

</mosaic_0001>

<llo_original>
// kernel: tpu_custom_call.1
$region0: #{tpu_custom_call.1}
  #allocation0 [shape = 'u32[]', space=smem, size = 0x4, offset = 0x4, fixed_abs, tag = 'smem constant byte address 0x4 - core index']
  #allocation1 [shape = 'u32[144,128]{1,0:T(1,128)}', space=vmem, size = 0x12000, scoped, tag = 'internal scratch']
  %s0 = inlined_call_operand.hbm [shape: f32[4,8,16], index: 0, kind: input, shape index: {}]
  %s1 = inlined_call_operand.hbm [shape: f32[4,8,16], index: 1, kind: input, shape index: {}]
  %s2 = inlined_call_operand.vmem [shape: s32[4,1,1], index: 2, kind: input, shape index: {}]
  %s3 = inlined_call_operand.hbm [shape: f32[16,192], index: 3, kind: input, shape index: {}]
  %s4 = inlined_call_operand.hbm [shape: f32[16,192], index: 4, kind: input, shape index: {}]
  %s5 = inlined_call_operand.vmem [shape: f32[1,1,192], index: 5, kind: input, shape index: {}]
  %s6 = inlined_call_operand.hbm [shape: f32[2,32,32], index: 6, kind: input, shape index: {}]
  %s7 = inlined_call_operand.vmem [shape: f32[2,1,32], index: 7, kind: input, shape index: {}]
  %s8 = inlined_call_operand.hbm [shape: f32[2,32,32], index: 8, kind: input, shape index: {}]
  %s9 = inlined_call_operand.vmem [shape: f32[16,32], index: 9, kind: input, shape index: {}]
  %s10 = inlined_call_operand.vmem [shape: f32[1,1,32], index: 10, kind: input, shape index: {}]
  %s11 = inlined_call_operand.hbm [shape: f32[4,1,32], index: 11, kind: output, shape index: {}]
  %s12 = sld [smem:[#allocation0]]
  $region78: #{tpu_custom_call.1} parent=0
    _
  %s14 = ssub.s32 1, %s12
  %s15 = scalar_select 0, %s14, %s12
  $region1: #{tpu_custom_call.1} parent=0
    #allocation2 [shape = 'u8[16384]{0}', space=vmem, size = 0x4000, scoped, tag = 'input window, operand 0, single buffered']
    #allocation3 [shape = 's32[1]{0}', space=sflag, size = 0x4, scoped, tag = 'scoped memory for tpu_custom_call.1']
    #allocation4 [shape = 's32[1]{0}', space=sflag, size = 0x4, scoped, tag = 'scoped memory for tpu_custom_call.1']
    #allocation5 [shape = 'u8[16384]{0}', space=vmem, size = 0x4000, scoped, tag = 'input window, operand 1, single buffered']
    #allocation6 [shape = 's32[1]{0}', space=sflag, size = 0x4, scoped, tag = 'scoped memory for tpu_custom_call.1']
    #allocation7 [shape = 'u8[16384]{0}', space=vmem, size = 0x4000, scoped, tag = 'input window, operand 3, single buffered']
    #allocation8 [shape = 'u8[16384]{0}', space=vmem, size = 0x4000, scoped, tag = 'input window, operand 4, single buffered']
    #allocation9 [shape = 's32[1]{0}', space=sflag, size = 0x4, scoped, tag = 'scoped memory for tpu_custom_call.1']
    #allocation10 [shape = 'u8[32768]{0}', space=vmem, size = 0x8000, scoped, tag = 'input window, operand 6, single buffered']
    #allocation11 [shape = 'u8[32768]{0}', space=vmem, size = 0x8000, scoped, tag = 'input window, operand 8, single buffered']
    #allocation12 [shape = 's32[1]{0}', space=sflag, size = 0x4, scoped, tag = 'scoped memory for tpu_custom_call.1']
    #allocation13 [shape = 'u8[2048]{0}', space=vmem, size = 0x800, scoped, tag = 'output window, operand 0, single buffered']
    %16 = vsyncpa [#allocation3], 0
    %17 = vsyncpa [#allocation6], 0
    %18 = vsyncpa [#allocation9], 0
    %19 = vsyncpa [#allocation12], 0
    %20 = vsyncpa [#allocation4], 0
    // Predicated region
    $region2: #{tpu_custom_call.1} parent=1 // pred_check
      _
    $region3: #{tpu_custom_call.1} parent=1 // pred_check_branch
      %22 = sbr.rel (0) target = $region5
    $region4: #{tpu_custom_call.1} parent=1 // pred_region
      %s24 = ssub.s32 512, 512
      %25 = vsyncadd [#allocation3], %s24
      %s26 = sshll.u32 [#allocation2], 4
      %s27 = int_to_ptr.vmem [resolvable:$true] %s26
      %32 = dma.hbm_to_vmem [thread:$0]  %s0, 512, %s27, [#allocation3], 128, 128, 8
    $region5: #{tpu_custom_call.1} parent=1 // pred_fallthru
      _
    // Predicated region
    $region6: #{tpu_custom_call.1} parent=1 // pred_check
      _
    $region7: #{tpu_custom_call.1} parent=1 // pred_check_branch
      %34 = sbr.rel (0) target = $region9
    $region8: #{tpu_custom_call.1} parent=1 // pred_region
      %s36 = ssub.s32 512, 512
      %37 = vsyncadd [#allocation6], %s36
      %s38 = sshll.u32 [#allocation5], 4
      %s39 = int_to_ptr.vmem [resolvable:$true] %s38
      %44 = dma.hbm_to_vmem [thread:$0]  %s1, 512, %s39, [#allocation6], 128, 128, 8
    $region9: #{tpu_custom_call.1} parent=1 // pred_fallthru
      _
    // Predicated region
    $region10: #{tpu_custom_call.1} parent=1 // pred_check
      _
    $region11: #{tpu_custom_call.1} parent=1 // pred_check_branch
      %46 = sbr.rel (0) target = $region13
    $region12: #{tpu_custom_call.1} parent=1 // pred_region
      _
    $region13: #{tpu_custom_call.1} parent=1 // pred_fallthru
      _
    // Predicated region
    $region14: #{tpu_custom_call.1} parent=1 // pred_check
      _
    $region15: #{tpu_custom_call.1} parent=1 // pred_check_branch
      %48 = sbr.rel (0) target = $region17
    $region16: #{tpu_custom_call.1} parent=1 // pred_region
      %s50 = ssub.s32 512, 512
      %51 = vsyncadd [#allocation6], %s50
      %s52 = sshll.u32 [#allocation7], 4
      %s53 = int_to_ptr.vmem [resolvable:$true] %s52
      %58 = dma.hbm_to_vmem [thread:$0]  %s3, 512, %s53, [#allocation6], 256, 256, 16
    $region17: #{tpu_custom_call.1} parent=1 // pred_fallthru
      _
    // Predicated region
    $region18: #{tpu_custom_call.1} parent=1 // pred_check
      _
    $region19: #{tpu_custom_call.1} parent=1 // pred_check_branch
      %60 = sbr.rel (0) target = $region21
    $region20: #{tpu_custom_call.1} parent=1 // pred_region
      %s62 = ssub.s32 512, 512
      %63 = vsyncadd [#allocation9], %s62
      %s64 = sshll.u32 [#allocation8], 4
      %s65 = int_to_ptr.vmem [resolvable:$true] %s64
      %70 = dma.hbm_to_vmem [thread:$0]  %s4, 512, %s65, [#allocation9], 256, 256, 16
    $region21: #{tpu_custom_call.1} parent=1 // pred_fallthru
      _
    // Predicated region
    $region22: #{tpu_custom_call.1} parent=1 // pred_check
      _
    $region23: #{tpu_custom_call.1} parent=1 // pred_check_branch
      %72 = sbr.rel (0) target = $region25
    $region24: #{tpu_custom_call.1} parent=1 // pred_region
      _
    $region25: #{tpu_custom_call.1} parent=1 // pred_fallthru
      _
    // Predicated region
    $region26: #{tpu_custom_call.1} parent=1 // pred_check
      _
    $region27: #{tpu_custom_call.1} parent=1 // pred_check_branch
      %74 = sbr.rel (0) target = $region29
    $region28: #{tpu_custom_call.1} parent=1 // pred_region
      %s76 = ssub.s32 1024, 1024
      %77 = vsyncadd [#allocation9], %s76
      %s78 = sshll.u32 [#allocation10], 4
      %s79 = int_to_ptr.vmem [resolvable:$true] %s78
      %84 = dma.hbm_to_vmem [thread:$0]  %s6, 1024, %s79, [#allocation9], 128, 128, 8
    $region29: #{tpu_custom_call.1} parent=1 // pred_fallthru
      _
    // Predicated region
    $region30: #{tpu_custom_call.1} parent=1 // pred_check
      _
    $region31: #{tpu_custom_call.1} parent=1 // pred_check_branch
      %86 = sbr.rel (0) target = $region33
    $region32: #{tpu_custom_call.1} parent=1 // pred_region
      _
    $region33: #{tpu_custom_call.1} parent=1 // pred_fallthru
      _
    // Predicated region
    $region34: #{tpu_custom_call.1} parent=1 // pred_check
      _
    $region35: #{tpu_custom_call.1} parent=1 // pred_check_branch
      %88 = sbr.rel (0) target = $region37
    $region36: #{tpu_custom_call.1} parent=1 // pred_region
      %s90 = ssub.s32 1024, 1024
      %91 = vsyncadd [#allocation12], %s90
      %s92 = sshll.u32 [#allocation11], 4
      %s93 = int_to_ptr.vmem [resolvable:$true] %s92
      %98 = dma.hbm_to_vmem [thread:$0]  %s8, 1024, %s93, [#allocation12], 128, 128, 8
    $region37: #{tpu_custom_call.1} parent=1 // pred_fallthru
      _
    // Predicated region
    $region38: #{tpu_custom_call.1} parent=1 // pred_check
      _
    $region39: #{tpu_custom_call.1} parent=1 // pred_check_branch
      %100 = sbr.rel (0) target = $region41
    $region40: #{tpu_custom_call.1} parent=1 // pred_region
      _
    $region41: #{tpu_custom_call.1} parent=1 // pred_fallthru
      _
    // Predicated region
    $region42: #{tpu_custom_call.1} parent=1 // pred_check
      _
    $region43: #{tpu_custom_call.1} parent=1 // pred_check_branch
      %102 = sbr.rel (0) target = $region45
    $region44: #{tpu_custom_call.1} parent=1 // pred_region
      _
    $region45: #{tpu_custom_call.1} parent=1 // pred_fallthru
      _
    // Predicated region
    $region46: #{tpu_custom_call.1} parent=1 // pred_check
      _
    $region47: #{tpu_custom_call.1} parent=1 // pred_check_branch
      %104 = sbr.rel (0) target = $region49
    $region48: #{tpu_custom_call.1} parent=1 // pred_region
      %105 = dma.done [#allocation3], 512
    $region49: #{tpu_custom_call.1} parent=1 // pred_fallthru
      _
    // Predicated region
    $region50: #{tpu_custom_call.1} parent=1 // pred_check
      _
    $region51: #{tpu_custom_call.1} parent=1 // pred_check_branch
      %107 = sbr.rel (0) target = $region53
    $region52: #{tpu_custom_call.1} parent=1 // pred_region
      %108 = dma.done [#allocation6], 512
    $region53: #{tpu_custom_call.1} parent=1 // pred_fallthru
      _
    // Predicated region
    $region54: #{tpu_custom_call.1} parent=1 // pred_check
      _
    $region55: #{tpu_custom_call.1} parent=1 // pred_check_branch
      %110 = sbr.rel (0) target = $region57
    $region56: #{tpu_custom_call.1} parent=1 // pred_region
      %111 = dma.done [#allocation6], 512
    $region57: #{tpu_custom_call.1} parent=1 // pred_fallthru
      _
    // Predicated region
    $region58: #{tpu_custom_call.1} parent=1 // pred_check
      _
    $region59: #{tpu_custom_call.1} parent=1 // pred_check_branch
      %113 = sbr.rel (0) target = $region61
    $region60: #{tpu_custom_call.1} parent=1 // pred_region
      %114 = dma.done [#allocation9], 512
    $region61: #{tpu_custom_call.1} parent=1 // pred_fallthru
      _
    // Predicated region
    $region62: #{tpu_custom_call.1} parent=1 // pred_check
      _
    $region63: #{tpu_custom_call.1} parent=1 // pred_check_branch
      %116 = sbr.rel (0) target = $region65
    $region64: #{tpu_custom_call.1} parent=1 // pred_region
      %117 = dma.done [#allocation9], 1024
    $region65: #{tpu_custom_call.1} parent=1 // pred_fallthru
      _
    // Predicated region
    $region66: #{tpu_custom_call.1} parent=1 // pred_check
      _
    $region67: #{tpu_custom_call.1} parent=1 // pred_check_branch
      %119 = sbr.rel (0) target = $region69
    $region68: #{tpu_custom_call.1} parent=1 // pred_region
      %120 = dma.done [#allocation12], 1024
    $region69: #{tpu_custom_call.1} parent=1 // pred_fallthru
      _
    %v122 = vld [vmem:[#allocation2] sm:$0xff]
    %v123 = vld [vmem:[#allocation2 + $0x8] sm:$0xff]
    %v124 = vld [vmem:[#allocation2 + $0x10] sm:$0xff]
    %v125 = vld [vmem:[#allocation2 + $0x18] sm:$0xff]
    %v126 = vpack.c.bf16 %v122, %v122
    %v127 = vpack.c.bf16 %v123, %v123
    %v128 = vpack.c.bf16 %v124, %v124
    %v129 = vpack.c.bf16 %v125, %v125
    %v130 = vld [vmem:[#allocation5] sm:$0xff]
    %v131 = vld [vmem:[#allocation5 + $0x8] sm:$0xff]
    %v132 = vld [vmem:[#allocation5 + $0x10] sm:$0xff]
    %v133 = vld [vmem:[#allocation5 + $0x18] sm:$0xff]
    %v134 = vld [vmem:[#allocation7] sm:$0xff]
    %v135 = vld [vmem:[#allocation7 + $0x8] sm:$0xff]
    %v136 = vld [vmem:[#allocation7 + $0x10] sm:$0xff]
    %v137 = vld [vmem:[#allocation7 + $0x18] sm:$0xff]
    %v138 = vpack.c.bf16 %v136, %v134
    %v139 = vpack.c.bf16 %v137, %v135
    %v140 = vld [vmem:[#allocation8] sm:$0xff]
    %v141 = vld [vmem:[#allocation8 + $0x8] sm:$0xff]
    %v142 = vld [vmem:[#allocation8 + $0x10] sm:$0xff]
    %v143 = vld [vmem:[#allocation8 + $0x18] sm:$0xff]
    %v144 = vpack.c.bf16 %v142, %v140
    %v145 = vpack.c.bf16 %v143, %v141
    %v146 = vpack.c.bf16 %v130, %v130
    %v147 = vpack.c.bf16 %v131, %v131
    %v148 = vpack.c.bf16 %v132, %v132
    %v149 = vpack.c.bf16 %v133, %v133
    %vm150 = vcmask 130048
    %v152 = vsel %vm150, %v146, 0
    %154 = vmatprep.subr.bf16.mxu0 %v145
    %155 = vmatpush1.bf16.msra.mxu0 %v144
    %156 = vmatprep.subr.bf16.mxu0 0
    %157 = vmatpush1.bf16.msra.mxu0 0
    %158 = vmatprep.subr.bf16.mxu0 0
    %159 = vmatpush1.bf16.msra.mxu0 0
    %160 = vmatprep.subr.bf16.mxu0 0
    %161 = vmatpush1.bf16.msra.mxu0 0
    %162 = vmatprep.subr.bf16.mxu0 0
    %163 = vmatpush1.bf16.msra.mxu0 0
    %164 = vmatprep.subr.bf16.mxu0 0
    %165 = vmatpush1.bf16.msra.mxu0 0
    %166 = vmatprep.subr.bf16.mxu0 0
    %167 = vmatpush1.bf16.msra.mxu0 0
    %168 = vmatprep.subr.bf16.mxu0 0
    %169 = vmatpush1.bf16.msra.mxu0 0
    %170 = vmatprep.subr.bf16.mxu0 0
    %171 = vmatpush1.bf16.msra.mxu0 0
    %172 = vmatprep.subr.bf16.mxu0 0
    %173 = vmatpush1.bf16.msra.mxu0 0
    %174 = vmatprep.subr.bf16.mxu0 0
    %175 = vmatpush1.bf16.msra.mxu0 0
    %176 = vmatprep.subr.bf16.mxu0 0
    %177 = vmatpush1.bf16.msra.mxu0 0
    %178 = vmatprep.subr.bf16.mxu0 0
    %179 = vmatpush1.bf16.msra.mxu0 0
    %180 = vmatprep.subr.bf16.mxu0 0
    %181 = vmatpush1.bf16.msra.mxu0 0
    %182 = vmatprep.subr.bf16.mxu0 0
    %183 = vmatpush1.bf16.msra.mxu0 0
    %184 = vmatprep.subr.bf16.mxu0 0
    %185 = vmatpush1.bf16.msra.mxu0 0
    %186 = vmatprep.mubr.bf16.mxu0 0
    %187 = vmatmul.mubr.bf16.gmra.mrb[0].mxu0 %v152
    %v188 = vpop.f32.mrb[0].mxu0
    %v189 = vadd.f32 0.0, %v188
    %v190 = vpop.f32.mrb[0].mxu0
    %v191 = vadd.f32 0.0, %v190
    %v192 = vpop.f32.mrb[0].mxu0
    %v193 = vpop.f32.mrb[0].mxu0
    %194 = vdwg.mxu0
    %v196 = vsel %vm150, %v147, 0
    %198 = vmatprep.subr.bf16.mxu0 %v145
    %199 = vmatpush1.bf16.msra.mxu0 %v144
    %200 = vmatprep.subr.bf16.mxu0 0
    %201 = vmatpush1.bf16.msra.mxu0 0
    %202 = vmatprep.subr.bf16.mxu0 0
    %203 = vmatpush1.bf16.msra.mxu0 0
    %204 = vmatprep.subr.bf16.mxu0 0
    %205 = vmatpush1.bf16.msra.mxu0 0
    %206 = vmatprep.subr.bf16.mxu0 0
    %207 = vmatpush1.bf16.msra.mxu0 0
    %208 = vmatprep.subr.bf16.mxu0 0
    %209 = vmatpush1.bf16.msra.mxu0 0
    %210 = vmatprep.subr.bf16.mxu0 0
    %211 = vmatpush1.bf16.msra.mxu0 0
    %212 = vmatprep.subr.bf16.mxu0 0
    %213 = vmatpush1.bf16.msra.mxu0 0
    %214 = vmatprep.subr.bf16.mxu0 0
    %215 = vmatpush1.bf16.msra.mxu0 0
    %216 = vmatprep.subr.bf16.mxu0 0
    %217 = vmatpush1.bf16.msra.mxu0 0
    %218 = vmatprep.subr.bf16.mxu0 0
    %219 = vmatpush1.bf16.msra.mxu0 0
    %220 = vmatprep.subr.bf16.mxu0 0
    %221 = vmatpush1.bf16.msra.mxu0 0
    %222 = vmatprep.subr.bf16.mxu0 0
    %223 = vmatpush1.bf16.msra.mxu0 0
    %224 = vmatprep.subr.bf16.mxu0 0
    %225 = vmatpush1.bf16.msra.mxu0 0
    %226 = vmatprep.subr.bf16.mxu0 0
    %227 = vmatpush1.bf16.msra.mxu0 0
    %228 = vmatprep.subr.bf16.mxu0 0
    %229 = vmatpush1.bf16.msra.mxu0 0
    %230 = vmatprep.mubr.bf16.mxu0 0
    %231 = vmatmul.mubr.bf16.gmra.mrb[0].mxu0 %v196
    %v232 = vpop.f32.mrb[0].mxu0
    %v233 = vadd.f32 0.0, %v232
    %v234 = vpop.f32.mrb[0].mxu0
    %v235 = vadd.f32 0.0, %v234
    %v236 = vpop.f32.mrb[0].mxu0
    %v237 = vpop.f32.mrb[0].mxu0
    %238 = vdwg.mxu0
    %v240 = vsel %vm150, %v148, 0
    %242 = vmatprep.subr.bf16.mxu0 %v145
    %243 = vmatpush1.bf16.msra.mxu0 %v144
    %244 = vmatprep.subr.bf16.mxu0 0
    %245 = vmatpush1.bf16.msra.mxu0 0
    %246 = vmatprep.subr.bf16.mxu0 0
    %247 = vmatpush1.bf16.msra.mxu0 0
    %248 = vmatprep.subr.bf16.mxu0 0
    %249 = vmatpush1.bf16.msra.mxu0 0
    %250 = vmatprep.subr.bf16.mxu0 0
    %251 = vmatpush1.bf16.msra.mxu0 0
    %252 = vmatprep.subr.bf16.mxu0 0
    %253 = vmatpush1.bf16.msra.mxu0 0
    %254 = vmatprep.subr.bf16.mxu0 0
    %255 = vmatpush1.bf16.msra.mxu0 0
    %256 = vmatprep.subr.bf16.mxu0 0
    %257 = vmatpush1.bf16.msra.mxu0 0
    %258 = vmatprep.subr.bf16.mxu0 0
    %259 = vmatpush1.bf16.msra.mxu0 0
    %260 = vmatprep.subr.bf16.mxu0 0
    %261 = vmatpush1.bf16.msra.mxu0 0
    %262 = vmatprep.subr.bf16.mxu0 0
    %263 = vmatpush1.bf16.msra.mxu0 0
    %264 = vmatprep.subr.bf16.mxu0 0
    %265 = vmatpush1.bf16.msra.mxu0 0
    %266 = vmatprep.subr.bf16.mxu0 0
    %267 = vmatpush1.bf16.msra.mxu0 0
    %268 = vmatprep.subr.bf16.mxu0 0
    %269 = vmatpush1.bf16.msra.mxu0 0
    %270 = vmatprep.subr.bf16.mxu0 0
    %271 = vmatpush1.bf16.msra.mxu0 0
    %272 = vmatprep.subr.bf16.mxu0 0
    %273 = vmatpush1.bf16.msra.mxu0 0
    %274 = vmatprep.mubr.bf16.mxu0 0
    %275 = vmatmul.mubr.bf16.gmra.mrb[0].mxu0 %v240
    %v276 = vpop.f32.mrb[0].mxu0
    %v277 = vadd.f32 0.0, %v276
    %v278 = vpop.f32.mrb[0].mxu0
    %v279 = vadd.f32 0.0, %v278
    %v280 = vpop.f32.mrb[0].mxu0
    %v281 = vpop.f32.mrb[0].mxu0
    %282 = vdwg.mxu0
    %v284 = vsel %vm150, %v149, 0
    %286 = vmatprep.subr.bf16.mxu0 %v145
    %287 = vmatpush1.bf16.msra.mxu0 %v144
    %288 = vmatprep.subr.bf16.mxu0 0
    %289 = vmatpush1.bf16.msra.mxu0 0
    %290 = vmatprep.subr.bf16.mxu0 0
    %291 = vmatpush1.bf16.msra.mxu0 0
    %292 = vmatprep.subr.bf16.mxu0 0
    %293 = vmatpush1.bf16.msra.mxu0 0
    %294 = vmatprep.subr.bf16.mxu0 0
    %295 = vmatpush1.bf16.msra.mxu0 0
    %296 = vmatprep.subr.bf16.mxu0 0
    %297 = vmatpush1.bf16.msra.mxu0 0
    %298 = vmatprep.subr.bf16.mxu0 0
    %299 = vmatpush1.bf16.msra.mxu0 0
    %300 = vmatprep.subr.bf16.mxu0 0
    %301 = vmatpush1.bf16.msra.mxu0 0
    %302 = vmatprep.subr.bf16.mxu0 0
    %303 = vmatpush1.bf16.msra.mxu0 0
    %304 = vmatprep.subr.bf16.mxu0 0
    %305 = vmatpush1.bf16.msra.mxu0 0
    %306 = vmatprep.subr.bf16.mxu0 0
    %307 = vmatpush1.bf16.msra.mxu0 0
    %308 = vmatprep.subr.bf16.mxu0 0
    %309 = vmatpush1.bf16.msra.mxu0 0
    %310 = vmatprep.subr.bf16.mxu0 0
    %311 = vmatpush1.bf16.msra.mxu0 0
    %312 = vmatprep.subr.bf16.mxu0 0
    %313 = vmatpush1.bf16.msra.mxu0 0
    %314 = vmatprep.subr.bf16.mxu0 0
    %315 = vmatpush1.bf16.msra.mxu0 0
    %316 = vmatprep.subr.bf16.mxu0 0
    %317 = vmatpush1.bf16.msra.mxu0 0
    %318 = vmatprep.mubr.bf16.mxu0 0
    %319 = vmatmul.mubr.bf16.gmra.mrb[0].mxu0 %v284
    %v320 = vpop.f32.mrb[0].mxu0
    %v321 = vadd.f32 0.0, %v320
    %v322 = vpop.f32.mrb[0].mxu0
    %v323 = vadd.f32 0.0, %v322
    %v324 = vpop.f32.mrb[0].mxu0
    %v325 = vpop.f32.mrb[0].mxu0
    %326 = vdwg.mxu0
    %v328 = vsel %vm150, %v126, 0
    %330 = vmatprep.subr.bf16.mxu0 %v139
    %331 = vmatpush1.bf16.msra.mxu0 %v138
    %332 = vmatprep.subr.bf16.mxu0 0
    %333 = vmatpush1.bf16.msra.mxu0 0
    %334 = vmatprep.subr.bf16.mxu0 0
    %335 = vmatpush1.bf16.msra.mxu0 0
    %336 = vmatprep.subr.bf16.mxu0 0
    %337 = vmatpush1.bf16.msra.mxu0 0
    %338 = vmatprep.subr.bf16.mxu0 0
    %339 = vmatpush1.bf16.msra.mxu0 0
    %340 = vmatprep.subr.bf16.mxu0 0
    %341 = vmatpush1.bf16.msra.mxu0 0
    %342 = vmatprep.subr.bf16.mxu0 0
    %343 = vmatpush1.bf16.msra.mxu0 0
    %344 = vmatprep.subr.bf16.mxu0 0
    %345 = vmatpush1.bf16.msra.mxu0 0
    %346 = vmatprep.subr.bf16.mxu0 0
    %347 = vmatpush1.bf16.msra.mxu0 0
    %348 = vmatprep.subr.bf16.mxu0 0
    %349 = vmatpush1.bf16.msra.mxu0 0
    %350 = vmatprep.subr.bf16.mxu0 0
    %351 = vmatpush1.bf16.msra.mxu0 0
    %352 = vmatprep.subr.bf16.mxu0 0
    %353 = vmatpush1.bf16.msra.mxu0 0
    %354 = vmatprep.subr.bf16.mxu0 0
    %355 = vmatpush1.bf16.msra.mxu0 0
    %356 = vmatprep.subr.bf16.mxu0 0
    %357 = vmatpush1.bf16.msra.mxu0 0
    %358 = vmatprep.subr.bf16.mxu0 0
    %359 = vmatpush1.bf16.msra.mxu0 0
    %360 = vmatprep.subr.bf16.mxu0 0
    %361 = vmatpush1.bf16.msra.mxu0 0
    %362 = vmatprep.mubr.bf16.mxu0 0
    %363 = vmatmul.mubr.bf16.gmra.mrb[0].mxu0 %v328
    %v364 = vpop.f32.mrb[0].mxu0
    %v365 = vadd.f32 %v189, %v364
    %v366 = vpop.f32.mrb[0].mxu0
    %v367 = vadd.f32 %v191, %v366
    %v368 = vpop.f32.mrb[0].mxu0
    %v369 = vpop.f32.mrb[0].mxu0
    %370 = vdwg.mxu0
    %v372 = vsel %vm150, %v127, 0
    %374 = vmatprep.subr.bf16.mxu0 %v139
    %375 = vmatpush1.bf16.msra.mxu0 %v138
    %376 = vmatprep.subr.bf16.mxu0 0
    %377 = vmatpush1.bf16.msra.mxu0 0
    %378 = vmatprep.subr.bf16.mxu0 0
    %379 = vmatpush1.bf16.msra.mxu0 0
    %380 = vmatprep.subr.bf16.mxu0 0
    %381 = vmatpush1.bf16.msra.mxu0 0
    %382 = vmatprep.subr.bf16.mxu0 0
    %383 = vmatpush1.bf16.msra.mxu0 0
    %384 = vmatprep.subr.bf16.mxu0 0
    %385 = vmatpush1.bf16.msra.mxu0 0
    %386 = vmatprep.subr.bf16.mxu0 0
    %387 = vmatpush1.bf16.msra.mxu0 0
    %388 = vmatprep.subr.bf16.mxu0 0
    %389 = vmatpush1.bf16.msra.mxu0 0
    %390 = vmatprep.subr.bf16.mxu0 0
    %391 = vmatpush1.bf16.msra.mxu0 0
    %392 = vmatprep.subr.bf16.mxu0 0
    %393 = vmatpush1.bf16.msra.mxu0 0
    %394 = vmatprep.subr.bf16.mxu0 0
    %395 = vmatpush1.bf16.msra.mxu0 0
    %396 = vmatprep.subr.bf16.mxu0 0
    %397 = vmatpush1.bf16.msra.mxu0 0
    %398 = vmatprep.subr.bf16.mxu0 0
    %399 = vmatpush1.bf16.msra.mxu0 0
    %400 = vmatprep.subr.bf16.mxu0 0
    %401 = vmatpush1.bf16.msra.mxu0 0
    %402 = vmatprep.subr.bf16.mxu0 0
    %403 = vmatpush1.bf16.msra.mxu0 0
    %404 = vmatprep.subr.bf16.mxu0 0
    %405 = vmatpush1.bf16.msra.mxu0 0
    %406 = vmatprep.mubr.bf16.mxu0 0
    %407 = vmatmul.mubr.bf16.gmra.mrb[0].mxu0 %v372
    %v408 = vpop.f32.mrb[0].mxu0
    %v409 = vadd.f32 %v233, %v408
    %v410 = vpop.f32.mrb[0].mxu0
    %v411 = vadd.f32 %v235, %v410
    %v412 = vpop.f32.mrb[0].mxu0
    %v413 = vpop.f32.mrb[0].mxu0
    %414 = vdwg.mxu0
    %v416 = vsel %vm150, %v128, 0
    %418 = vmatprep.subr.bf16.mxu0 %v139
    %419 = vmatpush1.bf16.msra.mxu0 %v138
    %420 = vmatprep.subr.bf16.mxu0 0
    %421 = vmatpush1.bf16.msra.mxu0 0
    %422 = vmatprep.subr.bf16.mxu0 0
    %423 = vmatpush1.bf16.msra.mxu0 0
    %424 = vmatprep.subr.bf16.mxu0 0
    %425 = vmatpush1.bf16.msra.mxu0 0
    %426 = vmatprep.subr.bf16.mxu0 0
    %427 = vmatpush1.bf16.msra.mxu0 0
    %428 = vmatprep.subr.bf16.mxu0 0
    %429 = vmatpush1.bf16.msra.mxu0 0
    %430 = vmatprep.subr.bf16.mxu0 0
    %431 = vmatpush1.bf16.msra.mxu0 0
    %432 = vmatprep.subr.bf16.mxu0 0
    %433 = vmatpush1.bf16.msra.mxu0 0
    %434 = vmatprep.subr.bf16.mxu0 0
    %435 = vmatpush1.bf16.msra.mxu0 0
    %436 = vmatprep.subr.bf16.mxu0 0
    %437 = vmatpush1.bf16.msra.mxu0 0
    %438 = vmatprep.subr.bf16.mxu0 0
    %439 = vmatpush1.bf16.msra.mxu0 0
    %440 = vmatprep.subr.bf16.mxu0 0
    %441 = vmatpush1.bf16.msra.mxu0 0
    %442 = vmatprep.subr.bf16.mxu0 0
    %443 = vmatpush1.bf16.msra.mxu0 0
    %444 = vmatprep.subr.bf16.mxu0 0
    %445 = vmatpush1.bf16.msra.mxu0 0
    %446 = vmatprep.subr.bf16.mxu0 0
    %447 = vmatpush1.bf16.msra.mxu0 0
    %448 = vmatprep.subr.bf16.mxu0 0
    %449 = vmatpush1.bf16.msra.mxu0 0
    %450 = vmatprep.mubr.bf16.mxu0 0
    %451 = vmatmul.mubr.bf16.gmra.mrb[0].mxu0 %v416
    %v452 = vpop.f32.mrb[0].mxu0
    %v453 = vadd.f32 %v277, %v452
    %v454 = vpop.f32.mrb[0].mxu0
    %v455 = vadd.f32 %v279, %v454
    %v456 = vpop.f32.mrb[0].mxu0
    %v457 = vpop.f32.mrb[0].mxu0
    %458 = vdwg.mxu0
    %v460 = vsel %vm150, %v129, 0
    %462 = vmatprep.subr.bf16.mxu0 %v139
    %463 = vmatpush1.bf16.msra.mxu0 %v138
    %464 = vmatprep.subr.bf16.mxu0 0
    %465 = vmatpush1.bf16.msra.mxu0 0
    %466 = vmatprep.subr.bf16.mxu0 0
    %467 = vmatpush1.bf16.msra.mxu0 0
    %468 = vmatprep.subr.bf16.mxu0 0
    %469 = vmatpush1.bf16.msra.mxu0 0
    %470 = vmatprep.subr.bf16.mxu0 0
    %471 = vmatpush1.bf16.msra.mxu0 0
    %472 = vmatprep.subr.bf16.mxu0 0
    %473 = vmatpush1.bf16.msra.mxu0 0
    %474 = vmatprep.subr.bf16.mxu0 0
    %475 = vmatpush1.bf16.msra.mxu0 0
    %476 = vmatprep.subr.bf16.mxu0 0
    %477 = vmatpush1.bf16.msra.mxu0 0
    %478 = vmatprep.subr.bf16.mxu0 0
    %479 = vmatpush1.bf16.msra.mxu0 0
    %480 = vmatprep.subr.bf16.mxu0 0
    %481 = vmatpush1.bf16.msra.mxu0 0
    %482 = vmatprep.subr.bf16.mxu0 0
    %483 = vmatpush1.bf16.msra.mxu0 0
    %484 = vmatprep.subr.bf16.mxu0 0
    %485 = vmatpush1.bf16.msra.mxu0 0
    %486 = vmatprep.subr.bf16.mxu0 0
    %487 = vmatpush1.bf16.msra.mxu0 0
    %488 = vmatprep.subr.bf16.mxu0 0
    %489 = vmatpush1.bf16.msra.mxu0 0
    %490 = vmatprep.subr.bf16.mxu0 0
    %491 = vmatpush1.bf16.msra.mxu0 0
    %492 = vmatprep.subr.bf16.mxu0 0
    %493 = vmatpush1.bf16.msra.mxu0 0
    %494 = vmatprep.mubr.bf16.mxu0 0
    %495 = vmatmul.mubr.bf16.gmra.mrb[0].mxu0 %v460
    %v496 = vpop.f32.mrb[0].mxu0
    %v497 = vadd.f32 %v321, %v496
    %v498 = vpop.f32.mrb[0].mxu0
    %v499 = vadd.f32 %v323, %v498
    %v500 = vpop.f32.mrb[0].mxu0
    %v501 = vpop.f32.mrb[0].mxu0
    %502 = vdwg.mxu0
    %v503 = vld [vmem:[%s5] sm:$0x3]
    %v505 = vlaneseq
    %v506 = vshrl.u32 %v505, 7
    %v507 = vsub.s32 0, %v506
    %v508 = vrot.slane %v503, %v507
    %v509 = vlaneseq
    %v510 = vshrl.u32 %v509, 7
    %v511 = vsub.s32 1, %v510
    %v512 = vrot.slane %v503, %v511
    %v515 = vadd.f32 %v365, %v508
    %v516 = vadd.f32 %v367, %v512
    %v517 = vadd.f32 %v409, %v508
    %v518 = vadd.f32 %v411, %v512
    %v519 = vadd.f32 %v453, %v508
    %v520 = vadd.f32 %v455, %v512
    %v521 = vadd.f32 %v497, %v508
    %v522 = vadd.f32 %v499, %v512
    %vm523 = vcmp.gt.f32.partialorder %v515, 0.0
    %vm524 = vcmp.gt.f32.partialorder %v516, 0.0
    %vm525 = vcmp.gt.f32.partialorder %v517, 0.0
    %vm526 = vcmp.gt.f32.partialorder %v518, 0.0
    %vm527 = vcmp.gt.f32.partialorder %v519, 0.0
    %vm528 = vcmp.gt.f32.partialorder %v520, 0.0
    %vm529 = vcmp.gt.f32.partialorder %v521, 0.0
    %vm530 = vcmp.gt.f32.partialorder %v522, 0.0
    %v531 = vmul.f32 %v515, 0.22916667
    %v532 = vmul.f32 %v516, 0.22916667
    %v533 = vmul.f32 %v517, 0.22916667
    %v534 = vmul.f32 %v518, 0.22916667
    %v535 = vmul.f32 %v519, 0.22916667
    %v536 = vmul.f32 %v520, 0.22916667
    %v537 = vmul.f32 %v521, 0.22916667
    %v538 = vmul.f32 %v522, 0.22916667
    %v539 = vsel %vm523, %v515, %v531
    %v540 = vsel %vm524, %v516, %v532
    %v541 = vsel %vm525, %v517, %v533
    %v542 = vsel %vm526, %v518, %v534
    %v543 = vsel %vm527, %v519, %v535
    %v544 = vsel %vm528, %v520, %v536
    %v545 = vsel %vm529, %v521, %v537
    %v546 = vsel %vm530, %v522, %v538
    %v547 = vld [vmem:[%s2] sm:$0x1]
    %v548 = vld [vmem:[%s2 + $0x1] sm:$0x1]
    %v549 = vld [vmem:[%s2 + $0x2] sm:$0x1]
    %v550 = vld [vmem:[%s2 + $0x3] sm:$0x1]
    %v551 = vlaneseq
    %v552 = vand.u32 %v551, 127
    %553 = vset.pattern.permute.xlu0 0
    %554 = vperm.xlu0 %553, %v547
    %v555 = vpop.permute.xlu0 %554
    %v556 = vlaneseq
    %v557 = vshrl.u32 %v556, 7
    %v558 = vsub.s32 0, %v557
    %v559 = vrot.slane %v555, %v558
    %560 = vset.pattern.permute.xlu0 0
    %561 = vperm.xlu0 %560, %v548
    %v562 = vpop.permute.xlu0 %561
    %v563 = vlaneseq
    %v564 = vshrl.u32 %v563, 7
    %v565 = vsub.s32 0, %v564
    %v566 = vrot.slane %v562, %v565
    %567 = vset.pattern.permute.xlu0 0
    %568 = vperm.xlu0 %567, %v549
    %v569 = vpop.permute.xlu0 %568
    %v570 = vlaneseq
    %v571 = vshrl.u32 %v570, 7
    %v572 = vsub.s32 0, %v571
    %v573 = vrot.slane %v569, %v572
    %574 = vset.pattern.permute.xlu0 0
    %575 = vperm.xlu0 %574, %v550
    %v576 = vpop.permute.xlu0 %575
    %v577 = vlaneseq
    %v578 = vshrl.u32 %v577, 7
    %v579 = vsub.s32 0, %v578
    %v580 = vrot.slane %v576, %v579
    %vm581 = vcmp.lt.s32.totalorder %v552, %v559
    %vm582 = vcmp.lt.s32.totalorder %v552, %v566
    %vm583 = vcmp.lt.s32.totalorder %v552, %v573
    %vm584 = vcmp.lt.s32.totalorder %v552, %v580
    %v585 = vsub.s32 %v547, 1
    %v586 = vsub.s32 %v548, 1
    %v587 = vsub.s32 %v549, 1
    %v588 = vsub.s32 %v550, 1
    %589 = vset.pattern.permute.xlu0 0
    %590 = vperm.xlu0 %589, %v585
    %v591 = vpop.permute.xlu0 %590
    %v592 = vlaneseq
    %v593 = vshrl.u32 %v592, 7
    %v594 = vsub.s32 0, %v593
    %v595 = vrot.slane %v591, %v594
    %596 = vset.pattern.permute.xlu0 0
    %597 = vperm.xlu0 %596, %v586
    %v598 = vpop.permute.xlu0 %597
    %v599 = vlaneseq
    %v600 = vshrl.u32 %v599, 7
    %v601 = vsub.s32 0, %v600
    %v602 = vrot.slane %v598, %v601
    %603 = vset.pattern.permute.xlu0 0
    %604 = vperm.xlu0 %603, %v587
    %v605 = vpop.permute.xlu0 %604
    %v606 = vlaneseq
    %v607 = vshrl.u32 %v606, 7
    %v608 = vsub.s32 0, %v607
    %v609 = vrot.slane %v605, %v608
    %610 = vset.pattern.permute.xlu0 0
    %611 = vperm.xlu0 %610, %v588
    %v612 = vpop.permute.xlu0 %611
    %v613 = vlaneseq
    %v614 = vshrl.u32 %v613, 7
    %v615 = vsub.s32 0, %v614
    %v616 = vrot.slane %v612, %v615
    %vm617 = vcmp.eq.s32.totalorder %v552, %v595
    %vm618 = vcmp.eq.s32.totalorder %v552, %v602
    %vm619 = vcmp.eq.s32.totalorder %v552, %v609
    %vm620 = vcmp.eq.s32.totalorder %v552, %v616
    %v621 = vsel %vm617, 1, 0
    %v622 = vsel %vm618, 1, 0
    %v623 = vsel %vm619, 1, 0
    %v624 = vsel %vm620, 1, 0
    %v625 = vcvt.s32.f32 %v621
    %v626 = vcvt.s32.f32 %v622
    %v627 = vcvt.s32.f32 %v623
    %v628 = vcvt.s32.f32 %v624
    %v629 = vld [vmem:[%s10] sm:$0x1]
    %631 = vrot.lane.b32.xlu0 %v539, 96
    %v632 = vpop.permute.xlu0 %631
    %vm634 = vcmask 64512
    %v636 = vsel %vm634, %v625, 0
    %638 = vmatprep.subr.mxu0 0.0
    %639 = vmatpush1.msra.mxu0 %v632
    %640 = vmatprep.subr.mxu0 0.0
    %641 = vmatpush1.msra.mxu0 0.0
    %642 = vmatprep.subr.mxu0 0.0
    %643 = vmatpush1.msra.mxu0 0.0
    %644 = vmatprep.subr.mxu0 0.0
    %645 = vmatpush1.msra.mxu0 0.0
    %646 = vmatprep.subr.mxu0 0.0
    %647 = vmatpush1.msra.mxu0 0.0
    %648 = vmatprep.subr.mxu0 0.0
    %649 = vmatpush1.msra.mxu0 0.0
    %650 = vmatprep.subr.mxu0 0.0
    %651 = vmatpush1.msra.mxu0 0.0
    %652 = vmatprep.subr.mxu0 0.0
    %653 = vmatpush1.msra.mxu0 0.0
    %654 = vmatprep.subr.mxu0 0.0
    %655 = vmatpush1.msra.mxu0 0.0
    %656 = vmatprep.subr.mxu0 0.0
    %657 = vmatpush1.msra.mxu0 0.0
    %658 = vmatprep.subr.mxu0 0.0
    %659 = vmatpush1.msra.mxu0 0.0
    %660 = vmatprep.subr.mxu0 0.0
    %661 = vmatpush1.msra.mxu0 0.0
    %662 = vmatprep.subr.mxu0 0.0
    %663 = vmatpush1.msra.mxu0 0.0
    %664 = vmatprep.subr.mxu0 0.0
    %665 = vmatpush1.msra.mxu0 0.0
    %666 = vmatprep.subr.mxu0 0.0
    %667 = vmatpush1.msra.mxu0 0.0
    %668 = vmatprep.subr.mxu0 0.0
    %669 = vmatpush1.msra.mxu0 0.0
    %670 = vmatprep.subr.mxu0 0.0
    %671 = vmatpush1.msra.mxu0 0.0
    %672 = vmatprep.subr.mxu0 0.0
    %673 = vmatpush1.msra.mxu0 0.0
    %674 = vmatprep.subr.mxu0 0.0
    %675 = vmatpush1.msra.mxu0 0.0
    %676 = vmatprep.subr.mxu0 0.0
    %677 = vmatpush1.msra.mxu0 0.0
    %678 = vmatprep.subr.mxu0 0.0
    %679 = vmatpush1.msra.mxu0 0.0
    %680 = vmatprep.subr.mxu0 0.0
    %681 = vmatpush1.msra.mxu0 0.0
    %682 = vmatprep.subr.mxu0 0.0
    %683 = vmatpush1.msra.mxu0 0.0
    %684 = vmatprep.subr.mxu0 0.0
    %685 = vmatpush1.msra.mxu0 0.0
    %686 = vmatprep.subr.mxu0 0.0
    %687 = vmatpush1.msra.mxu0 0.0
    %688 = vmatprep.subr.mxu0 0.0
    %689 = vmatpush1.msra.mxu0 0.0
    %690 = vmatprep.subr.mxu0 0.0
    %691 = vmatpush1.msra.mxu0 0.0
    %692 = vmatprep.subr.mxu0 0.0
    %693 = vmatpush1.msra.mxu0 0.0
    %694 = vmatprep.subr.mxu0 0.0
    %695 = vmatpush1.msra.mxu0 0.0
    %696 = vmatprep.subr.mxu0 0.0
    %697 = vmatpush1.msra.mxu0 0.0
    %698 = vmatprep.subr.mxu0 0.0
    %699 = vmatpush1.msra.mxu0 0.0
    %700 = vmatprep.subr.mxu0 0.0
    %701 = vmatpush1.msra.mxu0 0.0
    %702 = vmatprep.mubr.f32.mxu0 0.0
    %703 = vmatmul.mubr.f32.gmra.mrb[0].mxu0 %v636
    %v704 = vpop.f32.mrb[0].mxu0
    %v705 = vadd.f32 0.0, %v704
    %v706 = vpop.f32.mrb[0].mxu0
    %707 = vdwg.mxu0
    %709 = vrot.lane.b32.xlu0 %v541, 96
    %v710 = vpop.permute.xlu0 %709
    %v713 = vsel %vm634, %v626, 0
    %715 = vmatprep.subr.mxu0 0.0
    %716 = vmatpush1.msra.mxu0 %v710
    %717 = vmatprep.subr.mxu0 0.0
    %718 = vmatpush1.msra.mxu0 0.0
    %719 = vmatprep.subr.mxu0 0.0
    %720 = vmatpush1.msra.mxu0 0.0
    %721 = vmatprep.subr.mxu0 0.0
    %722 = vmatpush1.msra.mxu0 0.0
    %723 = vmatprep.subr.mxu0 0.0
    %724 = vmatpush1.msra.mxu0 0.0
    %725 = vmatprep.subr.mxu0 0.0
    %726 = vmatpush1.msra.mxu0 0.0
    %727 = vmatprep.subr.mxu0 0.0
    %728 = vmatpush1.msra.mxu0 0.0
    %729 = vmatprep.subr.mxu0 0.0
    %730 = vmatpush1.msra.mxu0 0.0
    %731 = vmatprep.subr.mxu0 0.0
    %732 = vmatpush1.msra.mxu0 0.0
    %733 = vmatprep.subr.mxu0 0.0
    %734 = vmatpush1.msra.mxu0 0.0
    %735 = vmatprep.subr.mxu0 0.0
    %736 = vmatpush1.msra.mxu0 0.0
    %737 = vmatprep.subr.mxu0 0.0
    %738 = vmatpush1.msra.mxu0 0.0
    %739 = vmatprep.subr.mxu0 0.0
    %740 = vmatpush1.msra.mxu0 0.0
    %741 = vmatprep.subr.mxu0 0.0
    %742 = vmatpush1.msra.mxu0 0.0
    %743 = vmatprep.subr.mxu0 0.0
    %744 = vmatpush1.msra.mxu0 0.0
    %745 = vmatprep.subr.mxu0 0.0
    %746 = vmatpush1.msra.mxu0 0.0
    %747 = vmatprep.subr.mxu0 0.0
    %748 = vmatpush1.msra.mxu0 0.0
    %749 = vmatprep.subr.mxu0 0.0
    %750 = vmatpush1.msra.mxu0 0.0
    %751 = vmatprep.subr.mxu0 0.0
    %752 = vmatpush1.msra.mxu0 0.0
    %753 = vmatprep.subr.mxu0 0.0
    %754 = vmatpush1.msra.mxu0 0.0
    %755 = vmatprep.subr.mxu0 0.0
    %756 = vmatpush1.msra.mxu0 0.0
    %757 = vmatprep.subr.mxu0 0.0
    %758 = vmatpush1.msra.mxu0 0.0
    %759 = vmatprep.subr.mxu0 0.0
    %760 = vmatpush1.msra.mxu0 0.0
    %761 = vmatprep.subr.mxu0 0.0
    %762 = vmatpush1.msra.mxu0 0.0
    %763 = vmatprep.subr.mxu0 0.0
    %764 = vmatpush1.msra.mxu0 0.0
    %765 = vmatprep.subr.mxu0 0.0
    %766 = vmatpush1.msra.mxu0 0.0
    %767 = vmatprep.subr.mxu0 0.0
    %768 = vmatpush1.msra.mxu0 0.0
    %769 = vmatprep.subr.mxu0 0.0
    %770 = vmatpush1.msra.mxu0 0.0
    %771 = vmatprep.subr.mxu0 0.0
    %772 = vmatpush1.msra.mxu0 0.0
    %773 = vmatprep.subr.mxu0 0.0
    %774 = vmatpush1.msra.mxu0 0.0
    %775 = vmatprep.subr.mxu0 0.0
    %776 = vmatpush1.msra.mxu0 0.0
    %777 = vmatprep.subr.mxu0 0.0
    %778 = vmatpush1.msra.mxu0 0.0
    %779 = vmatprep.mubr.f32.mxu0 0.0
    %780 = vmatmul.mubr.f32.gmra.mrb[0].mxu0 %v713
    %v781 = vpop.f32.mrb[0].mxu0
    %v782 = vadd.f32 0.0, %v781
    %v783 = vpop.f32.mrb[0].mxu0
    %784 = vdwg.mxu0
    %786 = vrot.lane.b32.xlu0 %v543, 96
    %v787 = vpop.permute.xlu0 %786
    %v790 = vsel %vm634, %v627, 0
    %792 = vmatprep.subr.mxu0 0.0
    %793 = vmatpush1.msra.mxu0 %v787
    %794 = vmatprep.subr.mxu0 0.0
    %795 = vmatpush1.msra.mxu0 0.0
    %796 = vmatprep.subr.mxu0 0.0
    %797 = vmatpush1.msra.mxu0 0.0
    %798 = vmatprep.subr.mxu0 0.0
    %799 = vmatpush1.msra.mxu0 0.0
    %800 = vmatprep.subr.mxu0 0.0
    %801 = vmatpush1.msra.mxu0 0.0
    %802 = vmatprep.subr.mxu0 0.0
    %803 = vmatpush1.msra.mxu0 0.0
    %804 = vmatprep.subr.mxu0 0.0
    %805 = vmatpush1.msra.mxu0 0.0
    %806 = vmatprep.subr.mxu0 0.0
    %807 = vmatpush1.msra.mxu0 0.0
    %808 = vmatprep.subr.mxu0 0.0
    %809 = vmatpush1.msra.mxu0 0.0
    %810 = vmatprep.subr.mxu0 0.0
    %811 = vmatpush1.msra.mxu0 0.0
    %812 = vmatprep.subr.mxu0 0.0
    %813 = vmatpush1.msra.mxu0 0.0
    %814 = vmatprep.subr.mxu0 0.0
    %815 = vmatpush1.msra.mxu0 0.0
    %816 = vmatprep.subr.mxu0 0.0
    %817 = vmatpush1.msra.mxu0 0.0
    %818 = vmatprep.subr.mxu0 0.0
    %819 = vmatpush1.msra.mxu0 0.0
    %820 = vmatprep.subr.mxu0 0.0
    %821 = vmatpush1.msra.mxu0 0.0
    %822 = vmatprep.subr.mxu0 0.0
    %823 = vmatpush1.msra.mxu0 0.0
    %824 = vmatprep.subr.mxu0 0.0
    %825 = vmatpush1.msra.mxu0 0.0
    %826 = vmatprep.subr.mxu0 0.0
    %827 = vmatpush1.msra.mxu0 0.0
    %828 = vmatprep.subr.mxu0 0.0
    %829 = vmatpush1.msra.mxu0 0.0
    %830 = vmatprep.subr.mxu0 0.0
    %831 = vmatpush1.msra.mxu0 0.0
    %832 = vmatprep.subr.mxu0 0.0
    %833 = vmatpush1.msra.mxu0 0.0
    %834 = vmatprep.subr.mxu0 0.0
    %835 = vmatpush1.msra.mxu0 0.0
    %836 = vmatprep.subr.mxu0 0.0
    %837 = vmatpush1.msra.mxu0 0.0
    %838 = vmatprep.subr.mxu0 0.0
    %839 = vmatpush1.msra.mxu0 0.0
    %840 = vmatprep.subr.mxu0 0.0
    %841 = vmatpush1.msra.mxu0 0.0
    %842 = vmatprep.subr.mxu0 0.0
    %843 = vmatpush1.msra.mxu0 0.0
    %844 = vmatprep.subr.mxu0 0.0
    %845 = vmatpush1.msra.mxu0 0.0
    %846 = vmatprep.subr.mxu0 0.0
    %847 = vmatpush1.msra.mxu0 0.0
    %848 = vmatprep.subr.mxu0 0.0
    %849 = vmatpush1.msra.mxu0 0.0
    %850 = vmatprep.subr.mxu0 0.0
    %851 = vmatpush1.msra.mxu0 0.0
    %852 = vmatprep.subr.mxu0 0.0
    %853 = vmatpush1.msra.mxu0 0.0
    %854 = vmatprep.subr.mxu0 0.0
    %855 = vmatpush1.msra.mxu0 0.0
    %856 = vmatprep.mubr.f32.mxu0 0.0
    %857 = vmatmul.mubr.f32.gmra.mrb[0].mxu0 %v790
    %v858 = vpop.f32.mrb[0].mxu0
    %v859 = vadd.f32 0.0, %v858
    %v860 = vpop.f32.mrb[0].mxu0
    %861 = vdwg.mxu0
    %863 = vrot.lane.b32.xlu0 %v545, 96
    %v864 = vpop.permute.xlu0 %863
    %v867 = vsel %vm634, %v628, 0
    %869 = vmatprep.subr.mxu0 0.0
    %870 = vmatpush1.msra.mxu0 %v864
    %871 = vmatprep.subr.mxu0 0.0
    %872 = vmatpush1.msra.mxu0 0.0
    %873 = vmatprep.subr.mxu0 0.0
    %874 = vmatpush1.msra.mxu0 0.0
    %875 = vmatprep.subr.mxu0 0.0
    %876 = vmatpush1.msra.mxu0 0.0
    %877 = vmatprep.subr.mxu0 0.0
    %878 = vmatpush1.msra.mxu0 0.0
    %879 = vmatprep.subr.mxu0 0.0
    %880 = vmatpush1.msra.mxu0 0.0
    %881 = vmatprep.subr.mxu0 0.0
    %882 = vmatpush1.msra.mxu0 0.0
    %883 = vmatprep.subr.mxu0 0.0
    %884 = vmatpush1.msra.mxu0 0.0
    %885 = vmatprep.subr.mxu0 0.0
    %886 = vmatpush1.msra.mxu0 0.0
    %887 = vmatprep.subr.mxu0 0.0
    %888 = vmatpush1.msra.mxu0 0.0
    %889 = vmatprep.subr.mxu0 0.0
    %890 = vmatpush1.msra.mxu0 0.0
    %891 = vmatprep.subr.mxu0 0.0
    %892 = vmatpush1.msra.mxu0 0.0
    %893 = vmatprep.subr.mxu0 0.0
    %894 = vmatpush1.msra.mxu0 0.0
    %895 = vmatprep.subr.mxu0 0.0
    %896 = vmatpush1.msra.mxu0 0.0
    %897 = vmatprep.subr.mxu0 0.0
    %898 = vmatpush1.msra.mxu0 0.0
    %899 = vmatprep.subr.mxu0 0.0
    %900 = vmatpush1.msra.mxu0 0.0
    %901 = vmatprep.subr.mxu0 0.0
    %902 = vmatpush1.msra.mxu0 0.0
    %903 = vmatprep.subr.mxu0 0.0
    %904 = vmatpush1.msra.mxu0 0.0
    %905 = vmatprep.subr.mxu0 0.0
    %906 = vmatpush1.msra.mxu0 0.0
    %907 = vmatprep.subr.mxu0 0.0
    %908 = vmatpush1.msra.mxu0 0.0
    %909 = vmatprep.subr.mxu0 0.0
    %910 = vmatpush1.msra.mxu0 0.0
    %911 = vmatprep.subr.mxu0 0.0
    %912 = vmatpush1.msra.mxu0 0.0
    %913 = vmatprep.subr.mxu0 0.0
    %914 = vmatpush1.msra.mxu0 0.0
    %915 = vmatprep.subr.mxu0 0.0
    %916 = vmatpush1.msra.mxu0 0.0
    %917 = vmatprep.subr.mxu0 0.0
    %918 = vmatpush1.msra.mxu0 0.0
    %919 = vmatprep.subr.mxu0 0.0
    %920 = vmatpush1.msra.mxu0 0.0
    %921 = vmatprep.subr.mxu0 0.0
    %922 = vmatpush1.msra.mxu0 0.0
    %923 = vmatprep.subr.mxu0 0.0
    %924 = vmatpush1.msra.mxu0 0.0
    %925 = vmatprep.subr.mxu0 0.0
    %926 = vmatpush1.msra.mxu0 0.0
    %927 = vmatprep.subr.mxu0 0.0
    %928 = vmatpush1.msra.mxu0 0.0
    %929 = vmatprep.subr.mxu0 0.0
    %930 = vmatpush1.msra.mxu0 0.0
    %931 = vmatprep.subr.mxu0 0.0
    %932 = vmatpush1.msra.mxu0 0.0
    %933 = vmatprep.mubr.f32.mxu0 0.0
    %934 = vmatmul.mubr.f32.gmra.mrb[0].mxu0 %v867
    %v935 = vpop.f32.mrb[0].mxu0
    %v936 = vadd.f32 0.0, %v935
    %v937 = vpop.f32.mrb[0].mxu0
    %938 = vdwg.mxu0
    %vm939 = vcmask 261120
    %v941 = vsel %vm939, %v705, 0
    %v943 = vsel %vm939, %v539, 0
    %945 = vmatprep.subr.mxu0 0.0
    %946 = vmatpush1.xpose.msra.mxu0 %v943
    %947 = vmatprep.subr.mxu0 0.0
    %948 = vmatpush1.xpose.msra.mxu0 0.0
    %949 = vmatprep.subr.mxu0 0.0
    %950 = vmatpush1.xpose.msra.mxu0 0.0
    %951 = vmatprep.subr.mxu0 0.0
    %952 = vmatpush1.xpose.msra.mxu0 0.0
    %953 = vmatprep.subr.mxu0 0.0
    %954 = vmatpush1.xpose.msra.mxu0 0.0
    %955 = vmatprep.subr.mxu0 0.0
    %956 = vmatpush1.xpose.msra.mxu0 0.0
    %957 = vmatprep.subr.mxu0 0.0
    %958 = vmatpush1.xpose.msra.mxu0 0.0
    %959 = vmatprep.subr.mxu0 0.0
    %960 = vmatpush1.xpose.msra.mxu0 0.0
    %961 = vmatprep.subr.mxu0 0.0
    %962 = vmatpush1.xpose.msra.mxu0 0.0
    %963 = vmatprep.subr.mxu0 0.0
    %964 = vmatpush1.xpose.msra.mxu0 0.0
    %965 = vmatprep.subr.mxu0 0.0
    %966 = vmatpush1.xpose.msra.mxu0 0.0
    %967 = vmatprep.subr.mxu0 0.0
    %968 = vmatpush1.xpose.msra.mxu0 0.0
    %969 = vmatprep.subr.mxu0 0.0
    %970 = vmatpush1.xpose.msra.mxu0 0.0
    %971 = vmatprep.subr.mxu0 0.0
    %972 = vmatpush1.xpose.msra.mxu0 0.0
    %973 = vmatprep.subr.mxu0 0.0
    %974 = vmatpush1.xpose.msra.mxu0 0.0
    %975 = vmatprep.subr.mxu0 0.0
    %976 = vmatpush1.xpose.msra.mxu0 0.0
    %977 = vmatprep.subr.mxu0 0.0
    %978 = vmatpush1.xpose.msra.mxu0 0.0
    %979 = vmatprep.subr.mxu0 0.0
    %980 = vmatpush1.xpose.msra.mxu0 0.0
    %981 = vmatprep.subr.mxu0 0.0
    %982 = vmatpush1.xpose.msra.mxu0 0.0
    %983 = vmatprep.subr.mxu0 0.0
    %984 = vmatpush1.xpose.msra.mxu0 0.0
    %985 = vmatprep.subr.mxu0 0.0
    %986 = vmatpush1.xpose.msra.mxu0 0.0
    %987 = vmatprep.subr.mxu0 0.0
    %988 = vmatpush1.xpose.msra.mxu0 0.0
    %989 = vmatprep.subr.mxu0 0.0
    %990 = vmatpush1.xpose.msra.mxu0 0.0
    %991 = vmatprep.subr.mxu0 0.0
    %992 = vmatpush1.xpose.msra.mxu0 0.0
    %993 = vmatprep.subr.mxu0 0.0
    %994 = vmatpush1.xpose.msra.mxu0 0.0
    %995 = vmatprep.subr.mxu0 0.0
    %996 = vmatpush1.xpose.msra.mxu0 0.0
    %997 = vmatprep.subr.mxu0 0.0
    %998 = vmatpush1.xpose.msra.mxu0 0.0
    %999 = vmatprep.subr.mxu0 0.0
    %1000 = vmatpush1.xpose.msra.mxu0 0.0
    %1001 = vmatprep.subr.mxu0 0.0
    %1002 = vmatpush1.xpose.msra.mxu0 0.0
    %1003 = vmatprep.subr.mxu0 0.0
    %1004 = vmatpush1.xpose.msra.mxu0 0.0
    %1005 = vmatprep.subr.mxu0 0.0
    %1006 = vmatpush1.xpose.msra.mxu0 0.0
    %1007 = vmatprep.subr.mxu0 0.0
    %1008 = vmatpush1.xpose.msra.mxu0 0.0
    %1009 = vmatprep.mubr.f32.mxu0 0.0
    %1010 = vmatmul.mubr.f32.gmra.mrb[0].mxu0 %v941
    %v1011 = vpop.f32.mrb[0].mxu0
    %v1012 = vadd.f32 0.0, %v1011
    %v1013 = vpop.f32.mrb[0].mxu0
    %1014 = vdwg.mxu0
    %v1016 = vsel %vm939, %v782, 0
    %v1018 = vsel %vm939, %v541, 0
    %1020 = vmatprep.subr.mxu0 0.0
    %1021 = vmatpush1.xpose.msra.mxu0 %v1018
    %1022 = vmatprep.subr.mxu0 0.0
    %1023 = vmatpush1.xpose.msra.mxu0 0.0
    %1024 = vmatprep.subr.mxu0 0.0
    %1025 = vmatpush1.xpose.msra.mxu0 0.0
    %1026 = vmatprep.subr.mxu0 0.0
    %1027 = vmatpush1.xpose.msra.mxu0 0.0
    %1028 = vmatprep.subr.mxu0 0.0
    %1029 = vmatpush1.xpose.msra.mxu0 0.0
    %1030 = vmatprep.subr.mxu0 0.0
    %1031 = vmatpush1.xpose.msra.mxu0 0.0
    %1032 = vmatprep.subr.mxu0 0.0
    %1033 = vmatpush1.xpose.msra.mxu0 0.0
    %1034 = vmatprep.subr.mxu0 0.0
    %1035 = vmatpush1.xpose.msra.mxu0 0.0
    %1036 = vmatprep.subr.mxu0 0.0
    %1037 = vmatpush1.xpose.msra.mxu0 0.0
    %1038 = vmatprep.subr.mxu0 0.0
    %1039 = vmatpush1.xpose.msra.mxu0 0.0
    %1040 = vmatprep.subr.mxu0 0.0
    %1041 = vmatpush1.xpose.msra.mxu0 0.0
    %1042 = vmatprep.subr.mxu0 0.0
    %1043 = vmatpush1.xpose.msra.mxu0 0.0
    %1044 = vmatprep.subr.mxu0 0.0
    %1045 = vmatpush1.xpose.msra.mxu0 0.0
    %1046 = vmatprep.subr.mxu0 0.0
    %1047 = vmatpush1.xpose.msra.mxu0 0.0
    %1048 = vmatprep.subr.mxu0 0.0
    %1049 = vmatpush1.xpose.msra.mxu0 0.0
    %1050 = vmatprep.subr.mxu0 0.0
    %1051 = vmatpush1.xpose.msra.mxu0 0.0
    %1052 = vmatprep.subr.mxu0 0.0
    %1053 = vmatpush1.xpose.msra.mxu0 0.0
    %1054 = vmatprep.subr.mxu0 0.0
    %1055 = vmatpush1.xpose.msra.mxu0 0.0
    %1056 = vmatprep.subr.mxu0 0.0
    %1057 = vmatpush1.xpose.msra.mxu0 0.0
    %1058 = vmatprep.subr.mxu0 0.0
    %1059 = vmatpush1.xpose.msra.mxu0 0.0
    %1060 = vmatprep.subr.mxu0 0.0
    %1061 = vmatpush1.xpose.msra.mxu0 0.0
    %1062 = vmatprep.subr.mxu0 0.0
    %1063 = vmatpush1.xpose.msra.mxu0 0.0
    %1064 = vmatprep.subr.mxu0 0.0
    %1065 = vmatpush1.xpose.msra.mxu0 0.0
    %1066 = vmatprep.subr.mxu0 0.0
    %1067 = vmatpush1.xpose.msra.mxu0 0.0
    %1068 = vmatprep.subr.mxu0 0.0
    %1069 = vmatpush1.xpose.msra.mxu0 0.0
    %1070 = vmatprep.subr.mxu0 0.0
    %1071 = vmatpush1.xpose.msra.mxu0 0.0
    %1072 = vmatprep.subr.mxu0 0.0
    %1073 = vmatpush1.xpose.msra.mxu0 0.0
    %1074 = vmatprep.subr.mxu0 0.0
    %1075 = vmatpush1.xpose.msra.mxu0 0.0
    %1076 = vmatprep.subr.mxu0 0.0
    %1077 = vmatpush1.xpose.msra.mxu0 0.0
    %1078 = vmatprep.subr.mxu0 0.0
    %1079 = vmatpush1.xpose.msra.mxu0 0.0
    %1080 = vmatprep.subr.mxu0 0.0
    %1081 = vmatpush1.xpose.msra.mxu0 0.0
    %1082 = vmatprep.subr.mxu0 0.0
    %1083 = vmatpush1.xpose.msra.mxu0 0.0
    %1084 = vmatprep.mubr.f32.mxu0 0.0
    %1085 = vmatmul.mubr.f32.gmra.mrb[0].mxu0 %v1016
    %v1086 = vpop.f32.mrb[0].mxu0
    %v1087 = vadd.f32 0.0, %v1086
    %v1088 = vpop.f32.mrb[0].mxu0
    %1089 = vdwg.mxu0
    %v1091 = vsel %vm939, %v859, 0
    %v1093 = vsel %vm939, %v543, 0
    %1095 = vmatprep.subr.mxu0 0.0
    %1096 = vmatpush1.xpose.msra.mxu0 %v1093
    %1097 = vmatprep.subr.mxu0 0.0
    %1098 = vmatpush1.xpose.msra.mxu0 0.0
    %1099 = vmatprep.subr.mxu0 0.0
    %1100 = vmatpush1.xpose.msra.mxu0 0.0
    %1101 = vmatprep.subr.mxu0 0.0
    %1102 = vmatpush1.xpose.msra.mxu0 0.0
    %1103 = vmatprep.subr.mxu0 0.0
    %1104 = vmatpush1.xpose.msra.mxu0 0.0
    %1105 = vmatprep.subr.mxu0 0.0
    %1106 = vmatpush1.xpose.msra.mxu0 0.0
    %1107 = vmatprep.subr.mxu0 0.0
    %1108 = vmatpush1.xpose.msra.mxu0 0.0
    %1109 = vmatprep.subr.mxu0 0.0
    %1110 = vmatpush1.xpose.msra.mxu0 0.0
    %1111 = vmatprep.subr.mxu0 0.0
    %1112 = vmatpush1.xpose.msra.mxu0 0.0
    %1113 = vmatprep.subr.mxu0 0.0
    %1114 = vmatpush1.xpose.msra.mxu0 0.0
    %1115 = vmatprep.subr.mxu0 0.0
    %1116 = vmatpush1.xpose.msra.mxu0 0.0
    %1117 = vmatprep.subr.mxu0 0.0
    %1118 = vmatpush1.xpose.msra.mxu0 0.0
    %1119 = vmatprep.subr.mxu0 0.0
    %1120 = vmatpush1.xpose.msra.mxu0 0.0
    %1121 = vmatprep.subr.mxu0 0.0
    %1122 = vmatpush1.xpose.msra.mxu0 0.0
    %1123 = vmatprep.subr.mxu0 0.0
    %1124 = vmatpush1.xpose.msra.mxu0 0.0
    %1125 = vmatprep.subr.mxu0 0.0
    %1126 = vmatpush1.xpose.msra.mxu0 0.0
    %1127 = vmatprep.subr.mxu0 0.0
    %1128 = vmatpush1.xpose.msra.mxu0 0.0
    %1129 = vmatprep.subr.mxu0 0.0
    %1130 = vmatpush1.xpose.msra.mxu0 0.0
    %1131 = vmatprep.subr.mxu0 0.0
    %1132 = vmatpush1.xpose.msra.mxu0 0.0
    %1133 = vmatprep.subr.mxu0 0.0
    %1134 = vmatpush1.xpose.msra.mxu0 0.0
    %1135 = vmatprep.subr.mxu0 0.0
    %1136 = vmatpush1.xpose.msra.mxu0 0.0
    %1137 = vmatprep.subr.mxu0 0.0
    %1138 = vmatpush1.xpose.msra.mxu0 0.0
    %1139 = vmatprep.subr.mxu0 0.0
    %1140 = vmatpush1.xpose.msra.mxu0 0.0
    %1141 = vmatprep.subr.mxu0 0.0
    %1142 = vmatpush1.xpose.msra.mxu0 0.0
    %1143 = vmatprep.subr.mxu0 0.0
    %1144 = vmatpush1.xpose.msra.mxu0 0.0
    %1145 = vmatprep.subr.mxu0 0.0
    %1146 = vmatpush1.xpose.msra.mxu0 0.0
    %1147 = vmatprep.subr.mxu0 0.0
    %1148 = vmatpush1.xpose.msra.mxu0 0.0
    %1149 = vmatprep.subr.mxu0 0.0
    %1150 = vmatpush1.xpose.msra.mxu0 0.0
    %1151 = vmatprep.subr.mxu0 0.0
    %1152 = vmatpush1.xpose.msra.mxu0 0.0
    %1153 = vmatprep.subr.mxu0 0.0
    %1154 = vmatpush1.xpose.msra.mxu0 0.0
    %1155 = vmatprep.subr.mxu0 0.0
    %1156 = vmatpush1.xpose.msra.mxu0 0.0
    %1157 = vmatprep.subr.mxu0 0.0
    %1158 = vmatpush1.xpose.msra.mxu0 0.0
    %1159 = vmatprep.mubr.f32.mxu0 0.0
    %1160 = vmatmul.mubr.f32.gmra.mrb[0].mxu0 %v1091
    %v1161 = vpop.f32.mrb[0].mxu0
    %v1162 = vadd.f32 0.0, %v1161
    %v1163 = vpop.f32.mrb[0].mxu0
    %1164 = vdwg.mxu0
    %v1166 = vsel %vm939, %v936, 0
    %v1168 = vsel %vm939, %v545, 0
    %1170 = vmatprep.subr.mxu0 0.0
    %1171 = vmatpush1.xpose.msra.mxu0 %v1168
    %1172 = vmatprep.subr.mxu0 0.0
    %1173 = vmatpush1.xpose.msra.mxu0 0.0
    %1174 = vmatprep.subr.mxu0 0.0
    %1175 = vmatpush1.xpose.msra.mxu0 0.0
    %1176 = vmatprep.subr.mxu0 0.0
    %1177 = vmatpush1.xpose.msra.mxu0 0.0
    %1178 = vmatprep.subr.mxu0 0.0
    %1179 = vmatpush1.xpose.msra.mxu0 0.0
    %1180 = vmatprep.subr.mxu0 0.0
    %1181 = vmatpush1.xpose.msra.mxu0 0.0
    %1182 = vmatprep.subr.mxu0 0.0
    %1183 = vmatpush1.xpose.msra.mxu0 0.0
    %1184 = vmatprep.subr.mxu0 0.0
    %1185 = vmatpush1.xpose.msra.mxu0 0.0
    %1186 = vmatprep.subr.mxu0 0.0
    %1187 = vmatpush1.xpose.msra.mxu0 0.0
    %1188 = vmatprep.subr.mxu0 0.0
    %1189 = vmatpush1.xpose.msra.mxu0 0.0
    %1190 = vmatprep.subr.mxu0 0.0
    %1191 = vmatpush1.xpose.msra.mxu0 0.0
    %1192 = vmatprep.subr.mxu0 0.0
    %1193 = vmatpush1.xpose.msra.mxu0 0.0
    %1194 = vmatprep.subr.mxu0 0.0
    %1195 = vmatpush1.xpose.msra.mxu0 0.0
    %1196 = vmatprep.subr.mxu0 0.0
    %1197 = vmatpush1.xpose.msra.mxu0 0.0
    %1198 = vmatprep.subr.mxu0 0.0
    %1199 = vmatpush1.xpose.msra.mxu0 0.0
    %1200 = vmatprep.subr.mxu0 0.0
    %1201 = vmatpush1.xpose.msra.mxu0 0.0
    %1202 = vmatprep.subr.mxu0 0.0
    %1203 = vmatpush1.xpose.msra.mxu0 0.0
    %1204 = vmatprep.subr.mxu0 0.0
    %1205 = vmatpush1.xpose.msra.mxu0 0.0
    %1206 = vmatprep.subr.mxu0 0.0
    %1207 = vmatpush1.xpose.msra.mxu0 0.0
    %1208 = vmatprep.subr.mxu0 0.0
    %1209 = vmatpush1.xpose.msra.mxu0 0.0
    %1210 = vmatprep.subr.mxu0 0.0
    %1211 = vmatpush1.xpose.msra.mxu0 0.0
    %1212 = vmatprep.subr.mxu0 0.0
    %1213 = vmatpush1.xpose.msra.mxu0 0.0
    %1214 = vmatprep.subr.mxu0 0.0
    %1215 = vmatpush1.xpose.msra.mxu0 0.0
    %1216 = vmatprep.subr.mxu0 0.0
    %1217 = vmatpush1.xpose.msra.mxu0 0.0
    %1218 = vmatprep.subr.mxu0 0.0
    %1219 = vmatpush1.xpose.msra.mxu0 0.0
    %1220 = vmatprep.subr.mxu0 0.0
    %1221 = vmatpush1.xpose.msra.mxu0 0.0
    %1222 = vmatprep.subr.mxu0 0.0
    %1223 = vmatpush1.xpose.msra.mxu0 0.0
    %1224 = vmatprep.subr.mxu0 0.0
    %1225 = vmatpush1.xpose.msra.mxu0 0.0
    %1226 = vmatprep.subr.mxu0 0.0
    %1227 = vmatpush1.xpose.msra.mxu0 0.0
    %1228 = vmatprep.subr.mxu0 0.0
    %1229 = vmatpush1.xpose.msra.mxu0 0.0
    %1230 = vmatprep.subr.mxu0 0.0
    %1231 = vmatpush1.xpose.msra.mxu0 0.0
    %1232 = vmatprep.subr.mxu0 0.0
    %1233 = vmatpush1.xpose.msra.mxu0 0.0
    %1234 = vmatprep.mubr.f32.mxu0 0.0
    %1235 = vmatmul.mubr.f32.gmra.mrb[0].mxu0 %v1166
    %v1236 = vpop.f32.mrb[0].mxu0
    %v1237 = vadd.f32 0.0, %v1236
    %v1238 = vpop.f32.mrb[0].mxu0
    %1239 = vdwg.mxu0
    %v1240 = vmul.f32 %v1012, 0.17677669
    %v1241 = vmul.f32 %v1087, 0.17677669
    %v1242 = vmul.f32 %v1162, 0.17677669
    %v1243 = vmul.f32 %v1237, 0.17677669
    %v1244 = vsel %vm581, %v1240, -1e+30
    %v1245 = vsel %vm582, %v1241, -1e+30
    %v1246 = vsel %vm583, %v1242, -1e+30
    %v1247 = vsel %vm584, %v1243, -1e+30
    %vm1248 = vcmask 57344
    %v1249 = vsel %vm1248, %v1244, -inf
    %1250 = vmax.xlane.f32.xlu0 %v1249
    %v1251 = vpop.xlane.xlu0 %1250
    %v1252 = vsel %vm1248, %v1245, -inf
    %1253 = vmax.xlane.f32.xlu0 %v1252
    %v1254 = vpop.xlane.xlu0 %1253
    %v1255 = vsel %vm1248, %v1246, -inf
    %1256 = vmax.xlane.f32.xlu0 %v1255
    %v1257 = vpop.xlane.xlu0 %1256
    %v1258 = vsel %vm1248, %v1247, -inf
    %1259 = vmax.xlane.f32.xlu0 %v1258
    %v1260 = vpop.xlane.xlu0 %1259
    %v1261 = vsub.f32 %v1244, %v1251
    %v1262 = vsub.f32 %v1245, %v1254
    %v1263 = vsub.f32 %v1246, %v1257
    %v1264 = vsub.f32 %v1247, %v1260
    %v1265 = vmul.f32 %v1261, 1.442695
    %v1266 = vpow.pop %v1265
    %v1267 = vmul.f32 %v1262, 1.442695
    %v1268 = vpow.pop %v1267
    %v1269 = vmul.f32 %v1263, 1.442695
    %v1270 = vpow.pop %v1269
    %v1271 = vmul.f32 %v1264, 1.442695
    %v1272 = vpow.pop %v1271
    %v1273 = vsel %vm581, 1, 0
    %v1274 = vsel %vm582, 1, 0
    %v1275 = vsel %vm583, 1, 0
    %v1276 = vsel %vm584, 1, 0
    %v1277 = vcvt.s32.f32 %v1273
    %v1278 = vcvt.s32.f32 %v1274
    %v1279 = vcvt.s32.f32 %v1275
    %v1280 = vcvt.s32.f32 %v1276
    %v1281 = vmul.f32 %v1266, %v1277
    %v1282 = vmul.f32 %v1268, %v1278
    %v1283 = vmul.f32 %v1270, %v1279
    %v1284 = vmul.f32 %v1272, %v1280
    %v1285 = vsel %vm1248, %v1281, 0.0
    %1286 = vadd.xlane.f32.xlu0 %v1285
    %v1287 = vpop.xlane.xlu0 %1286
    %v1288 = vsel %vm1248, %v1282, 0.0
    %1289 = vadd.xlane.f32.xlu0 %v1288
    %v1290 = vpop.xlane.xlu0 %1289
    %v1291 = vsel %vm1248, %v1283, 0.0
    %1292 = vadd.xlane.f32.xlu0 %v1291
    %v1293 = vpop.xlane.xlu0 %1292
    %v1294 = vsel %vm1248, %v1284, 0.0
    %1295 = vadd.xlane.f32.xlu0 %v1294
    %v1296 = vpop.xlane.xlu0 %1295
    %v1297 = vrcp.pop %v1287
    %v1298 = vmul.f32 %v1281, %v1297
    %v1299 = vrcp.pop %v1290
    %v1300 = vmul.f32 %v1282, %v1299
    %v1301 = vrcp.pop %v1293
    %v1302 = vmul.f32 %v1283, %v1301
    %v1303 = vrcp.pop %v1296
    %v1304 = vmul.f32 %v1284, %v1303
    %1305 = vrot.lane.b32.xlu0 %v539, 64
    %v1306 = vpop.permute.xlu0 %1305
    %v1309 = vsel %vm634, %v1298, 0
    %1311 = vmatprep.subr.mxu0 0.0
    %1312 = vmatpush1.msra.mxu0 %v1306
    %1313 = vmatprep.subr.mxu0 0.0
    %1314 = vmatpush1.msra.mxu0 0.0
    %1315 = vmatprep.subr.mxu0 0.0
    %1316 = vmatpush1.msra.mxu0 0.0
    %1317 = vmatprep.subr.mxu0 0.0
    %1318 = vmatpush1.msra.mxu0 0.0
    %1319 = vmatprep.subr.mxu0 0.0
    %1320 = vmatpush1.msra.mxu0 0.0
    %1321 = vmatprep.subr.mxu0 0.0
    %1322 = vmatpush1.msra.mxu0 0.0
    %1323 = vmatprep.subr.mxu0 0.0
    %1324 = vmatpush1.msra.mxu0 0.0
    %1325 = vmatprep.subr.mxu0 0.0
    %1326 = vmatpush1.msra.mxu0 0.0
    %1327 = vmatprep.subr.mxu0 0.0
    %1328 = vmatpush1.msra.mxu0 0.0
    %1329 = vmatprep.subr.mxu0 0.0
    %1330 = vmatpush1.msra.mxu0 0.0
    %1331 = vmatprep.subr.mxu0 0.0
    %1332 = vmatpush1.msra.mxu0 0.0
    %1333 = vmatprep.subr.mxu0 0.0
    %1334 = vmatpush1.msra.mxu0 0.0
    %1335 = vmatprep.subr.mxu0 0.0
    %1336 = vmatpush1.msra.mxu0 0.0
    %1337 = vmatprep.subr.mxu0 0.0
    %1338 = vmatpush1.msra.mxu0 0.0
    %1339 = vmatprep.subr.mxu0 0.0
    %1340 = vmatpush1.msra.mxu0 0.0
    %1341 = vmatprep.subr.mxu0 0.0
    %1342 = vmatpush1.msra.mxu0 0.0
    %1343 = vmatprep.subr.mxu0 0.0
    %1344 = vmatpush1.msra.mxu0 0.0
    %1345 = vmatprep.subr.mxu0 0.0
    %1346 = vmatpush1.msra.mxu0 0.0
    %1347 = vmatprep.subr.mxu0 0.0
    %1348 = vmatpush1.msra.mxu0 0.0
    %1349 = vmatprep.subr.mxu0 0.0
    %1350 = vmatpush1.msra.mxu0 0.0
    %1351 = vmatprep.subr.mxu0 0.0
    %1352 = vmatpush1.msra.mxu0 0.0
    %1353 = vmatprep.subr.mxu0 0.0
    %1354 = vmatpush1.msra.mxu0 0.0
    %1355 = vmatprep.subr.mxu0 0.0
    %1356 = vmatpush1.msra.mxu0 0.0
    %1357 = vmatprep.subr.mxu0 0.0
    %1358 = vmatpush1.msra.mxu0 0.0
    %1359 = vmatprep.subr.mxu0 0.0
    %1360 = vmatpush1.msra.mxu0 0.0
    %1361 = vmatprep.subr.mxu0 0.0
    %1362 = vmatpush1.msra.mxu0 0.0
    %1363 = vmatprep.subr.mxu0 0.0
    %1364 = vmatpush1.msra.mxu0 0.0
    %1365 = vmatprep.subr.mxu0 0.0
    %1366 = vmatpush1.msra.mxu0 0.0
    %1367 = vmatprep.subr.mxu0 0.0
    %1368 = vmatpush1.msra.mxu0 0.0
    %1369 = vmatprep.subr.mxu0 0.0
    %1370 = vmatpush1.msra.mxu0 0.0
    %1371 = vmatprep.subr.mxu0 0.0
    %1372 = vmatpush1.msra.mxu0 0.0
    %1373 = vmatprep.subr.mxu0 0.0
    %1374 = vmatpush1.msra.mxu0 0.0
    %1375 = vmatprep.mubr.f32.mxu0 0.0
    %1376 = vmatmul.mubr.f32.gmra.mrb[0].mxu0 %v1309
    %v1377 = vpop.f32.mrb[0].mxu0
    %v1378 = vadd.f32 0.0, %v1377
    %v1379 = vpop.f32.mrb[0].mxu0
    %1380 = vdwg.mxu0
    %1381 = vrot.lane.b32.xlu0 %v541, 64
    %v1382 = vpop.permute.xlu0 %1381
    %v1385 = vsel %vm634, %v1300, 0
    %1387 = vmatprep.subr.mxu0 0.0
    %1388 = vmatpush1.msra.mxu0 %v1382
    %1389 = vmatprep.subr.mxu0 0.0
    %1390 = vmatpush1.msra.mxu0 0.0
    %1391 = vmatprep.subr.mxu0 0.0
    %1392 = vmatpush1.msra.mxu0 0.0
    %1393 = vmatprep.subr.mxu0 0.0
    %1394 = vmatpush1.msra.mxu0 0.0
    %1395 = vmatprep.subr.mxu0 0.0
    %1396 = vmatpush1.msra.mxu0 0.0
    %1397 = vmatprep.subr.mxu0 0.0
    %1398 = vmatpush1.msra.mxu0 0.0
    %1399 = vmatprep.subr.mxu0 0.0
    %1400 = vmatpush1.msra.mxu0 0.0
    %1401 = vmatprep.subr.mxu0 0.0
    %1402 = vmatpush1.msra.mxu0 0.0
    %1403 = vmatprep.subr.mxu0 0.0
    %1404 = vmatpush1.msra.mxu0 0.0
    %1405 = vmatprep.subr.mxu0 0.0
    %1406 = vmatpush1.msra.mxu0 0.0
    %1407 = vmatprep.subr.mxu0 0.0
    %1408 = vmatpush1.msra.mxu0 0.0
    %1409 = vmatprep.subr.mxu0 0.0
    %1410 = vmatpush1.msra.mxu0 0.0
    %1411 = vmatprep.subr.mxu0 0.0
    %1412 = vmatpush1.msra.mxu0 0.0
    %1413 = vmatprep.subr.mxu0 0.0
    %1414 = vmatpush1.msra.mxu0 0.0
    %1415 = vmatprep.subr.mxu0 0.0
    %1416 = vmatpush1.msra.mxu0 0.0
    %1417 = vmatprep.subr.mxu0 0.0
    %1418 = vmatpush1.msra.mxu0 0.0
    %1419 = vmatprep.subr.mxu0 0.0
    %1420 = vmatpush1.msra.mxu0 0.0
    %1421 = vmatprep.subr.mxu0 0.0
    %1422 = vmatpush1.msra.mxu0 0.0
    %1423 = vmatprep.subr.mxu0 0.0
    %1424 = vmatpush1.msra.mxu0 0.0
    %1425 = vmatprep.subr.mxu0 0.0
    %1426 = vmatpush1.msra.mxu0 0.0
    %1427 = vmatprep.subr.mxu0 0.0
    %1428 = vmatpush1.msra.mxu0 0.0
    %1429 = vmatprep.subr.mxu0 0.0
    %1430 = vmatpush1.msra.mxu0 0.0
    %1431 = vmatprep.subr.mxu0 0.0
    %1432 = vmatpush1.msra.mxu0 0.0
    %1433 = vmatprep.subr.mxu0 0.0
    %1434 = vmatpush1.msra.mxu0 0.0
    %1435 = vmatprep.subr.mxu0 0.0
    %1436 = vmatpush1.msra.mxu0 0.0
    %1437 = vmatprep.subr.mxu0 0.0
    %1438 = vmatpush1.msra.mxu0 0.0
    %1439 = vmatprep.subr.mxu0 0.0
    %1440 = vmatpush1.msra.mxu0 0.0
    %1441 = vmatprep.subr.mxu0 0.0
    %1442 = vmatpush1.msra.mxu0 0.0
    %1443 = vmatprep.subr.mxu0 0.0
    %1444 = vmatpush1.msra.mxu0 0.0
    %1445 = vmatprep.subr.mxu0 0.0
    %1446 = vmatpush1.msra.mxu0 0.0
    %1447 = vmatprep.subr.mxu0 0.0
    %1448 = vmatpush1.msra.mxu0 0.0
    %1449 = vmatprep.subr.mxu0 0.0
    %1450 = vmatpush1.msra.mxu0 0.0
    %1451 = vmatprep.mubr.f32.mxu0 0.0
    %1452 = vmatmul.mubr.f32.gmra.mrb[0].mxu0 %v1385
    %v1453 = vpop.f32.mrb[0].mxu0
    %v1454 = vadd.f32 0.0, %v1453
    %v1455 = vpop.f32.mrb[0].mxu0
    %1456 = vdwg.mxu0
    %1457 = vrot.lane.b32.xlu0 %v543, 64
    %v1458 = vpop.permute.xlu0 %1457
    %v1461 = vsel %vm634, %v1302, 0
    %1463 = vmatprep.subr.mxu0 0.0
    %1464 = vmatpush1.msra.mxu0 %v1458
    %1465 = vmatprep.subr.mxu0 0.0
    %1466 = vmatpush1.msra.mxu0 0.0
    %1467 = vmatprep.subr.mxu0 0.0
    %1468 = vmatpush1.msra.mxu0 0.0
    %1469 = vmatprep.subr.mxu0 0.0
    %1470 = vmatpush1.msra.mxu0 0.0
    %1471 = vmatprep.subr.mxu0 0.0
    %1472 = vmatpush1.msra.mxu0 0.0
    %1473 = vmatprep.subr.mxu0 0.0
    %1474 = vmatpush1.msra.mxu0 0.0
    %1475 = vmatprep.subr.mxu0 0.0
    %1476 = vmatpush1.msra.mxu0 0.0
    %1477 = vmatprep.subr.mxu0 0.0
    %1478 = vmatpush1.msra.mxu0 0.0
    %1479 = vmatprep.subr.mxu0 0.0
    %1480 = vmatpush1.msra.mxu0 0.0
    %1481 = vmatprep.subr.mxu0 0.0
    %1482 = vmatpush1.msra.mxu0 0.0
    %1483 = vmatprep.subr.mxu0 0.0
    %1484 = vmatpush1.msra.mxu0 0.0
    %1485 = vmatprep.subr.mxu0 0.0
    %1486 = vmatpush1.msra.mxu0 0.0
    %1487 = vmatprep.subr.mxu0 0.0
    %1488 = vmatpush1.msra.mxu0 0.0
    %1489 = vmatprep.subr.mxu0 0.0
    %1490 = vmatpush1.msra.mxu0 0.0
    %1491 = vmatprep.subr.mxu0 0.0
    %1492 = vmatpush1.msra.mxu0 0.0
    %1493 = vmatprep.subr.mxu0 0.0
    %1494 = vmatpush1.msra.mxu0 0.0
    %1495 = vmatprep.subr.mxu0 0.0
    %1496 = vmatpush1.msra.mxu0 0.0
    %1497 = vmatprep.subr.mxu0 0.0
    %1498 = vmatpush1.msra.mxu0 0.0
    %1499 = vmatprep.subr.mxu0 0.0
    %1500 = vmatpush1.msra.mxu0 0.0
    %1501 = vmatprep.subr.mxu0 0.0
    %1502 = vmatpush1.msra.mxu0 0.0
    %1503 = vmatprep.subr.mxu0 0.0
    %1504 = vmatpush1.msra.mxu0 0.0
    %1505 = vmatprep.subr.mxu0 0.0
    %1506 = vmatpush1.msra.mxu0 0.0
    %1507 = vmatprep.subr.mxu0 0.0
    %1508 = vmatpush1.msra.mxu0 0.0
    %1509 = vmatprep.subr.mxu0 0.0
    %1510 = vmatpush1.msra.mxu0 0.0
    %1511 = vmatprep.subr.mxu0 0.0
    %1512 = vmatpush1.msra.mxu0 0.0
    %1513 = vmatprep.subr.mxu0 0.0
    %1514 = vmatpush1.msra.mxu0 0.0
    %1515 = vmatprep.subr.mxu0 0.0
    %1516 = vmatpush1.msra.mxu0 0.0
    %1517 = vmatprep.subr.mxu0 0.0
    %1518 = vmatpush1.msra.mxu0 0.0
    %1519 = vmatprep.subr.mxu0 0.0
    %1520 = vmatpush1.msra.mxu0 0.0
    %1521 = vmatprep.subr.mxu0 0.0
    %1522 = vmatpush1.msra.mxu0 0.0
    %1523 = vmatprep.subr.mxu0 0.0
    %1524 = vmatpush1.msra.mxu0 0.0
    %1525 = vmatprep.subr.mxu0 0.0
    %1526 = vmatpush1.msra.mxu0 0.0
    %1527 = vmatprep.mubr.f32.mxu0 0.0
    %1528 = vmatmul.mubr.f32.gmra.mrb[0].mxu0 %v1461
    %v1529 = vpop.f32.mrb[0].mxu0
    %v1530 = vadd.f32 0.0, %v1529
    %v1531 = vpop.f32.mrb[0].mxu0
    %1532 = vdwg.mxu0
    %1533 = vrot.lane.b32.xlu0 %v545, 64
    %v1534 = vpop.permute.xlu0 %1533
    %v1537 = vsel %vm634, %v1304, 0
    %1539 = vmatprep.subr.mxu0 0.0
    %1540 = vmatpush1.msra.mxu0 %v1534
    %1541 = vmatprep.subr.mxu0 0.0
    %1542 = vmatpush1.msra.mxu0 0.0
    %1543 = vmatprep.subr.mxu0 0.0
    %1544 = vmatpush1.msra.mxu0 0.0
    %1545 = vmatprep.subr.mxu0 0.0
    %1546 = vmatpush1.msra.mxu0 0.0
    %1547 = vmatprep.subr.mxu0 0.0
    %1548 = vmatpush1.msra.mxu0 0.0
    %1549 = vmatprep.subr.mxu0 0.0
    %1550 = vmatpush1.msra.mxu0 0.0
    %1551 = vmatprep.subr.mxu0 0.0
    %1552 = vmatpush1.msra.mxu0 0.0
    %1553 = vmatprep.subr.mxu0 0.0
    %1554 = vmatpush1.msra.mxu0 0.0
    %1555 = vmatprep.subr.mxu0 0.0
    %1556 = vmatpush1.msra.mxu0 0.0
    %1557 = vmatprep.subr.mxu0 0.0
    %1558 = vmatpush1.msra.mxu0 0.0
    %1559 = vmatprep.subr.mxu0 0.0
    %1560 = vmatpush1.msra.mxu0 0.0
    %1561 = vmatprep.subr.mxu0 0.0
    %1562 = vmatpush1.msra.mxu0 0.0
    %1563 = vmatprep.subr.mxu0 0.0
    %1564 = vmatpush1.msra.mxu0 0.0
    %1565 = vmatprep.subr.mxu0 0.0
    %1566 = vmatpush1.msra.mxu0 0.0
    %1567 = vmatprep.subr.mxu0 0.0
    %1568 = vmatpush1.msra.mxu0 0.0
    %1569 = vmatprep.subr.mxu0 0.0
    %1570 = vmatpush1.msra.mxu0 0.0
    %1571 = vmatprep.subr.mxu0 0.0
    %1572 = vmatpush1.msra.mxu0 0.0
    %1573 = vmatprep.subr.mxu0 0.0
    %1574 = vmatpush1.msra.mxu0 0.0
    %1575 = vmatprep.subr.mxu0 0.0
    %1576 = vmatpush1.msra.mxu0 0.0
    %1577 = vmatprep.subr.mxu0 0.0
    %1578 = vmatpush1.msra.mxu0 0.0
    %1579 = vmatprep.subr.mxu0 0.0
    %1580 = vmatpush1.msra.mxu0 0.0
    %1581 = vmatprep.subr.mxu0 0.0
    %1582 = vmatpush1.msra.mxu0 0.0
    %1583 = vmatprep.subr.mxu0 0.0
    %1584 = vmatpush1.msra.mxu0 0.0
    %1585 = vmatprep.subr.mxu0 0.0
    %1586 = vmatpush1.msra.mxu0 0.0
    %1587 = vmatprep.subr.mxu0 0.0
    %1588 = vmatpush1.msra.mxu0 0.0
    %1589 = vmatprep.subr.mxu0 0.0
    %1590 = vmatpush1.msra.mxu0 0.0
    %1591 = vmatprep.subr.mxu0 0.0
    %1592 = vmatpush1.msra.mxu0 0.0
    %1593 = vmatprep.subr.mxu0 0.0
    %1594 = vmatpush1.msra.mxu0 0.0
    %1595 = vmatprep.subr.mxu0 0.0
    %1596 = vmatpush1.msra.mxu0 0.0
    %1597 = vmatprep.subr.mxu0 0.0
    %1598 = vmatpush1.msra.mxu0 0.0
    %1599 = vmatprep.subr.mxu0 0.0
    %1600 = vmatpush1.msra.mxu0 0.0
    %1601 = vmatprep.subr.mxu0 0.0
    %1602 = vmatpush1.msra.mxu0 0.0
    %1603 = vmatprep.mubr.f32.mxu0 0.0
    %1604 = vmatmul.mubr.f32.gmra.mrb[0].mxu0 %v1537
    %v1605 = vpop.f32.mrb[0].mxu0
    %v1606 = vadd.f32 0.0, %v1605
    %v1607 = vpop.f32.mrb[0].mxu0
    %1608 = vdwg.mxu0
    %v1609 = vld [vmem:[#allocation10] sm:$0xff]
    %v1610 = vld [vmem:[#allocation10 + $0x8] sm:$0xff]
    %v1611 = vld [vmem:[#allocation10 + $0x10] sm:$0xff]
    %v1612 = vld [vmem:[#allocation10 + $0x18] sm:$0xff]
    %v1613 = vld [vmem:[%s7] sm:$0x1]
    %v1615 = vsel %vm939, %v1378, 0
    %1617 = vmatprep.subr.mxu0 0.0
    %1618 = vmatpush1.msra.mxu0 %v1609
    %1619 = vmatprep.subr.mxu0 0.0
    %1620 = vmatpush1.msra.mxu0 %v1610
    %1621 = vmatprep.subr.mxu0 0.0
    %1622 = vmatpush1.msra.mxu0 %v1611
    %1623 = vmatprep.subr.mxu0 0.0
    %1624 = vmatpush1.msra.mxu0 %v1612
    %1625 = vmatprep.subr.mxu0 0.0
    %1626 = vmatpush1.msra.mxu0 0.0
    %1627 = vmatprep.subr.mxu0 0.0
    %1628 = vmatpush1.msra.mxu0 0.0
    %1629 = vmatprep.subr.mxu0 0.0
    %1630 = vmatpush1.msra.mxu0 0.0
    %1631 = vmatprep.subr.mxu0 0.0
    %1632 = vmatpush1.msra.mxu0 0.0
    %1633 = vmatprep.subr.mxu0 0.0
    %1634 = vmatpush1.msra.mxu0 0.0
    %1635 = vmatprep.subr.mxu0 0.0
    %1636 = vmatpush1.msra.mxu0 0.0
    %1637 = vmatprep.subr.mxu0 0.0
    %1638 = vmatpush1.msra.mxu0 0.0
    %1639 = vmatprep.subr.mxu0 0.0
    %1640 = vmatpush1.msra.mxu0 0.0
    %1641 = vmatprep.subr.mxu0 0.0
    %1642 = vmatpush1.msra.mxu0 0.0
    %1643 = vmatprep.subr.mxu0 0.0
    %1644 = vmatpush1.msra.mxu0 0.0
    %1645 = vmatprep.subr.mxu0 0.0
    %1646 = vmatpush1.msra.mxu0 0.0
    %1647 = vmatprep.subr.mxu0 0.0
    %1648 = vmatpush1.msra.mxu0 0.0
    %1649 = vmatprep.subr.mxu0 0.0
    %1650 = vmatpush1.msra.mxu0 0.0
    %1651 = vmatprep.subr.mxu0 0.0
    %1652 = vmatpush1.msra.mxu0 0.0
    %1653 = vmatprep.subr.mxu0 0.0
    %1654 = vmatpush1.msra.mxu0 0.0
    %1655 = vmatprep.subr.mxu0 0.0
    %1656 = vmatpush1.msra.mxu0 0.0
    %1657 = vmatprep.subr.mxu0 0.0
    %1658 = vmatpush1.msra.mxu0 0.0
    %1659 = vmatprep.subr.mxu0 0.0
    %1660 = vmatpush1.msra.mxu0 0.0
    %1661 = vmatprep.subr.mxu0 0.0
    %1662 = vmatpush1.msra.mxu0 0.0
    %1663 = vmatprep.subr.mxu0 0.0
    %1664 = vmatpush1.msra.mxu0 0.0
    %1665 = vmatprep.subr.mxu0 0.0
    %1666 = vmatpush1.msra.mxu0 0.0
    %1667 = vmatprep.subr.mxu0 0.0
    %1668 = vmatpush1.msra.mxu0 0.0
    %1669 = vmatprep.subr.mxu0 0.0
    %1670 = vmatpush1.msra.mxu0 0.0
    %1671 = vmatprep.subr.mxu0 0.0
    %1672 = vmatpush1.msra.mxu0 0.0
    %1673 = vmatprep.subr.mxu0 0.0
    %1674 = vmatpush1.msra.mxu0 0.0
    %1675 = vmatprep.subr.mxu0 0.0
    %1676 = vmatpush1.msra.mxu0 0.0
    %1677 = vmatprep.subr.mxu0 0.0
    %1678 = vmatpush1.msra.mxu0 0.0
    %1679 = vmatprep.subr.mxu0 0.0
    %1680 = vmatpush1.msra.mxu0 0.0
    %1681 = vmatprep.mubr.f32.mxu0 0.0
    %1682 = vmatmul.mubr.f32.gmra.mrb[0].mxu0 %v1615
    %v1683 = vpop.f32.mrb[0].mxu0
    %v1684 = vadd.f32 %v1613, %v1683
    %v1685 = vpop.f32.mrb[0].mxu0
    %1686 = vdwg.mxu0
    %v1688 = vsel %vm939, %v1454, 0
    %1690 = vmatprep.subr.mxu0 0.0
    %1691 = vmatpush1.msra.mxu0 %v1609
    %1692 = vmatprep.subr.mxu0 0.0
    %1693 = vmatpush1.msra.mxu0 %v1610
    %1694 = vmatprep.subr.mxu0 0.0
    %1695 = vmatpush1.msra.mxu0 %v1611
    %1696 = vmatprep.subr.mxu0 0.0
    %1697 = vmatpush1.msra.mxu0 %v1612
    %1698 = vmatprep.subr.mxu0 0.0
    %1699 = vmatpush1.msra.mxu0 0.0
    %1700 = vmatprep.subr.mxu0 0.0
    %1701 = vmatpush1.msra.mxu0 0.0
    %1702 = vmatprep.subr.mxu0 0.0
    %1703 = vmatpush1.msra.mxu0 0.0
    %1704 = vmatprep.subr.mxu0 0.0
    %1705 = vmatpush1.msra.mxu0 0.0
    %1706 = vmatprep.subr.mxu0 0.0
    %1707 = vmatpush1.msra.mxu0 0.0
    %1708 = vmatprep.subr.mxu0 0.0
    %1709 = vmatpush1.msra.mxu0 0.0
    %1710 = vmatprep.subr.mxu0 0.0
    %1711 = vmatpush1.msra.mxu0 0.0
    %1712 = vmatprep.subr.mxu0 0.0
    %1713 = vmatpush1.msra.mxu0 0.0
    %1714 = vmatprep.subr.mxu0 0.0
    %1715 = vmatpush1.msra.mxu0 0.0
    %1716 = vmatprep.subr.mxu0 0.0
    %1717 = vmatpush1.msra.mxu0 0.0
    %1718 = vmatprep.subr.mxu0 0.0
    %1719 = vmatpush1.msra.mxu0 0.0
    %1720 = vmatprep.subr.mxu0 0.0
    %1721 = vmatpush1.msra.mxu0 0.0
    %1722 = vmatprep.subr.mxu0 0.0
    %1723 = vmatpush1.msra.mxu0 0.0
    %1724 = vmatprep.subr.mxu0 0.0
    %1725 = vmatpush1.msra.mxu0 0.0
    %1726 = vmatprep.subr.mxu0 0.0
    %1727 = vmatpush1.msra.mxu0 0.0
    %1728 = vmatprep.subr.mxu0 0.0
    %1729 = vmatpush1.msra.mxu0 0.0
    %1730 = vmatprep.subr.mxu0 0.0
    %1731 = vmatpush1.msra.mxu0 0.0
    %1732 = vmatprep.subr.mxu0 0.0
    %1733 = vmatpush1.msra.mxu0 0.0
    %1734 = vmatprep.subr.mxu0 0.0
    %1735 = vmatpush1.msra.mxu0 0.0
    %1736 = vmatprep.subr.mxu0 0.0
    %1737 = vmatpush1.msra.mxu0 0.0
    %1738 = vmatprep.subr.mxu0 0.0
    %1739 = vmatpush1.msra.mxu0 0.0
    %1740 = vmatprep.subr.mxu0 0.0
    %1741 = vmatpush1.msra.mxu0 0.0
    %1742 = vmatprep.subr.mxu0 0.0
    %1743 = vmatpush1.msra.mxu0 0.0
    %1744 = vmatprep.subr.mxu0 0.0
    %1745 = vmatpush1.msra.mxu0 0.0
    %1746 = vmatprep.subr.mxu0 0.0
    %1747 = vmatpush1.msra.mxu0 0.0
    %1748 = vmatprep.subr.mxu0 0.0
    %1749 = vmatpush1.msra.mxu0 0.0
    %1750 = vmatprep.subr.mxu0 0.0
    %1751 = vmatpush1.msra.mxu0 0.0
    %1752 = vmatprep.subr.mxu0 0.0
    %1753 = vmatpush1.msra.mxu0 0.0
    %1754 = vmatprep.mubr.f32.mxu0 0.0
    %1755 = vmatmul.mubr.f32.gmra.mrb[0].mxu0 %v1688
    %v1756 = vpop.f32.mrb[0].mxu0
    %v1757 = vadd.f32 %v1613, %v1756
    %v1758 = vpop.f32.mrb[0].mxu0
    %1759 = vdwg.mxu0
    %v1761 = vsel %vm939, %v1530, 0
    %1763 = vmatprep.subr.mxu0 0.0
    %1764 = vmatpush1.msra.mxu0 %v1609
    %1765 = vmatprep.subr.mxu0 0.0
    %1766 = vmatpush1.msra.mxu0 %v1610
    %1767 = vmatprep.subr.mxu0 0.0
    %1768 = vmatpush1.msra.mxu0 %v1611
    %1769 = vmatprep.subr.mxu0 0.0
    %1770 = vmatpush1.msra.mxu0 %v1612
    %1771 = vmatprep.subr.mxu0 0.0
    %1772 = vmatpush1.msra.mxu0 0.0
    %1773 = vmatprep.subr.mxu0 0.0
    %1774 = vmatpush1.msra.mxu0 0.0
    %1775 = vmatprep.subr.mxu0 0.0
    %1776 = vmatpush1.msra.mxu0 0.0
    %1777 = vmatprep.subr.mxu0 0.0
    %1778 = vmatpush1.msra.mxu0 0.0
    %1779 = vmatprep.subr.mxu0 0.0
    %1780 = vmatpush1.msra.mxu0 0.0
    %1781 = vmatprep.subr.mxu0 0.0
    %1782 = vmatpush1.msra.mxu0 0.0
    %1783 = vmatprep.subr.mxu0 0.0
    %1784 = vmatpush1.msra.mxu0 0.0
    %1785 = vmatprep.subr.mxu0 0.0
    %1786 = vmatpush1.msra.mxu0 0.0
    %1787 = vmatprep.subr.mxu0 0.0
    %1788 = vmatpush1.msra.mxu0 0.0
    %1789 = vmatprep.subr.mxu0 0.0
    %1790 = vmatpush1.msra.mxu0 0.0
    %1791 = vmatprep.subr.mxu0 0.0
    %1792 = vmatpush1.msra.mxu0 0.0
    %1793 = vmatprep.subr.mxu0 0.0
    %1794 = vmatpush1.msra.mxu0 0.0
    %1795 = vmatprep.subr.mxu0 0.0
    %1796 = vmatpush1.msra.mxu0 0.0
    %1797 = vmatprep.subr.mxu0 0.0
    %1798 = vmatpush1.msra.mxu0 0.0
    %1799 = vmatprep.subr.mxu0 0.0
    %1800 = vmatpush1.msra.mxu0 0.0
    %1801 = vmatprep.subr.mxu0 0.0
    %1802 = vmatpush1.msra.mxu0 0.0
    %1803 = vmatprep.subr.mxu0 0.0
    %1804 = vmatpush1.msra.mxu0 0.0
    %1805 = vmatprep.subr.mxu0 0.0
    %1806 = vmatpush1.msra.mxu0 0.0
    %1807 = vmatprep.subr.mxu0 0.0
    %1808 = vmatpush1.msra.mxu0 0.0
    %1809 = vmatprep.subr.mxu0 0.0
    %1810 = vmatpush1.msra.mxu0 0.0
    %1811 = vmatprep.subr.mxu0 0.0
    %1812 = vmatpush1.msra.mxu0 0.0
    %1813 = vmatprep.subr.mxu0 0.0
    %1814 = vmatpush1.msra.mxu0 0.0
    %1815 = vmatprep.subr.mxu0 0.0
    %1816 = vmatpush1.msra.mxu0 0.0
    %1817 = vmatprep.subr.mxu0 0.0
    %1818 = vmatpush1.msra.mxu0 0.0
    %1819 = vmatprep.subr.mxu0 0.0
    %1820 = vmatpush1.msra.mxu0 0.0
    %1821 = vmatprep.subr.mxu0 0.0
    %1822 = vmatpush1.msra.mxu0 0.0
    %1823 = vmatprep.subr.mxu0 0.0
    %1824 = vmatpush1.msra.mxu0 0.0
    %1825 = vmatprep.subr.mxu0 0.0
    %1826 = vmatpush1.msra.mxu0 0.0
    %1827 = vmatprep.mubr.f32.mxu0 0.0
    %1828 = vmatmul.mubr.f32.gmra.mrb[0].mxu0 %v1761
    %v1829 = vpop.f32.mrb[0].mxu0
    %v1830 = vadd.f32 %v1613, %v1829
    %v1831 = vpop.f32.mrb[0].mxu0
    %1832 = vdwg.mxu0
    %v1834 = vsel %vm939, %v1606, 0
    %1836 = vmatprep.subr.mxu0 0.0
    %1837 = vmatpush1.msra.mxu0 %v1609
    %1838 = vmatprep.subr.mxu0 0.0
    %1839 = vmatpush1.msra.mxu0 %v1610
    %1840 = vmatprep.subr.mxu0 0.0
    %1841 = vmatpush1.msra.mxu0 %v1611
    %1842 = vmatprep.subr.mxu0 0.0
    %1843 = vmatpush1.msra.mxu0 %v1612
    %1844 = vmatprep.subr.mxu0 0.0
    %1845 = vmatpush1.msra.mxu0 0.0
    %1846 = vmatprep.subr.mxu0 0.0
    %1847 = vmatpush1.msra.mxu0 0.0
    %1848 = vmatprep.subr.mxu0 0.0
    %1849 = vmatpush1.msra.mxu0 0.0
    %1850 = vmatprep.subr.mxu0 0.0
    %1851 = vmatpush1.msra.mxu0 0.0
    %1852 = vmatprep.subr.mxu0 0.0
    %1853 = vmatpush1.msra.mxu0 0.0
    %1854 = vmatprep.subr.mxu0 0.0
    %1855 = vmatpush1.msra.mxu0 0.0
    %1856 = vmatprep.subr.mxu0 0.0
    %1857 = vmatpush1.msra.mxu0 0.0
    %1858 = vmatprep.subr.mxu0 0.0
    %1859 = vmatpush1.msra.mxu0 0.0
    %1860 = vmatprep.subr.mxu0 0.0
    %1861 = vmatpush1.msra.mxu0 0.0
    %1862 = vmatprep.subr.mxu0 0.0
    %1863 = vmatpush1.msra.mxu0 0.0
    %1864 = vmatprep.subr.mxu0 0.0
    %1865 = vmatpush1.msra.mxu0 0.0
    %1866 = vmatprep.subr.mxu0 0.0
    %1867 = vmatpush1.msra.mxu0 0.0
    %1868 = vmatprep.subr.mxu0 0.0
    %1869 = vmatpush1.msra.mxu0 0.0
    %1870 = vmatprep.subr.mxu0 0.0
    %1871 = vmatpush1.msra.mxu0 0.0
    %1872 = vmatprep.subr.mxu0 0.0
    %1873 = vmatpush1.msra.mxu0 0.0
    %1874 = vmatprep.subr.mxu0 0.0
    %1875 = vmatpush1.msra.mxu0 0.0
    %1876 = vmatprep.subr.mxu0 0.0
    %1877 = vmatpush1.msra.mxu0 0.0
    %1878 = vmatprep.subr.mxu0 0.0
    %1879 = vmatpush1.msra.mxu0 0.0
    %1880 = vmatprep.subr.mxu0 0.0
    %1881 = vmatpush1.msra.mxu0 0.0
    %1882 = vmatprep.subr.mxu0 0.0
    %1883 = vmatpush1.msra.mxu0 0.0
    %1884 = vmatprep.subr.mxu0 0.0
    %1885 = vmatpush1.msra.mxu0 0.0
    %1886 = vmatprep.subr.mxu0 0.0
    %1887 = vmatpush1.msra.mxu0 0.0
    %1888 = vmatprep.subr.mxu0 0.0
    %1889 = vmatpush1.msra.mxu0 0.0
    %1890 = vmatprep.subr.mxu0 0.0
    %1891 = vmatpush1.msra.mxu0 0.0
    %1892 = vmatprep.subr.mxu0 0.0
    %1893 = vmatpush1.msra.mxu0 0.0
    %1894 = vmatprep.subr.mxu0 0.0
    %1895 = vmatpush1.msra.mxu0 0.0
    %1896 = vmatprep.subr.mxu0 0.0
    %1897 = vmatpush1.msra.mxu0 0.0
    %1898 = vmatprep.subr.mxu0 0.0
    %1899 = vmatpush1.msra.mxu0 0.0
    %1900 = vmatprep.mubr.f32.mxu0 0.0
    %1901 = vmatmul.mubr.f32.gmra.mrb[0].mxu0 %v1834
    %v1902 = vpop.f32.mrb[0].mxu0
    %v1903 = vadd.f32 %v1613, %v1902
    %v1904 = vpop.f32.mrb[0].mxu0
    %1905 = vdwg.mxu0
    %vm1906 = vcmp.gt.f32.partialorder %v1684, 0.0
    %vm1907 = vcmp.gt.f32.partialorder %v1757, 0.0
    %vm1908 = vcmp.gt.f32.partialorder %v1830, 0.0
    %vm1909 = vcmp.gt.f32.partialorder %v1903, 0.0
    %v1910 = vmul.f32 %v1684, 0.22916667
    %v1911 = vmul.f32 %v1757, 0.22916667
    %v1912 = vmul.f32 %v1830, 0.22916667
    %v1913 = vmul.f32 %v1903, 0.22916667
    %v1914 = vsel %vm1906, %v1684, %v1910
    %v1915 = vsel %vm1907, %v1757, %v1911
    %v1916 = vsel %vm1908, %v1830, %v1912
    %v1917 = vsel %vm1909, %v1903, %v1913
    %v1918 = vld [vmem:[#allocation11] sm:$0xff]
    %v1919 = vld [vmem:[#allocation11 + $0x8] sm:$0xff]
    %v1920 = vld [vmem:[#allocation11 + $0x10] sm:$0xff]
    %v1921 = vld [vmem:[#allocation11 + $0x18] sm:$0xff]
    %v1923 = vsel %vm939, %v1914, 0
    %1925 = vmatprep.subr.mxu0 0.0
    %1926 = vmatpush1.msra.mxu0 %v1918
    %1927 = vmatprep.subr.mxu0 0.0
    %1928 = vmatpush1.msra.mxu0 %v1919
    %1929 = vmatprep.subr.mxu0 0.0
    %1930 = vmatpush1.msra.mxu0 %v1920
    %1931 = vmatprep.subr.mxu0 0.0
    %1932 = vmatpush1.msra.mxu0 %v1921
    %1933 = vmatprep.subr.mxu0 0.0
    %1934 = vmatpush1.msra.mxu0 0.0
    %1935 = vmatprep.subr.mxu0 0.0
    %1936 = vmatpush1.msra.mxu0 0.0
    %1937 = vmatprep.subr.mxu0 0.0
    %1938 = vmatpush1.msra.mxu0 0.0
    %1939 = vmatprep.subr.mxu0 0.0
    %1940 = vmatpush1.msra.mxu0 0.0
    %1941 = vmatprep.subr.mxu0 0.0
    %1942 = vmatpush1.msra.mxu0 0.0
    %1943 = vmatprep.subr.mxu0 0.0
    %1944 = vmatpush1.msra.mxu0 0.0
    %1945 = vmatprep.subr.mxu0 0.0
    %1946 = vmatpush1.msra.mxu0 0.0
    %1947 = vmatprep.subr.mxu0 0.0
    %1948 = vmatpush1.msra.mxu0 0.0
    %1949 = vmatprep.subr.mxu0 0.0
    %1950 = vmatpush1.msra.mxu0 0.0
    %1951 = vmatprep.subr.mxu0 0.0
    %1952 = vmatpush1.msra.mxu0 0.0
    %1953 = vmatprep.subr.mxu0 0.0
    %1954 = vmatpush1.msra.mxu0 0.0
    %1955 = vmatprep.subr.mxu0 0.0
    %1956 = vmatpush1.msra.mxu0 0.0
    %1957 = vmatprep.subr.mxu0 0.0
    %1958 = vmatpush1.msra.mxu0 0.0
    %1959 = vmatprep.subr.mxu0 0.0
    %1960 = vmatpush1.msra.mxu0 0.0
    %1961 = vmatprep.subr.mxu0 0.0
    %1962 = vmatpush1.msra.mxu0 0.0
    %1963 = vmatprep.subr.mxu0 0.0
    %1964 = vmatpush1.msra.mxu0 0.0
    %1965 = vmatprep.subr.mxu0 0.0
    %1966 = vmatpush1.msra.mxu0 0.0
    %1967 = vmatprep.subr.mxu0 0.0
    %1968 = vmatpush1.msra.mxu0 0.0
    %1969 = vmatprep.subr.mxu0 0.0
    %1970 = vmatpush1.msra.mxu0 0.0
    %1971 = vmatprep.subr.mxu0 0.0
    %1972 = vmatpush1.msra.mxu0 0.0
    %1973 = vmatprep.subr.mxu0 0.0
    %1974 = vmatpush1.msra.mxu0 0.0
    %1975 = vmatprep.subr.mxu0 0.0
    %1976 = vmatpush1.msra.mxu0 0.0
    %1977 = vmatprep.subr.mxu0 0.0
    %1978 = vmatpush1.msra.mxu0 0.0
    %1979 = vmatprep.subr.mxu0 0.0
    %1980 = vmatpush1.msra.mxu0 0.0
    %1981 = vmatprep.subr.mxu0 0.0
    %1982 = vmatpush1.msra.mxu0 0.0
    %1983 = vmatprep.subr.mxu0 0.0
    %1984 = vmatpush1.msra.mxu0 0.0
    %1985 = vmatprep.subr.mxu0 0.0
    %1986 = vmatpush1.msra.mxu0 0.0
    %1987 = vmatprep.subr.mxu0 0.0
    %1988 = vmatpush1.msra.mxu0 0.0
    %1989 = vmatprep.mubr.f32.mxu0 0.0
    %1990 = vmatmul.mubr.f32.gmra.mrb[0].mxu0 %v1923
    %v1991 = vpop.f32.mrb[0].mxu0
    %v1992 = vadd.f32 0.0, %v1991
    %v1993 = vpop.f32.mrb[0].mxu0
    %1994 = vdwg.mxu0
    %v1996 = vsel %vm939, %v1915, 0
    %1998 = vmatprep.subr.mxu0 0.0
    %1999 = vmatpush1.msra.mxu0 %v1918
    %2000 = vmatprep.subr.mxu0 0.0
    %2001 = vmatpush1.msra.mxu0 %v1919
    %2002 = vmatprep.subr.mxu0 0.0
    %2003 = vmatpush1.msra.mxu0 %v1920
    %2004 = vmatprep.subr.mxu0 0.0
    %2005 = vmatpush1.msra.mxu0 %v1921
    %2006 = vmatprep.subr.mxu0 0.0
    %2007 = vmatpush1.msra.mxu0 0.0
    %2008 = vmatprep.subr.mxu0 0.0
    %2009 = vmatpush1.msra.mxu0 0.0
    %2010 = vmatprep.subr.mxu0 0.0
    %2011 = vmatpush1.msra.mxu0 0.0
    %2012 = vmatprep.subr.mxu0 0.0
    %2013 = vmatpush1.msra.mxu0 0.0
    %2014 = vmatprep.subr.mxu0 0.0
    %2015 = vmatpush1.msra.mxu0 0.0
    %2016 = vmatprep.subr.mxu0 0.0
    %2017 = vmatpush1.msra.mxu0 0.0
    %2018 = vmatprep.subr.mxu0 0.0
    %2019 = vmatpush1.msra.mxu0 0.0
    %2020 = vmatprep.subr.mxu0 0.0
    %2021 = vmatpush1.msra.mxu0 0.0
    %2022 = vmatprep.subr.mxu0 0.0
    %2023 = vmatpush1.msra.mxu0 0.0
    %2024 = vmatprep.subr.mxu0 0.0
    %2025 = vmatpush1.msra.mxu0 0.0
    %2026 = vmatprep.subr.mxu0 0.0
    %2027 = vmatpush1.msra.mxu0 0.0
    %2028 = vmatprep.subr.mxu0 0.0
    %2029 = vmatpush1.msra.mxu0 0.0
    %2030 = vmatprep.subr.mxu0 0.0
    %2031 = vmatpush1.msra.mxu0 0.0
    %2032 = vmatprep.subr.mxu0 0.0
    %2033 = vmatpush1.msra.mxu0 0.0
    %2034 = vmatprep.subr.mxu0 0.0
    %2035 = vmatpush1.msra.mxu0 0.0
    %2036 = vmatprep.subr.mxu0 0.0
    %2037 = vmatpush1.msra.mxu0 0.0
    %2038 = vmatprep.subr.mxu0 0.0
    %2039 = vmatpush1.msra.mxu0 0.0
    %2040 = vmatprep.subr.mxu0 0.0
    %2041 = vmatpush1.msra.mxu0 0.0
    %2042 = vmatprep.subr.mxu0 0.0
    %2043 = vmatpush1.msra.mxu0 0.0
    %2044 = vmatprep.subr.mxu0 0.0
    %2045 = vmatpush1.msra.mxu0 0.0
    %2046 = vmatprep.subr.mxu0 0.0
    %2047 = vmatpush1.msra.mxu0 0.0
    %2048 = vmatprep.subr.mxu0 0.0
    %2049 = vmatpush1.msra.mxu0 0.0
    %2050 = vmatprep.subr.mxu0 0.0
    %2051 = vmatpush1.msra.mxu0 0.0
    %2052 = vmatprep.subr.mxu0 0.0
    %2053 = vmatpush1.msra.mxu0 0.0
    %2054 = vmatprep.subr.mxu0 0.0
    %2055 = vmatpush1.msra.mxu0 0.0
    %2056 = vmatprep.subr.mxu0 0.0
    %2057 = vmatpush1.msra.mxu0 0.0
    %2058 = vmatprep.subr.mxu0 0.0
    %2059 = vmatpush1.msra.mxu0 0.0
    %2060 = vmatprep.subr.mxu0 0.0
    %2061 = vmatpush1.msra.mxu0 0.0
    %2062 = vmatprep.mubr.f32.mxu0 0.0
    %2063 = vmatmul.mubr.f32.gmra.mrb[0].mxu0 %v1996
    %v2064 = vpop.f32.mrb[0].mxu0
    %v2065 = vadd.f32 0.0, %v2064
    %v2066 = vpop.f32.mrb[0].mxu0
    %2067 = vdwg.mxu0
    %v2069 = vsel %vm939, %v1916, 0
    %2071 = vmatprep.subr.mxu0 0.0
    %2072 = vmatpush1.msra.mxu0 %v1918
    %2073 = vmatprep.subr.mxu0 0.0
    %2074 = vmatpush1.msra.mxu0 %v1919
    %2075 = vmatprep.subr.mxu0 0.0
    %2076 = vmatpush1.msra.mxu0 %v1920
    %2077 = vmatprep.subr.mxu0 0.0
    %2078 = vmatpush1.msra.mxu0 %v1921
    %2079 = vmatprep.subr.mxu0 0.0
    %2080 = vmatpush1.msra.mxu0 0.0
    %2081 = vmatprep.subr.mxu0 0.0
    %2082 = vmatpush1.msra.mxu0 0.0
    %2083 = vmatprep.subr.mxu0 0.0
    %2084 = vmatpush1.msra.mxu0 0.0
    %2085 = vmatprep.subr.mxu0 0.0
    %2086 = vmatpush1.msra.mxu0 0.0
    %2087 = vmatprep.subr.mxu0 0.0
    %2088 = vmatpush1.msra.mxu0 0.0
    %2089 = vmatprep.subr.mxu0 0.0
    %2090 = vmatpush1.msra.mxu0 0.0
    %2091 = vmatprep.subr.mxu0 0.0
    %2092 = vmatpush1.msra.mxu0 0.0
    %2093 = vmatprep.subr.mxu0 0.0
    %2094 = vmatpush1.msra.mxu0 0.0
    %2095 = vmatprep.subr.mxu0 0.0
    %2096 = vmatpush1.msra.mxu0 0.0
    %2097 = vmatprep.subr.mxu0 0.0
    %2098 = vmatpush1.msra.mxu0 0.0
    %2099 = vmatprep.subr.mxu0 0.0
    %2100 = vmatpush1.msra.mxu0 0.0
    %2101 = vmatprep.subr.mxu0 0.0
    %2102 = vmatpush1.msra.mxu0 0.0
    %2103 = vmatprep.subr.mxu0 0.0
    %2104 = vmatpush1.msra.mxu0 0.0
    %2105 = vmatprep.subr.mxu0 0.0
    %2106 = vmatpush1.msra.mxu0 0.0
    %2107 = vmatprep.subr.mxu0 0.0
    %2108 = vmatpush1.msra.mxu0 0.0
    %2109 = vmatprep.subr.mxu0 0.0
    %2110 = vmatpush1.msra.mxu0 0.0
    %2111 = vmatprep.subr.mxu0 0.0
    %2112 = vmatpush1.msra.mxu0 0.0
    %2113 = vmatprep.subr.mxu0 0.0
    %2114 = vmatpush1.msra.mxu0 0.0
    %2115 = vmatprep.subr.mxu0 0.0
    %2116 = vmatpush1.msra.mxu0 0.0
    %2117 = vmatprep.subr.mxu0 0.0
    %2118 = vmatpush1.msra.mxu0 0.0
    %2119 = vmatprep.subr.mxu0 0.0
    %2120 = vmatpush1.msra.mxu0 0.0
    %2121 = vmatprep.subr.mxu0 0.0
    %2122 = vmatpush1.msra.mxu0 0.0
    %2123 = vmatprep.subr.mxu0 0.0
    %2124 = vmatpush1.msra.mxu0 0.0
    %2125 = vmatprep.subr.mxu0 0.0
    %2126 = vmatpush1.msra.mxu0 0.0
    %2127 = vmatprep.subr.mxu0 0.0
    %2128 = vmatpush1.msra.mxu0 0.0
    %2129 = vmatprep.subr.mxu0 0.0
    %2130 = vmatpush1.msra.mxu0 0.0
    %2131 = vmatprep.subr.mxu0 0.0
    %2132 = vmatpush1.msra.mxu0 0.0
    %2133 = vmatprep.subr.mxu0 0.0
    %2134 = vmatpush1.msra.mxu0 0.0
    %2135 = vmatprep.mubr.f32.mxu0 0.0
    %2136 = vmatmul.mubr.f32.gmra.mrb[0].mxu0 %v2069
    %v2137 = vpop.f32.mrb[0].mxu0
    %v2138 = vadd.f32 0.0, %v2137
    %v2139 = vpop.f32.mrb[0].mxu0
    %2140 = vdwg.mxu0
    %v2142 = vsel %vm939, %v1917, 0
    %2144 = vmatprep.subr.mxu0 0.0
    %2145 = vmatpush1.msra.mxu0 %v1918
    %2146 = vmatprep.subr.mxu0 0.0
    %2147 = vmatpush1.msra.mxu0 %v1919
    %2148 = vmatprep.subr.mxu0 0.0
    %2149 = vmatpush1.msra.mxu0 %v1920
    %2150 = vmatprep.subr.mxu0 0.0
    %2151 = vmatpush1.msra.mxu0 %v1921
    %2152 = vmatprep.subr.mxu0 0.0
    %2153 = vmatpush1.msra.mxu0 0.0
    %2154 = vmatprep.subr.mxu0 0.0
    %2155 = vmatpush1.msra.mxu0 0.0
    %2156 = vmatprep.subr.mxu0 0.0
    %2157 = vmatpush1.msra.mxu0 0.0
    %2158 = vmatprep.subr.mxu0 0.0
    %2159 = vmatpush1.msra.mxu0 0.0
    %2160 = vmatprep.subr.mxu0 0.0
    %2161 = vmatpush1.msra.mxu0 0.0
    %2162 = vmatprep.subr.mxu0 0.0
    %2163 = vmatpush1.msra.mxu0 0.0
    %2164 = vmatprep.subr.mxu0 0.0
    %2165 = vmatpush1.msra.mxu0 0.0
    %2166 = vmatprep.subr.mxu0 0.0
    %2167 = vmatpush1.msra.mxu0 0.0
    %2168 = vmatprep.subr.mxu0 0.0
    %2169 = vmatpush1.msra.mxu0 0.0
    %2170 = vmatprep.subr.mxu0 0.0
    %2171 = vmatpush1.msra.mxu0 0.0
    %2172 = vmatprep.subr.mxu0 0.0
    %2173 = vmatpush1.msra.mxu0 0.0
    %2174 = vmatprep.subr.mxu0 0.0
    %2175 = vmatpush1.msra.mxu0 0.0
    %2176 = vmatprep.subr.mxu0 0.0
    %2177 = vmatpush1.msra.mxu0 0.0
    %2178 = vmatprep.subr.mxu0 0.0
    %2179 = vmatpush1.msra.mxu0 0.0
    %2180 = vmatprep.subr.mxu0 0.0
    %2181 = vmatpush1.msra.mxu0 0.0
    %2182 = vmatprep.subr.mxu0 0.0
    %2183 = vmatpush1.msra.mxu0 0.0
    %2184 = vmatprep.subr.mxu0 0.0
    %2185 = vmatpush1.msra.mxu0 0.0
    %2186 = vmatprep.subr.mxu0 0.0
    %2187 = vmatpush1.msra.mxu0 0.0
    %2188 = vmatprep.subr.mxu0 0.0
    %2189 = vmatpush1.msra.mxu0 0.0
    %2190 = vmatprep.subr.mxu0 0.0
    %2191 = vmatpush1.msra.mxu0 0.0
    %2192 = vmatprep.subr.mxu0 0.0
    %2193 = vmatpush1.msra.mxu0 0.0
    %2194 = vmatprep.subr.mxu0 0.0
    %2195 = vmatpush1.msra.mxu0 0.0
    %2196 = vmatprep.subr.mxu0 0.0
    %2197 = vmatpush1.msra.mxu0 0.0
    %2198 = vmatprep.subr.mxu0 0.0
    %2199 = vmatpush1.msra.mxu0 0.0
    %2200 = vmatprep.subr.mxu0 0.0
    %2201 = vmatpush1.msra.mxu0 0.0
    %2202 = vmatprep.subr.mxu0 0.0
    %2203 = vmatpush1.msra.mxu0 0.0
    %2204 = vmatprep.subr.mxu0 0.0
    %2205 = vmatpush1.msra.mxu0 0.0
    %2206 = vmatprep.subr.mxu0 0.0
    %2207 = vmatpush1.msra.mxu0 0.0
    %2208 = vmatprep.mubr.f32.mxu0 0.0
    %2209 = vmatmul.mubr.f32.gmra.mrb[0].mxu0 %v2142
    %v2210 = vpop.f32.mrb[0].mxu0
    %v2211 = vadd.f32 0.0, %v2210
    %v2212 = vpop.f32.mrb[0].mxu0
    %2213 = vdwg.mxu0
    %v2214 = vadd.f32 %v629, %v1992
    %v2215 = vadd.f32 %v629, %v2065
    %v2216 = vadd.f32 %v629, %v2138
    %v2217 = vadd.f32 %v629, %v2211
    %2218 = vmatprep.subr.mxu0 0.0
    %2219 = vmatpush1.msra.mxu0 %v540
    %2220 = vmatprep.subr.mxu0 0.0
    %2221 = vmatpush1.msra.mxu0 0.0
    %2222 = vmatprep.subr.mxu0 0.0
    %2223 = vmatpush1.msra.mxu0 0.0
    %2224 = vmatprep.subr.mxu0 0.0
    %2225 = vmatpush1.msra.mxu0 0.0
    %2226 = vmatprep.subr.mxu0 0.0
    %2227 = vmatpush1.msra.mxu0 0.0
    %2228 = vmatprep.subr.mxu0 0.0
    %2229 = vmatpush1.msra.mxu0 0.0
    %2230 = vmatprep.subr.mxu0 0.0
    %2231 = vmatpush1.msra.mxu0 0.0
    %2232 = vmatprep.subr.mxu0 0.0
    %2233 = vmatpush1.msra.mxu0 0.0
    %2234 = vmatprep.subr.mxu0 0.0
    %2235 = vmatpush1.msra.mxu0 0.0
    %2236 = vmatprep.subr.mxu0 0.0
    %2237 = vmatpush1.msra.mxu0 0.0
    %2238 = vmatprep.subr.mxu0 0.0
    %2239 = vmatpush1.msra.mxu0 0.0
    %2240 = vmatprep.subr.mxu0 0.0
    %2241 = vmatpush1.msra.mxu0 0.0
    %2242 = vmatprep.subr.mxu0 0.0
    %2243 = vmatpush1.msra.mxu0 0.0
    %2244 = vmatprep.subr.mxu0 0.0
    %2245 = vmatpush1.msra.mxu0 0.0
    %2246 = vmatprep.subr.mxu0 0.0
    %2247 = vmatpush1.msra.mxu0 0.0
    %2248 = vmatprep.subr.mxu0 0.0
    %2249 = vmatpush1.msra.mxu0 0.0
    %2250 = vmatprep.subr.mxu0 0.0
    %2251 = vmatpush1.msra.mxu0 0.0
    %2252 = vmatprep.subr.mxu0 0.0
    %2253 = vmatpush1.msra.mxu0 0.0
    %2254 = vmatprep.subr.mxu0 0.0
    %2255 = vmatpush1.msra.mxu0 0.0
    %2256 = vmatprep.subr.mxu0 0.0
    %2257 = vmatpush1.msra.mxu0 0.0
    %2258 = vmatprep.subr.mxu0 0.0
    %2259 = vmatpush1.msra.mxu0 0.0
    %2260 = vmatprep.subr.mxu0 0.0
    %2261 = vmatpush1.msra.mxu0 0.0
    %2262 = vmatprep.subr.mxu0 0.0
    %2263 = vmatpush1.msra.mxu0 0.0
    %2264 = vmatprep.subr.mxu0 0.0
    %2265 = vmatpush1.msra.mxu0 0.0
    %2266 = vmatprep.subr.mxu0 0.0
    %2267 = vmatpush1.msra.mxu0 0.0
    %2268 = vmatprep.subr.mxu0 0.0
    %2269 = vmatpush1.msra.mxu0 0.0
    %2270 = vmatprep.subr.mxu0 0.0
    %2271 = vmatpush1.msra.mxu0 0.0
    %2272 = vmatprep.subr.mxu0 0.0
    %2273 = vmatpush1.msra.mxu0 0.0
    %2274 = vmatprep.subr.mxu0 0.0
    %2275 = vmatpush1.msra.mxu0 0.0
    %2276 = vmatprep.subr.mxu0 0.0
    %2277 = vmatpush1.msra.mxu0 0.0
    %2278 = vmatprep.subr.mxu0 0.0
    %2279 = vmatpush1.msra.mxu0 0.0
    %2280 = vmatprep.subr.mxu0 0.0
    %2281 = vmatpush1.msra.mxu0 0.0
    %2282 = vmatprep.mubr.f32.mxu0 0.0
    %2283 = vmatmul.mubr.f32.gmra.mrb[0].mxu0 %v636
    %v2284 = vpop.f32.mrb[0].mxu0
    %v2285 = vadd.f32 0.0, %v2284
    %v2286 = vpop.f32.mrb[0].mxu0
    %2287 = vdwg.mxu0
    %2288 = vmatprep.subr.mxu0 0.0
    %2289 = vmatpush1.msra.mxu0 %v542
    %2290 = vmatprep.subr.mxu0 0.0
    %2291 = vmatpush1.msra.mxu0 0.0
    %2292 = vmatprep.subr.mxu0 0.0
    %2293 = vmatpush1.msra.mxu0 0.0
    %2294 = vmatprep.subr.mxu0 0.0
    %2295 = vmatpush1.msra.mxu0 0.0
    %2296 = vmatprep.subr.mxu0 0.0
    %2297 = vmatpush1.msra.mxu0 0.0
    %2298 = vmatprep.subr.mxu0 0.0
    %2299 = vmatpush1.msra.mxu0 0.0
    %2300 = vmatprep.subr.mxu0 0.0
    %2301 = vmatpush1.msra.mxu0 0.0
    %2302 = vmatprep.subr.mxu0 0.0
    %2303 = vmatpush1.msra.mxu0 0.0
    %2304 = vmatprep.subr.mxu0 0.0
    %2305 = vmatpush1.msra.mxu0 0.0
    %2306 = vmatprep.subr.mxu0 0.0
    %2307 = vmatpush1.msra.mxu0 0.0
    %2308 = vmatprep.subr.mxu0 0.0
    %2309 = vmatpush1.msra.mxu0 0.0
    %2310 = vmatprep.subr.mxu0 0.0
    %2311 = vmatpush1.msra.mxu0 0.0
    %2312 = vmatprep.subr.mxu0 0.0
    %2313 = vmatpush1.msra.mxu0 0.0
    %2314 = vmatprep.subr.mxu0 0.0
    %2315 = vmatpush1.msra.mxu0 0.0
    %2316 = vmatprep.subr.mxu0 0.0
    %2317 = vmatpush1.msra.mxu0 0.0
    %2318 = vmatprep.subr.mxu0 0.0
    %2319 = vmatpush1.msra.mxu0 0.0
    %2320 = vmatprep.subr.mxu0 0.0
    %2321 = vmatpush1.msra.mxu0 0.0
    %2322 = vmatprep.subr.mxu0 0.0
    %2323 = vmatpush1.msra.mxu0 0.0
    %2324 = vmatprep.subr.mxu0 0.0
    %2325 = vmatpush1.msra.mxu0 0.0
    %2326 = vmatprep.subr.mxu0 0.0
    %2327 = vmatpush1.msra.mxu0 0.0
    %2328 = vmatprep.subr.mxu0 0.0
    %2329 = vmatpush1.msra.mxu0 0.0
    %2330 = vmatprep.subr.mxu0 0.0
    %2331 = vmatpush1.msra.mxu0 0.0
    %2332 = vmatprep.subr.mxu0 0.0
    %2333 = vmatpush1.msra.mxu0 0.0
    %2334 = vmatprep.subr.mxu0 0.0
    %2335 = vmatpush1.msra.mxu0 0.0
    %2336 = vmatprep.subr.mxu0 0.0
    %2337 = vmatpush1.msra.mxu0 0.0
    %2338 = vmatprep.subr.mxu0 0.0
    %2339 = vmatpush1.msra.mxu0 0.0
    %2340 = vmatprep.subr.mxu0 0.0
    %2341 = vmatpush1.msra.mxu0 0.0
    %2342 = vmatprep.subr.mxu0 0.0
    %2343 = vmatpush1.msra.mxu0 0.0
    %2344 = vmatprep.subr.mxu0 0.0
    %2345 = vmatpush1.msra.mxu0 0.0
    %2346 = vmatprep.subr.mxu0 0.0
    %2347 = vmatpush1.msra.mxu0 0.0
    %2348 = vmatprep.subr.mxu0 0.0
    %2349 = vmatpush1.msra.mxu0 0.0
    %2350 = vmatprep.subr.mxu0 0.0
    %2351 = vmatpush1.msra.mxu0 0.0
    %2352 = vmatprep.mubr.f32.mxu0 0.0
    %2353 = vmatmul.mubr.f32.gmra.mrb[0].mxu0 %v713
    %v2354 = vpop.f32.mrb[0].mxu0
    %v2355 = vadd.f32 0.0, %v2354
    %v2356 = vpop.f32.mrb[0].mxu0
    %2357 = vdwg.mxu0
    %2358 = vmatprep.subr.mxu0 0.0
    %2359 = vmatpush1.msra.mxu0 %v544
    %2360 = vmatprep.subr.mxu0 0.0
    %2361 = vmatpush1.msra.mxu0 0.0
    %2362 = vmatprep.subr.mxu0 0.0
    %2363 = vmatpush1.msra.mxu0 0.0
    %2364 = vmatprep.subr.mxu0 0.0
    %2365 = vmatpush1.msra.mxu0 0.0
    %2366 = vmatprep.subr.mxu0 0.0
    %2367 = vmatpush1.msra.mxu0 0.0
    %2368 = vmatprep.subr.mxu0 0.0
    %2369 = vmatpush1.msra.mxu0 0.0
    %2370 = vmatprep.subr.mxu0 0.0
    %2371 = vmatpush1.msra.mxu0 0.0
    %2372 = vmatprep.subr.mxu0 0.0
    %2373 = vmatpush1.msra.mxu0 0.0
    %2374 = vmatprep.subr.mxu0 0.0
    %2375 = vmatpush1.msra.mxu0 0.0
    %2376 = vmatprep.subr.mxu0 0.0
    %2377 = vmatpush1.msra.mxu0 0.0
    %2378 = vmatprep.subr.mxu0 0.0
    %2379 = vmatpush1.msra.mxu0 0.0
    %2380 = vmatprep.subr.mxu0 0.0
    %2381 = vmatpush1.msra.mxu0 0.0
    %2382 = vmatprep.subr.mxu0 0.0
    %2383 = vmatpush1.msra.mxu0 0.0
    %2384 = vmatprep.subr.mxu0 0.0
    %2385 = vmatpush1.msra.mxu0 0.0
    %2386 = vmatprep.subr.mxu0 0.0
    %2387 = vmatpush1.msra.mxu0 0.0
    %2388 = vmatprep.subr.mxu0 0.0
    %2389 = vmatpush1.msra.mxu0 0.0
    %2390 = vmatprep.subr.mxu0 0.0
    %2391 = vmatpush1.msra.mxu0 0.0
    %2392 = vmatprep.subr.mxu0 0.0
    %2393 = vmatpush1.msra.mxu0 0.0
    %2394 = vmatprep.subr.mxu0 0.0
    %2395 = vmatpush1.msra.mxu0 0.0
    %2396 = vmatprep.subr.mxu0 0.0
    %2397 = vmatpush1.msra.mxu0 0.0
    %2398 = vmatprep.subr.mxu0 0.0
    %2399 = vmatpush1.msra.mxu0 0.0
    %2400 = vmatprep.subr.mxu0 0.0
    %2401 = vmatpush1.msra.mxu0 0.0
    %2402 = vmatprep.subr.mxu0 0.0
    %2403 = vmatpush1.msra.mxu0 0.0
    %2404 = vmatprep.subr.mxu0 0.0
    %2405 = vmatpush1.msra.mxu0 0.0
    %2406 = vmatprep.subr.mxu0 0.0
    %2407 = vmatpush1.msra.mxu0 0.0
    %2408 = vmatprep.subr.mxu0 0.0
    %2409 = vmatpush1.msra.mxu0 0.0
    %2410 = vmatprep.subr.mxu0 0.0
    %2411 = vmatpush1.msra.mxu0 0.0
    %2412 = vmatprep.subr.mxu0 0.0
    %2413 = vmatpush1.msra.mxu0 0.0
    %2414 = vmatprep.subr.mxu0 0.0
    %2415 = vmatpush1.msra.mxu0 0.0
    %2416 = vmatprep.subr.mxu0 0.0
    %2417 = vmatpush1.msra.mxu0 0.0
    %2418 = vmatprep.subr.mxu0 0.0
    %2419 = vmatpush1.msra.mxu0 0.0
    %2420 = vmatprep.subr.mxu0 0.0
    %2421 = vmatpush1.msra.mxu0 0.0
    %2422 = vmatprep.mubr.f32.mxu0 0.0
    %2423 = vmatmul.mubr.f32.gmra.mrb[0].mxu0 %v790
    %v2424 = vpop.f32.mrb[0].mxu0
    %v2425 = vadd.f32 0.0, %v2424
    %v2426 = vpop.f32.mrb[0].mxu0
    %2427 = vdwg.mxu0
    %2428 = vmatprep.subr.mxu0 0.0
    %2429 = vmatpush1.msra.mxu0 %v546
    %2430 = vmatprep.subr.mxu0 0.0
    %2431 = vmatpush1.msra.mxu0 0.0
    %2432 = vmatprep.subr.mxu0 0.0
    %2433 = vmatpush1.msra.mxu0 0.0
    %2434 = vmatprep.subr.mxu0 0.0
    %2435 = vmatpush1.msra.mxu0 0.0
    %2436 = vmatprep.subr.mxu0 0.0
    %2437 = vmatpush1.msra.mxu0 0.0
    %2438 = vmatprep.subr.mxu0 0.0
    %2439 = vmatpush1.msra.mxu0 0.0
    %2440 = vmatprep.subr.mxu0 0.0
    %2441 = vmatpush1.msra.mxu0 0.0
    %2442 = vmatprep.subr.mxu0 0.0
    %2443 = vmatpush1.msra.mxu0 0.0
    %2444 = vmatprep.subr.mxu0 0.0
    %2445 = vmatpush1.msra.mxu0 0.0
    %2446 = vmatprep.subr.mxu0 0.0
    %2447 = vmatpush1.msra.mxu0 0.0
    %2448 = vmatprep.subr.mxu0 0.0
    %2449 = vmatpush1.msra.mxu0 0.0
    %2450 = vmatprep.subr.mxu0 0.0
    %2451 = vmatpush1.msra.mxu0 0.0
    %2452 = vmatprep.subr.mxu0 0.0
    %2453 = vmatpush1.msra.mxu0 0.0
    %2454 = vmatprep.subr.mxu0 0.0
    %2455 = vmatpush1.msra.mxu0 0.0
    %2456 = vmatprep.subr.mxu0 0.0
    %2457 = vmatpush1.msra.mxu0 0.0
    %2458 = vmatprep.subr.mxu0 0.0
    %2459 = vmatpush1.msra.mxu0 0.0
    %2460 = vmatprep.subr.mxu0 0.0
    %2461 = vmatpush1.msra.mxu0 0.0
    %2462 = vmatprep.subr.mxu0 0.0
    %2463 = vmatpush1.msra.mxu0 0.0
    %2464 = vmatprep.subr.mxu0 0.0
    %2465 = vmatpush1.msra.mxu0 0.0
    %2466 = vmatprep.subr.mxu0 0.0
    %2467 = vmatpush1.msra.mxu0 0.0
    %2468 = vmatprep.subr.mxu0 0.0
    %2469 = vmatpush1.msra.mxu0 0.0
    %2470 = vmatprep.subr.mxu0 0.0
    %2471 = vmatpush1.msra.mxu0 0.0
    %2472 = vmatprep.subr.mxu0 0.0
    %2473 = vmatpush1.msra.mxu0 0.0
    %2474 = vmatprep.subr.mxu0 0.0
    %2475 = vmatpush1.msra.mxu0 0.0
    %2476 = vmatprep.subr.mxu0 0.0
    %2477 = vmatpush1.msra.mxu0 0.0
    %2478 = vmatprep.subr.mxu0 0.0
    %2479 = vmatpush1.msra.mxu0 0.0
    %2480 = vmatprep.subr.mxu0 0.0
    %2481 = vmatpush1.msra.mxu0 0.0
    %2482 = vmatprep.subr.mxu0 0.0
    %2483 = vmatpush1.msra.mxu0 0.0
    %2484 = vmatprep.subr.mxu0 0.0
    %2485 = vmatpush1.msra.mxu0 0.0
    %2486 = vmatprep.subr.mxu0 0.0
    %2487 = vmatpush1.msra.mxu0 0.0
    %2488 = vmatprep.subr.mxu0 0.0
    %2489 = vmatpush1.msra.mxu0 0.0
    %2490 = vmatprep.subr.mxu0 0.0
    %2491 = vmatpush1.msra.mxu0 0.0
    %2492 = vmatprep.mubr.f32.mxu0 0.0
    %2493 = vmatmul.mubr.f32.gmra.mrb[0].mxu0 %v867
    %v2494 = vpop.f32.mrb[0].mxu0
    %v2495 = vadd.f32 0.0, %v2494
    %v2496 = vpop.f32.mrb[0].mxu0
    %2497 = vdwg.mxu0
    %2498 = vrot.lane.b32.xlu0 %v539, 32
    %v2499 = vpop.permute.xlu0 %2498
    %v2501 = vsel %vm939, %v2285, 0
    %v2503 = vsel %vm939, %v2499, 0
    %2505 = vmatprep.subr.mxu0 0.0
    %2506 = vmatpush1.xpose.msra.mxu0 %v2503
    %2507 = vmatprep.subr.mxu0 0.0
    %2508 = vmatpush1.xpose.msra.mxu0 0.0
    %2509 = vmatprep.subr.mxu0 0.0
    %2510 = vmatpush1.xpose.msra.mxu0 0.0
    %2511 = vmatprep.subr.mxu0 0.0
    %2512 = vmatpush1.xpose.msra.mxu0 0.0
    %2513 = vmatprep.subr.mxu0 0.0
    %2514 = vmatpush1.xpose.msra.mxu0 0.0
    %2515 = vmatprep.subr.mxu0 0.0
    %2516 = vmatpush1.xpose.msra.mxu0 0.0
    %2517 = vmatprep.subr.mxu0 0.0
    %2518 = vmatpush1.xpose.msra.mxu0 0.0
    %2519 = vmatprep.subr.mxu0 0.0
    %2520 = vmatpush1.xpose.msra.mxu0 0.0
    %2521 = vmatprep.subr.mxu0 0.0
    %2522 = vmatpush1.xpose.msra.mxu0 0.0
    %2523 = vmatprep.subr.mxu0 0.0
    %2524 = vmatpush1.xpose.msra.mxu0 0.0
    %2525 = vmatprep.subr.mxu0 0.0
    %2526 = vmatpush1.xpose.msra.mxu0 0.0
    %2527 = vmatprep.subr.mxu0 0.0
    %2528 = vmatpush1.xpose.msra.mxu0 0.0
    %2529 = vmatprep.subr.mxu0 0.0
    %2530 = vmatpush1.xpose.msra.mxu0 0.0
    %2531 = vmatprep.subr.mxu0 0.0
    %2532 = vmatpush1.xpose.msra.mxu0 0.0
    %2533 = vmatprep.subr.mxu0 0.0
    %2534 = vmatpush1.xpose.msra.mxu0 0.0
    %2535 = vmatprep.subr.mxu0 0.0
    %2536 = vmatpush1.xpose.msra.mxu0 0.0
    %2537 = vmatprep.subr.mxu0 0.0
    %2538 = vmatpush1.xpose.msra.mxu0 0.0
    %2539 = vmatprep.subr.mxu0 0.0
    %2540 = vmatpush1.xpose.msra.mxu0 0.0
    %2541 = vmatprep.subr.mxu0 0.0
    %2542 = vmatpush1.xpose.msra.mxu0 0.0
    %2543 = vmatprep.subr.mxu0 0.0
    %2544 = vmatpush1.xpose.msra.mxu0 0.0
    %2545 = vmatprep.subr.mxu0 0.0
    %2546 = vmatpush1.xpose.msra.mxu0 0.0
    %2547 = vmatprep.subr.mxu0 0.0
    %2548 = vmatpush1.xpose.msra.mxu0 0.0
    %2549 = vmatprep.subr.mxu0 0.0
    %2550 = vmatpush1.xpose.msra.mxu0 0.0
    %2551 = vmatprep.subr.mxu0 0.0
    %2552 = vmatpush1.xpose.msra.mxu0 0.0
    %2553 = vmatprep.subr.mxu0 0.0
    %2554 = vmatpush1.xpose.msra.mxu0 0.0
    %2555 = vmatprep.subr.mxu0 0.0
    %2556 = vmatpush1.xpose.msra.mxu0 0.0
    %2557 = vmatprep.subr.mxu0 0.0
    %2558 = vmatpush1.xpose.msra.mxu0 0.0
    %2559 = vmatprep.subr.mxu0 0.0
    %2560 = vmatpush1.xpose.msra.mxu0 0.0
    %2561 = vmatprep.subr.mxu0 0.0
    %2562 = vmatpush1.xpose.msra.mxu0 0.0
    %2563 = vmatprep.subr.mxu0 0.0
    %2564 = vmatpush1.xpose.msra.mxu0 0.0
    %2565 = vmatprep.subr.mxu0 0.0
    %2566 = vmatpush1.xpose.msra.mxu0 0.0
    %2567 = vmatprep.subr.mxu0 0.0
    %2568 = vmatpush1.xpose.msra.mxu0 0.0
    %2569 = vmatprep.mubr.f32.mxu0 0.0
    %2570 = vmatmul.mubr.f32.gmra.mrb[0].mxu0 %v2501
    %v2571 = vpop.f32.mrb[0].mxu0
    %v2572 = vadd.f32 0.0, %v2571
    %v2573 = vpop.f32.mrb[0].mxu0
    %2574 = vdwg.mxu0
    %2575 = vrot.lane.b32.xlu0 %v541, 32
    %v2576 = vpop.permute.xlu0 %2575
    %v2578 = vsel %vm939, %v2355, 0
    %v2580 = vsel %vm939, %v2576, 0
    %2582 = vmatprep.subr.mxu0 0.0
    %2583 = vmatpush1.xpose.msra.mxu0 %v2580
    %2584 = vmatprep.subr.mxu0 0.0
    %2585 = vmatpush1.xpose.msra.mxu0 0.0
    %2586 = vmatprep.subr.mxu0 0.0
    %2587 = vmatpush1.xpose.msra.mxu0 0.0
    %2588 = vmatprep.subr.mxu0 0.0
    %2589 = vmatpush1.xpose.msra.mxu0 0.0
    %2590 = vmatprep.subr.mxu0 0.0
    %2591 = vmatpush1.xpose.msra.mxu0 0.0
    %2592 = vmatprep.subr.mxu0 0.0
    %2593 = vmatpush1.xpose.msra.mxu0 0.0
    %2594 = vmatprep.subr.mxu0 0.0
    %2595 = vmatpush1.xpose.msra.mxu0 0.0
    %2596 = vmatprep.subr.mxu0 0.0
    %2597 = vmatpush1.xpose.msra.mxu0 0.0
    %2598 = vmatprep.subr.mxu0 0.0
    %2599 = vmatpush1.xpose.msra.mxu0 0.0
    %2600 = vmatprep.subr.mxu0 0.0
    %2601 = vmatpush1.xpose.msra.mxu0 0.0
    %2602 = vmatprep.subr.mxu0 0.0
    %2603 = vmatpush1.xpose.msra.mxu0 0.0
    %2604 = vmatprep.subr.mxu0 0.0
    %2605 = vmatpush1.xpose.msra.mxu0 0.0
    %2606 = vmatprep.subr.mxu0 0.0
    %2607 = vmatpush1.xpose.msra.mxu0 0.0
    %2608 = vmatprep.subr.mxu0 0.0
    %2609 = vmatpush1.xpose.msra.mxu0 0.0
    %2610 = vmatprep.subr.mxu0 0.0
    %2611 = vmatpush1.xpose.msra.mxu0 0.0
    %2612 = vmatprep.subr.mxu0 0.0
    %2613 = vmatpush1.xpose.msra.mxu0 0.0
    %2614 = vmatprep.subr.mxu0 0.0
    %2615 = vmatpush1.xpose.msra.mxu0 0.0
    %2616 = vmatprep.subr.mxu0 0.0
    %2617 = vmatpush1.xpose.msra.mxu0 0.0
    %2618 = vmatprep.subr.mxu0 0.0
    %2619 = vmatpush1.xpose.msra.mxu0 0.0
    %2620 = vmatprep.subr.mxu0 0.0
    %2621 = vmatpush1.xpose.msra.mxu0 0.0
    %2622 = vmatprep.subr.mxu0 0.0
    %2623 = vmatpush1.xpose.msra.mxu0 0.0
    %2624 = vmatprep.subr.mxu0 0.0
    %2625 = vmatpush1.xpose.msra.mxu0 0.0
    %2626 = vmatprep.subr.mxu0 0.0
    %2627 = vmatpush1.xpose.msra.mxu0 0.0
    %2628 = vmatprep.subr.mxu0 0.0
    %2629 = vmatpush1.xpose.msra.mxu0 0.0
    %2630 = vmatprep.subr.mxu0 0.0
    %2631 = vmatpush1.xpose.msra.mxu0 0.0
    %2632 = vmatprep.subr.mxu0 0.0
    %2633 = vmatpush1.xpose.msra.mxu0 0.0
    %2634 = vmatprep.subr.mxu0 0.0
    %2635 = vmatpush1.xpose.msra.mxu0 0.0
    %2636 = vmatprep.subr.mxu0 0.0
    %2637 = vmatpush1.xpose.msra.mxu0 0.0
    %2638 = vmatprep.subr.mxu0 0.0
    %2639 = vmatpush1.xpose.msra.mxu0 0.0
    %2640 = vmatprep.subr.mxu0 0.0
    %2641 = vmatpush1.xpose.msra.mxu0 0.0
    %2642 = vmatprep.subr.mxu0 0.0
    %2643 = vmatpush1.xpose.msra.mxu0 0.0
    %2644 = vmatprep.subr.mxu0 0.0
    %2645 = vmatpush1.xpose.msra.mxu0 0.0
    %2646 = vmatprep.mubr.f32.mxu0 0.0
    %2647 = vmatmul.mubr.f32.gmra.mrb[0].mxu0 %v2578
    %v2648 = vpop.f32.mrb[0].mxu0
    %v2649 = vadd.f32 0.0, %v2648
    %v2650 = vpop.f32.mrb[0].mxu0
    %2651 = vdwg.mxu0
    %2652 = vrot.lane.b32.xlu0 %v543, 32
    %v2653 = vpop.permute.xlu0 %2652
    %v2655 = vsel %vm939, %v2425, 0
    %v2657 = vsel %vm939, %v2653, 0
    %2659 = vmatprep.subr.mxu0 0.0
    %2660 = vmatpush1.xpose.msra.mxu0 %v2657
    %2661 = vmatprep.subr.mxu0 0.0
    %2662 = vmatpush1.xpose.msra.mxu0 0.0
    %2663 = vmatprep.subr.mxu0 0.0
    %2664 = vmatpush1.xpose.msra.mxu0 0.0
    %2665 = vmatprep.subr.mxu0 0.0
    %2666 = vmatpush1.xpose.msra.mxu0 0.0
    %2667 = vmatprep.subr.mxu0 0.0
    %2668 = vmatpush1.xpose.msra.mxu0 0.0
    %2669 = vmatprep.subr.mxu0 0.0
    %2670 = vmatpush1.xpose.msra.mxu0 0.0
    %2671 = vmatprep.subr.mxu0 0.0
    %2672 = vmatpush1.xpose.msra.mxu0 0.0
    %2673 = vmatprep.subr.mxu0 0.0
    %2674 = vmatpush1.xpose.msra.mxu0 0.0
    %2675 = vmatprep.subr.mxu0 0.0
    %2676 = vmatpush1.xpose.msra.mxu0 0.0
    %2677 = vmatprep.subr.mxu0 0.0
    %2678 = vmatpush1.xpose.msra.mxu0 0.0
    %2679 = vmatprep.subr.mxu0 0.0
    %2680 = vmatpush1.xpose.msra.mxu0 0.0
    %2681 = vmatprep.subr.mxu0 0.0
    %2682 = vmatpush1.xpose.msra.mxu0 0.0
    %2683 = vmatprep.subr.mxu0 0.0
    %2684 = vmatpush1.xpose.msra.mxu0 0.0
    %2685 = vmatprep.subr.mxu0 0.0
    %2686 = vmatpush1.xpose.msra.mxu0 0.0
    %2687 = vmatprep.subr.mxu0 0.0
    %2688 = vmatpush1.xpose.msra.mxu0 0.0
    %2689 = vmatprep.subr.mxu0 0.0
    %2690 = vmatpush1.xpose.msra.mxu0 0.0
    %2691 = vmatprep.subr.mxu0 0.0
    %2692 = vmatpush1.xpose.msra.mxu0 0.0
    %2693 = vmatprep.subr.mxu0 0.0
    %2694 = vmatpush1.xpose.msra.mxu0 0.0
    %2695 = vmatprep.subr.mxu0 0.0
    %2696 = vmatpush1.xpose.msra.mxu0 0.0
    %2697 = vmatprep.subr.mxu0 0.0
    %2698 = vmatpush1.xpose.msra.mxu0 0.0
    %2699 = vmatprep.subr.mxu0 0.0
    %2700 = vmatpush1.xpose.msra.mxu0 0.0
    %2701 = vmatprep.subr.mxu0 0.0
    %2702 = vmatpush1.xpose.msra.mxu0 0.0
    %2703 = vmatprep.subr.mxu0 0.0
    %2704 = vmatpush1.xpose.msra.mxu0 0.0
    %2705 = vmatprep.subr.mxu0 0.0
    %2706 = vmatpush1.xpose.msra.mxu0 0.0
    %2707 = vmatprep.subr.mxu0 0.0
    %2708 = vmatpush1.xpose.msra.mxu0 0.0
    %2709 = vmatprep.subr.mxu0 0.0
    %2710 = vmatpush1.xpose.msra.mxu0 0.0
    %2711 = vmatprep.subr.mxu0 0.0
    %2712 = vmatpush1.xpose.msra.mxu0 0.0
    %2713 = vmatprep.subr.mxu0 0.0
    %2714 = vmatpush1.xpose.msra.mxu0 0.0
    %2715 = vmatprep.subr.mxu0 0.0
    %2716 = vmatpush1.xpose.msra.mxu0 0.0
    %2717 = vmatprep.subr.mxu0 0.0
    %2718 = vmatpush1.xpose.msra.mxu0 0.0
    %2719 = vmatprep.subr.mxu0 0.0
    %2720 = vmatpush1.xpose.msra.mxu0 0.0
    %2721 = vmatprep.subr.mxu0 0.0
    %2722 = vmatpush1.xpose.msra.mxu0 0.0
    %2723 = vmatprep.mubr.f32.mxu0 0.0
    %2724 = vmatmul.mubr.f32.gmra.mrb[0].mxu0 %v2655
    %v2725 = vpop.f32.mrb[0].mxu0
    %v2726 = vadd.f32 0.0, %v2725
    %v2727 = vpop.f32.mrb[0].mxu0
    %2728 = vdwg.mxu0
    %2729 = vrot.lane.b32.xlu0 %v545, 32
    %v2730 = vpop.permute.xlu0 %2729
    %v2732 = vsel %vm939, %v2495, 0
    %v2734 = vsel %vm939, %v2730, 0
    %2736 = vmatprep.subr.mxu0 0.0
    %2737 = vmatpush1.xpose.msra.mxu0 %v2734
    %2738 = vmatprep.subr.mxu0 0.0
    %2739 = vmatpush1.xpose.msra.mxu0 0.0
    %2740 = vmatprep.subr.mxu0 0.0
    %2741 = vmatpush1.xpose.msra.mxu0 0.0
    %2742 = vmatprep.subr.mxu0 0.0
    %2743 = vmatpush1.xpose.msra.mxu0 0.0
    %2744 = vmatprep.subr.mxu0 0.0
    %2745 = vmatpush1.xpose.msra.mxu0 0.0
    %2746 = vmatprep.subr.mxu0 0.0
    %2747 = vmatpush1.xpose.msra.mxu0 0.0
    %2748 = vmatprep.subr.mxu0 0.0
    %2749 = vmatpush1.xpose.msra.mxu0 0.0
    %2750 = vmatprep.subr.mxu0 0.0
    %2751 = vmatpush1.xpose.msra.mxu0 0.0
    %2752 = vmatprep.subr.mxu0 0.0
    %2753 = vmatpush1.xpose.msra.mxu0 0.0
    %2754 = vmatprep.subr.mxu0 0.0
    %2755 = vmatpush1.xpose.msra.mxu0 0.0
    %2756 = vmatprep.subr.mxu0 0.0
    %2757 = vmatpush1.xpose.msra.mxu0 0.0
    %2758 = vmatprep.subr.mxu0 0.0
    %2759 = vmatpush1.xpose.msra.mxu0 0.0
    %2760 = vmatprep.subr.mxu0 0.0
    %2761 = vmatpush1.xpose.msra.mxu0 0.0
    %2762 = vmatprep.subr.mxu0 0.0
    %2763 = vmatpush1.xpose.msra.mxu0 0.0
    %2764 = vmatprep.subr.mxu0 0.0
    %2765 = vmatpush1.xpose.msra.mxu0 0.0
    %2766 = vmatprep.subr.mxu0 0.0
    %2767 = vmatpush1.xpose.msra.mxu0 0.0
    %2768 = vmatprep.subr.mxu0 0.0
    %2769 = vmatpush1.xpose.msra.mxu0 0.0
    %2770 = vmatprep.subr.mxu0 0.0
    %2771 = vmatpush1.xpose.msra.mxu0 0.0
    %2772 = vmatprep.subr.mxu0 0.0
    %2773 = vmatpush1.xpose.msra.mxu0 0.0
    %2774 = vmatprep.subr.mxu0 0.0
    %2775 = vmatpush1.xpose.msra.mxu0 0.0
    %2776 = vmatprep.subr.mxu0 0.0
    %2777 = vmatpush1.xpose.msra.mxu0 0.0
    %2778 = vmatprep.subr.mxu0 0.0
    %2779 = vmatpush1.xpose.msra.mxu0 0.0
    %2780 = vmatprep.subr.mxu0 0.0
    %2781 = vmatpush1.xpose.msra.mxu0 0.0
    %2782 = vmatprep.subr.mxu0 0.0
    %2783 = vmatpush1.xpose.msra.mxu0 0.0
    %2784 = vmatprep.subr.mxu0 0.0
    %2785 = vmatpush1.xpose.msra.mxu0 0.0
    %2786 = vmatprep.subr.mxu0 0.0
    %2787 = vmatpush1.xpose.msra.mxu0 0.0
    %2788 = vmatprep.subr.mxu0 0.0
    %2789 = vmatpush1.xpose.msra.mxu0 0.0
    %2790 = vmatprep.subr.mxu0 0.0
    %2791 = vmatpush1.xpose.msra.mxu0 0.0
    %2792 = vmatprep.subr.mxu0 0.0
    %2793 = vmatpush1.xpose.msra.mxu0 0.0
    %2794 = vmatprep.subr.mxu0 0.0
    %2795 = vmatpush1.xpose.msra.mxu0 0.0
    %2796 = vmatprep.subr.mxu0 0.0
    %2797 = vmatpush1.xpose.msra.mxu0 0.0
    %2798 = vmatprep.subr.mxu0 0.0
    %2799 = vmatpush1.xpose.msra.mxu0 0.0
    %2800 = vmatprep.mubr.f32.mxu0 0.0
    %2801 = vmatmul.mubr.f32.gmra.mrb[0].mxu0 %v2732
    %v2802 = vpop.f32.mrb[0].mxu0
    %v2803 = vadd.f32 0.0, %v2802
    %v2804 = vpop.f32.mrb[0].mxu0
    %2805 = vdwg.mxu0
    %v2806 = vmul.f32 %v2572, 0.17677669
    %v2807 = vmul.f32 %v2649, 0.17677669
    %v2808 = vmul.f32 %v2726, 0.17677669
    %v2809 = vmul.f32 %v2803, 0.17677669
    %v2810 = vsel %vm581, %v2806, -1e+30
    %v2811 = vsel %vm582, %v2807, -1e+30
    %v2812 = vsel %vm583, %v2808, -1e+30
    %v2813 = vsel %vm584, %v2809, -1e+30
    %v2814 = vsel %vm1248, %v2810, -inf
    %2815 = vmax.xlane.f32.xlu0 %v2814
    %v2816 = vpop.xlane.xlu0 %2815
    %v2817 = vsel %vm1248, %v2811, -inf
    %2818 = vmax.xlane.f32.xlu0 %v2817
    %v2819 = vpop.xlane.xlu0 %2818
    %v2820 = vsel %vm1248, %v2812, -inf
    %2821 = vmax.xlane.f32.xlu0 %v2820
    %v2822 = vpop.xlane.xlu0 %2821
    %v2823 = vsel %vm1248, %v2813, -inf
    %2824 = vmax.xlane.f32.xlu0 %v2823
    %v2825 = vpop.xlane.xlu0 %2824
    %v2826 = vsub.f32 %v2810, %v2816
    %v2827 = vsub.f32 %v2811, %v2819
    %v2828 = vsub.f32 %v2812, %v2822
    %v2829 = vsub.f32 %v2813, %v2825
    %v2830 = vmul.f32 %v2826, 1.442695
    %v2831 = vpow.pop %v2830
    %v2832 = vmul.f32 %v2827, 1.442695
    %v2833 = vpow.pop %v2832
    %v2834 = vmul.f32 %v2828, 1.442695
    %v2835 = vpow.pop %v2834
    %v2836 = vmul.f32 %v2829, 1.442695
    %v2837 = vpow.pop %v2836
    %v2838 = vmul.f32 %v2831, %v1277
    %v2839 = vmul.f32 %v2833, %v1278
    %v2840 = vmul.f32 %v2835, %v1279
    %v2841 = vmul.f32 %v2837, %v1280
    %v2842 = vsel %vm1248, %v2838, 0.0
    %2843 = vadd.xlane.f32.xlu0 %v2842
    %v2844 = vpop.xlane.xlu0 %2843
    %v2845 = vsel %vm1248, %v2839, 0.0
    %2846 = vadd.xlane.f32.xlu0 %v2845
    %v2847 = vpop.xlane.xlu0 %2846
    %v2848 = vsel %vm1248, %v2840, 0.0
    %2849 = vadd.xlane.f32.xlu0 %v2848
    %v2850 = vpop.xlane.xlu0 %2849
    %v2851 = vsel %vm1248, %v2841, 0.0
    %2852 = vadd.xlane.f32.xlu0 %v2851
    %v2853 = vpop.xlane.xlu0 %2852
    %v2854 = vrcp.pop %v2844
    %v2855 = vmul.f32 %v2838, %v2854
    %v2856 = vrcp.pop %v2847
    %v2857 = vmul.f32 %v2839, %v2856
    %v2858 = vrcp.pop %v2850
    %v2859 = vmul.f32 %v2840, %v2858
    %v2860 = vrcp.pop %v2853
    %v2861 = vmul.f32 %v2841, %v2860
    %2863 = vrot.lane.b32.xlu0 %v540, 96
    %v2864 = vpop.permute.xlu0 %2863
    %v2867 = vsel %vm634, %v2855, 0
    %2869 = vmatprep.subr.mxu0 0.0
    %2870 = vmatpush1.msra.mxu0 %v2864
    %2871 = vmatprep.subr.mxu0 0.0
    %2872 = vmatpush1.msra.mxu0 0.0
    %2873 = vmatprep.subr.mxu0 0.0
    %2874 = vmatpush1.msra.mxu0 0.0
    %2875 = vmatprep.subr.mxu0 0.0
    %2876 = vmatpush1.msra.mxu0 0.0
    %2877 = vmatprep.subr.mxu0 0.0
    %2878 = vmatpush1.msra.mxu0 0.0
    %2879 = vmatprep.subr.mxu0 0.0
    %2880 = vmatpush1.msra.mxu0 0.0
    %2881 = vmatprep.subr.mxu0 0.0
    %2882 = vmatpush1.msra.mxu0 0.0
    %2883 = vmatprep.subr.mxu0 0.0
    %2884 = vmatpush1.msra.mxu0 0.0
    %2885 = vmatprep.subr.mxu0 0.0
    %2886 = vmatpush1.msra.mxu0 0.0
    %2887 = vmatprep.subr.mxu0 0.0
    %2888 = vmatpush1.msra.mxu0 0.0
    %2889 = vmatprep.subr.mxu0 0.0
    %2890 = vmatpush1.msra.mxu0 0.0
    %2891 = vmatprep.subr.mxu0 0.0
    %2892 = vmatpush1.msra.mxu0 0.0
    %2893 = vmatprep.subr.mxu0 0.0
    %2894 = vmatpush1.msra.mxu0 0.0
    %2895 = vmatprep.subr.mxu0 0.0
    %2896 = vmatpush1.msra.mxu0 0.0
    %2897 = vmatprep.subr.mxu0 0.0
    %2898 = vmatpush1.msra.mxu0 0.0
    %2899 = vmatprep.subr.mxu0 0.0
    %2900 = vmatpush1.msra.mxu0 0.0
    %2901 = vmatprep.subr.mxu0 0.0
    %2902 = vmatpush1.msra.mxu0 0.0
    %2903 = vmatprep.subr.mxu0 0.0
    %2904 = vmatpush1.msra.mxu0 0.0
    %2905 = vmatprep.subr.mxu0 0.0
    %2906 = vmatpush1.msra.mxu0 0.0
    %2907 = vmatprep.subr.mxu0 0.0
    %2908 = vmatpush1.msra.mxu0 0.0
    %2909 = vmatprep.subr.mxu0 0.0
    %2910 = vmatpush1.msra.mxu0 0.0
    %2911 = vmatprep.subr.mxu0 0.0
    %2912 = vmatpush1.msra.mxu0 0.0
    %2913 = vmatprep.subr.mxu0 0.0
    %2914 = vmatpush1.msra.mxu0 0.0
    %2915 = vmatprep.subr.mxu0 0.0
    %2916 = vmatpush1.msra.mxu0 0.0
    %2917 = vmatprep.subr.mxu0 0.0
    %2918 = vmatpush1.msra.mxu0 0.0
    %2919 = vmatprep.subr.mxu0 0.0
    %2920 = vmatpush1.msra.mxu0 0.0
    %2921 = vmatprep.subr.mxu0 0.0
    %2922 = vmatpush1.msra.mxu0 0.0
    %2923 = vmatprep.subr.mxu0 0.0
    %2924 = vmatpush1.msra.mxu0 0.0
    %2925 = vmatprep.subr.mxu0 0.0
    %2926 = vmatpush1.msra.mxu0 0.0
    %2927 = vmatprep.subr.mxu0 0.0
    %2928 = vmatpush1.msra.mxu0 0.0
    %2929 = vmatprep.subr.mxu0 0.0
    %2930 = vmatpush1.msra.mxu0 0.0
    %2931 = vmatprep.subr.mxu0 0.0
    %2932 = vmatpush1.msra.mxu0 0.0
    %2933 = vmatprep.mubr.f32.mxu0 0.0
    %2934 = vmatmul.mubr.f32.gmra.mrb[0].mxu0 %v2867
    %v2935 = vpop.f32.mrb[0].mxu0
    %v2936 = vadd.f32 0.0, %v2935
    %v2937 = vpop.f32.mrb[0].mxu0
    %2938 = vdwg.mxu0
    %2940 = vrot.lane.b32.xlu0 %v542, 96
    %v2941 = vpop.permute.xlu0 %2940
    %v2944 = vsel %vm634, %v2857, 0
    %2946 = vmatprep.subr.mxu0 0.0
    %2947 = vmatpush1.msra.mxu0 %v2941
    %2948 = vmatprep.subr.mxu0 0.0
    %2949 = vmatpush1.msra.mxu0 0.0
    %2950 = vmatprep.subr.mxu0 0.0
    %2951 = vmatpush1.msra.mxu0 0.0
    %2952 = vmatprep.subr.mxu0 0.0
    %2953 = vmatpush1.msra.mxu0 0.0
    %2954 = vmatprep.subr.mxu0 0.0
    %2955 = vmatpush1.msra.mxu0 0.0
    %2956 = vmatprep.subr.mxu0 0.0
    %2957 = vmatpush1.msra.mxu0 0.0
    %2958 = vmatprep.subr.mxu0 0.0
    %2959 = vmatpush1.msra.mxu0 0.0
    %2960 = vmatprep.subr.mxu0 0.0
    %2961 = vmatpush1.msra.mxu0 0.0
    %2962 = vmatprep.subr.mxu0 0.0
    %2963 = vmatpush1.msra.mxu0 0.0
    %2964 = vmatprep.subr.mxu0 0.0
    %2965 = vmatpush1.msra.mxu0 0.0
    %2966 = vmatprep.subr.mxu0 0.0
    %2967 = vmatpush1.msra.mxu0 0.0
    %2968 = vmatprep.subr.mxu0 0.0
    %2969 = vmatpush1.msra.mxu0 0.0
    %2970 = vmatprep.subr.mxu0 0.0
    %2971 = vmatpush1.msra.mxu0 0.0
    %2972 = vmatprep.subr.mxu0 0.0
    %2973 = vmatpush1.msra.mxu0 0.0
    %2974 = vmatprep.subr.mxu0 0.0
    %2975 = vmatpush1.msra.mxu0 0.0
    %2976 = vmatprep.subr.mxu0 0.0
    %2977 = vmatpush1.msra.mxu0 0.0
    %2978 = vmatprep.subr.mxu0 0.0
    %2979 = vmatpush1.msra.mxu0 0.0
    %2980 = vmatprep.subr.mxu0 0.0
    %2981 = vmatpush1.msra.mxu0 0.0
    %2982 = vmatprep.subr.mxu0 0.0
    %2983 = vmatpush1.msra.mxu0 0.0
    %2984 = vmatprep.subr.mxu0 0.0
    %2985 = vmatpush1.msra.mxu0 0.0
    %2986 = vmatprep.subr.mxu0 0.0
    %2987 = vmatpush1.msra.mxu0 0.0
    %2988 = vmatprep.subr.mxu0 0.0
    %2989 = vmatpush1.msra.mxu0 0.0
    %2990 = vmatprep.subr.mxu0 0.0
    %2991 = vmatpush1.msra.mxu0 0.0
    %2992 = vmatprep.subr.mxu0 0.0
    %2993 = vmatpush1.msra.mxu0 0.0
    %2994 = vmatprep.subr.mxu0 0.0
    %2995 = vmatpush1.msra.mxu0 0.0
    %2996 = vmatprep.subr.mxu0 0.0
    %2997 = vmatpush1.msra.mxu0 0.0
    %2998 = vmatprep.subr.mxu0 0.0
    %2999 = vmatpush1.msra.mxu0 0.0
    %3000 = vmatprep.subr.mxu0 0.0
    %3001 = vmatpush1.msra.mxu0 0.0
    %3002 = vmatprep.subr.mxu0 0.0
    %3003 = vmatpush1.msra.mxu0 0.0
    %3004 = vmatprep.subr.mxu0 0.0
    %3005 = vmatpush1.msra.mxu0 0.0
    %3006 = vmatprep.subr.mxu0 0.0
    %3007 = vmatpush1.msra.mxu0 0.0
    %3008 = vmatprep.subr.mxu0 0.0
    %3009 = vmatpush1.msra.mxu0 0.0
    %3010 = vmatprep.mubr.f32.mxu0 0.0
    %3011 = vmatmul.mubr.f32.gmra.mrb[0].mxu0 %v2944
    %v3012 = vpop.f32.mrb[0].mxu0
    %v3013 = vadd.f32 0.0, %v3012
    %v3014 = vpop.f32.mrb[0].mxu0
    %3015 = vdwg.mxu0
    %3017 = vrot.lane.b32.xlu0 %v544, 96
    %v3018 = vpop.permute.xlu0 %3017
    %v3021 = vsel %vm634, %v2859, 0
    %3023 = vmatprep.subr.mxu0 0.0
    %3024 = vmatpush1.msra.mxu0 %v3018
    %3025 = vmatprep.subr.mxu0 0.0
    %3026 = vmatpush1.msra.mxu0 0.0
    %3027 = vmatprep.subr.mxu0 0.0
    %3028 = vmatpush1.msra.mxu0 0.0
    %3029 = vmatprep.subr.mxu0 0.0
    %3030 = vmatpush1.msra.mxu0 0.0
    %3031 = vmatprep.subr.mxu0 0.0
    %3032 = vmatpush1.msra.mxu0 0.0
    %3033 = vmatprep.subr.mxu0 0.0
    %3034 = vmatpush1.msra.mxu0 0.0
    %3035 = vmatprep.subr.mxu0 0.0
    %3036 = vmatpush1.msra.mxu0 0.0
    %3037 = vmatprep.subr.mxu0 0.0
    %3038 = vmatpush1.msra.mxu0 0.0
    %3039 = vmatprep.subr.mxu0 0.0
    %3040 = vmatpush1.msra.mxu0 0.0
    %3041 = vmatprep.subr.mxu0 0.0
    %3042 = vmatpush1.msra.mxu0 0.0
    %3043 = vmatprep.subr.mxu0 0.0
    %3044 = vmatpush1.msra.mxu0 0.0
    %3045 = vmatprep.subr.mxu0 0.0
    %3046 = vmatpush1.msra.mxu0 0.0
    %3047 = vmatprep.subr.mxu0 0.0
    %3048 = vmatpush1.msra.mxu0 0.0
    %3049 = vmatprep.subr.mxu0 0.0
    %3050 = vmatpush1.msra.mxu0 0.0
    %3051 = vmatprep.subr.mxu0 0.0
    %3052 = vmatpush1.msra.mxu0 0.0
    %3053 = vmatprep.subr.mxu0 0.0
    %3054 = vmatpush1.msra.mxu0 0.0
    %3055 = vmatprep.subr.mxu0 0.0
    %3056 = vmatpush1.msra.mxu0 0.0
    %3057 = vmatprep.subr.mxu0 0.0
    %3058 = vmatpush1.msra.mxu0 0.0
    %3059 = vmatprep.subr.mxu0 0.0
    %3060 = vmatpush1.msra.mxu0 0.0
    %3061 = vmatprep.subr.mxu0 0.0
    %3062 = vmatpush1.msra.mxu0 0.0
    %3063 = vmatprep.subr.mxu0 0.0
    %3064 = vmatpush1.msra.mxu0 0.0
    %3065 = vmatprep.subr.mxu0 0.0
    %3066 = vmatpush1.msra.mxu0 0.0
    %3067 = vmatprep.subr.mxu0 0.0
    %3068 = vmatpush1.msra.mxu0 0.0
    %3069 = vmatprep.subr.mxu0 0.0
    %3070 = vmatpush1.msra.mxu0 0.0
    %3071 = vmatprep.subr.mxu0 0.0
    %3072 = vmatpush1.msra.mxu0 0.0
    %3073 = vmatprep.subr.mxu0 0.0
    %3074 = vmatpush1.msra.mxu0 0.0
    %3075 = vmatprep.subr.mxu0 0.0
    %3076 = vmatpush1.msra.mxu0 0.0
    %3077 = vmatprep.subr.mxu0 0.0
    %3078 = vmatpush1.msra.mxu0 0.0
    %3079 = vmatprep.subr.mxu0 0.0
    %3080 = vmatpush1.msra.mxu0 0.0
    %3081 = vmatprep.subr.mxu0 0.0
    %3082 = vmatpush1.msra.mxu0 0.0
    %3083 = vmatprep.subr.mxu0 0.0
    %3084 = vmatpush1.msra.mxu0 0.0
    %3085 = vmatprep.subr.mxu0 0.0
    %3086 = vmatpush1.msra.mxu0 0.0
    %3087 = vmatprep.mubr.f32.mxu0 0.0
    %3088 = vmatmul.mubr.f32.gmra.mrb[0].mxu0 %v3021
    %v3089 = vpop.f32.mrb[0].mxu0
    %v3090 = vadd.f32 0.0, %v3089
    %v3091 = vpop.f32.mrb[0].mxu0
    %3092 = vdwg.mxu0
    %3094 = vrot.lane.b32.xlu0 %v546, 96
    %v3095 = vpop.permute.xlu0 %3094
    %v3098 = vsel %vm634, %v2861, 0
    %3100 = vmatprep.subr.mxu0 0.0
    %3101 = vmatpush1.msra.mxu0 %v3095
    %3102 = vmatprep.subr.mxu0 0.0
    %3103 = vmatpush1.msra.mxu0 0.0
    %3104 = vmatprep.subr.mxu0 0.0
    %3105 = vmatpush1.msra.mxu0 0.0
    %3106 = vmatprep.subr.mxu0 0.0
    %3107 = vmatpush1.msra.mxu0 0.0
    %3108 = vmatprep.subr.mxu0 0.0
    %3109 = vmatpush1.msra.mxu0 0.0
    %3110 = vmatprep.subr.mxu0 0.0
    %3111 = vmatpush1.msra.mxu0 0.0
    %3112 = vmatprep.subr.mxu0 0.0
    %3113 = vmatpush1.msra.mxu0 0.0
    %3114 = vmatprep.subr.mxu0 0.0
    %3115 = vmatpush1.msra.mxu0 0.0
    %3116 = vmatprep.subr.mxu0 0.0
    %3117 = vmatpush1.msra.mxu0 0.0
    %3118 = vmatprep.subr.mxu0 0.0
    %3119 = vmatpush1.msra.mxu0 0.0
    %3120 = vmatprep.subr.mxu0 0.0
    %3121 = vmatpush1.msra.mxu0 0.0
    %3122 = vmatprep.subr.mxu0 0.0
    %3123 = vmatpush1.msra.mxu0 0.0
    %3124 = vmatprep.subr.mxu0 0.0
    %3125 = vmatpush1.msra.mxu0 0.0
    %3126 = vmatprep.subr.mxu0 0.0
    %3127 = vmatpush1.msra.mxu0 0.0
    %3128 = vmatprep.subr.mxu0 0.0
    %3129 = vmatpush1.msra.mxu0 0.0
    %3130 = vmatprep.subr.mxu0 0.0
    %3131 = vmatpush1.msra.mxu0 0.0
    %3132 = vmatprep.subr.mxu0 0.0
    %3133 = vmatpush1.msra.mxu0 0.0
    %3134 = vmatprep.subr.mxu0 0.0
    %3135 = vmatpush1.msra.mxu0 0.0
    %3136 = vmatprep.subr.mxu0 0.0
    %3137 = vmatpush1.msra.mxu0 0.0
    %3138 = vmatprep.subr.mxu0 0.0
    %3139 = vmatpush1.msra.mxu0 0.0
    %3140 = vmatprep.subr.mxu0 0.0
    %3141 = vmatpush1.msra.mxu0 0.0
    %3142 = vmatprep.subr.mxu0 0.0
    %3143 = vmatpush1.msra.mxu0 0.0
    %3144 = vmatprep.subr.mxu0 0.0
    %3145 = vmatpush1.msra.mxu0 0.0
    %3146 = vmatprep.subr.mxu0 0.0
    %3147 = vmatpush1.msra.mxu0 0.0
    %3148 = vmatprep.subr.mxu0 0.0
    %3149 = vmatpush1.msra.mxu0 0.0
    %3150 = vmatprep.subr.mxu0 0.0
    %3151 = vmatpush1.msra.mxu0 0.0
    %3152 = vmatprep.subr.mxu0 0.0
    %3153 = vmatpush1.msra.mxu0 0.0
    %3154 = vmatprep.subr.mxu0 0.0
    %3155 = vmatpush1.msra.mxu0 0.0
    %3156 = vmatprep.subr.mxu0 0.0
    %3157 = vmatpush1.msra.mxu0 0.0
    %3158 = vmatprep.subr.mxu0 0.0
    %3159 = vmatpush1.msra.mxu0 0.0
    %3160 = vmatprep.subr.mxu0 0.0
    %3161 = vmatpush1.msra.mxu0 0.0
    %3162 = vmatprep.subr.mxu0 0.0
    %3163 = vmatpush1.msra.mxu0 0.0
    %3164 = vmatprep.mubr.f32.mxu0 0.0
    %3165 = vmatmul.mubr.f32.gmra.mrb[0].mxu0 %v3098
    %v3166 = vpop.f32.mrb[0].mxu0
    %v3167 = vadd.f32 0.0, %v3166
    %v3168 = vpop.f32.mrb[0].mxu0
    %3169 = vdwg.mxu0
    %s3170 = scalar_lea.vmem [#allocation10], 32
    %v3171 = vld [vmem:[%s3170] sm:$0xff]
    %v3172 = vld [vmem:[%s3170 + $0x8] sm:$0xff]
    %v3173 = vld [vmem:[%s3170 + $0x10] sm:$0xff]
    %v3174 = vld [vmem:[%s3170 + $0x18] sm:$0xff]
    %s3175 = scalar_lea.vmem %s7, 1
    %v3176 = vld [vmem:[%s3175] sm:$0x1]
    %v3178 = vsel %vm939, %v2936, 0
    %3180 = vmatprep.subr.mxu0 0.0
    %3181 = vmatpush1.msra.mxu0 %v3171
    %3182 = vmatprep.subr.mxu0 0.0
    %3183 = vmatpush1.msra.mxu0 %v3172
    %3184 = vmatprep.subr.mxu0 0.0
    %3185 = vmatpush1.msra.mxu0 %v3173
    %3186 = vmatprep.subr.mxu0 0.0
    %3187 = vmatpush1.msra.mxu0 %v3174
    %3188 = vmatprep.subr.mxu0 0.0
    %3189 = vmatpush1.msra.mxu0 0.0
    %3190 = vmatprep.subr.mxu0 0.0
    %3191 = vmatpush1.msra.mxu0 0.0
    %3192 = vmatprep.subr.mxu0 0.0
    %3193 = vmatpush1.msra.mxu0 0.0
    %3194 = vmatprep.subr.mxu0 0.0
    %3195 = vmatpush1.msra.mxu0 0.0
    %3196 = vmatprep.subr.mxu0 0.0
    %3197 = vmatpush1.msra.mxu0 0.0
    %3198 = vmatprep.subr.mxu0 0.0
    %3199 = vmatpush1.msra.mxu0 0.0
    %3200 = vmatprep.subr.mxu0 0.0
    %3201 = vmatpush1.msra.mxu0 0.0
    %3202 = vmatprep.subr.mxu0 0.0
    %3203 = vmatpush1.msra.mxu0 0.0
    %3204 = vmatprep.subr.mxu0 0.0
    %3205 = vmatpush1.msra.mxu0 0.0
    %3206 = vmatprep.subr.mxu0 0.0
    %3207 = vmatpush1.msra.mxu0 0.0
    %3208 = vmatprep.subr.mxu0 0.0
    %3209 = vmatpush1.msra.mxu0 0.0
    %3210 = vmatprep.subr.mxu0 0.0
    %3211 = vmatpush1.msra.mxu0 0.0
    %3212 = vmatprep.subr.mxu0 0.0
    %3213 = vmatpush1.msra.mxu0 0.0
    %3214 = vmatprep.subr.mxu0 0.0
    %3215 = vmatpush1.msra.mxu0 0.0
    %3216 = vmatprep.subr.mxu0 0.0
    %3217 = vmatpush1.msra.mxu0 0.0
    %3218 = vmatprep.subr.mxu0 0.0
    %3219 = vmatpush1.msra.mxu0 0.0
    %3220 = vmatprep.subr.mxu0 0.0
    %3221 = vmatpush1.msra.mxu0 0.0
    %3222 = vmatprep.subr.mxu0 0.0
    %3223 = vmatpush1.msra.mxu0 0.0
    %3224 = vmatprep.subr.mxu0 0.0
    %3225 = vmatpush1.msra.mxu0 0.0
    %3226 = vmatprep.subr.mxu0 0.0
    %3227 = vmatpush1.msra.mxu0 0.0
    %3228 = vmatprep.subr.mxu0 0.0
    %3229 = vmatpush1.msra.mxu0 0.0
    %3230 = vmatprep.subr.mxu0 0.0
    %3231 = vmatpush1.msra.mxu0 0.0
    %3232 = vmatprep.subr.mxu0 0.0
    %3233 = vmatpush1.msra.mxu0 0.0
    %3234 = vmatprep.subr.mxu0 0.0
    %3235 = vmatpush1.msra.mxu0 0.0
    %3236 = vmatprep.subr.mxu0 0.0
    %3237 = vmatpush1.msra.mxu0 0.0
    %3238 = vmatprep.subr.mxu0 0.0
    %3239 = vmatpush1.msra.mxu0 0.0
    %3240 = vmatprep.subr.mxu0 0.0
    %3241 = vmatpush1.msra.mxu0 0.0
    %3242 = vmatprep.subr.mxu0 0.0
    %3243 = vmatpush1.msra.mxu0 0.0
    %3244 = vmatprep.mubr.f32.mxu0 0.0
    %3245 = vmatmul.mubr.f32.gmra.mrb[0].mxu0 %v3178
    %v3246 = vpop.f32.mrb[0].mxu0
    %v3247 = vadd.f32 %v3176, %v3246
    %v3248 = vpop.f32.mrb[0].mxu0
    %3249 = vdwg.mxu0
    %v3251 = vsel %vm939, %v3013, 0
    %3253 = vmatprep.subr.mxu0 0.0
    %3254 = vmatpush1.msra.mxu0 %v3171
    %3255 = vmatprep.subr.mxu0 0.0
    %3256 = vmatpush1.msra.mxu0 %v3172
    %3257 = vmatprep.subr.mxu0 0.0
    %3258 = vmatpush1.msra.mxu0 %v3173
    %3259 = vmatprep.subr.mxu0 0.0
    %3260 = vmatpush1.msra.mxu0 %v3174
    %3261 = vmatprep.subr.mxu0 0.0
    %3262 = vmatpush1.msra.mxu0 0.0
    %3263 = vmatprep.subr.mxu0 0.0
    %3264 = vmatpush1.msra.mxu0 0.0
    %3265 = vmatprep.subr.mxu0 0.0
    %3266 = vmatpush1.msra.mxu0 0.0
    %3267 = vmatprep.subr.mxu0 0.0
    %3268 = vmatpush1.msra.mxu0 0.0
    %3269 = vmatprep.subr.mxu0 0.0
    %3270 = vmatpush1.msra.mxu0 0.0
    %3271 = vmatprep.subr.mxu0 0.0
    %3272 = vmatpush1.msra.mxu0 0.0
    %3273 = vmatprep.subr.mxu0 0.0
    %3274 = vmatpush1.msra.mxu0 0.0
    %3275 = vmatprep.subr.mxu0 0.0
    %3276 = vmatpush1.msra.mxu0 0.0
    %3277 = vmatprep.subr.mxu0 0.0
    %3278 = vmatpush1.msra.mxu0 0.0
    %3279 = vmatprep.subr.mxu0 0.0
    %3280 = vmatpush1.msra.mxu0 0.0
    %3281 = vmatprep.subr.mxu0 0.0
    %3282 = vmatpush1.msra.mxu0 0.0
    %3283 = vmatprep.subr.mxu0 0.0
    %3284 = vmatpush1.msra.mxu0 0.0
    %3285 = vmatprep.subr.mxu0 0.0
    %3286 = vmatpush1.msra.mxu0 0.0
    %3287 = vmatprep.subr.mxu0 0.0
    %3288 = vmatpush1.msra.mxu0 0.0
    %3289 = vmatprep.subr.mxu0 0.0
    %3290 = vmatpush1.msra.mxu0 0.0
    %3291 = vmatprep.subr.mxu0 0.0
    %3292 = vmatpush1.msra.mxu0 0.0
    %3293 = vmatprep.subr.mxu0 0.0
    %3294 = vmatpush1.msra.mxu0 0.0
    %3295 = vmatprep.subr.mxu0 0.0
    %3296 = vmatpush1.msra.mxu0 0.0
    %3297 = vmatprep.subr.mxu0 0.0
    %3298 = vmatpush1.msra.mxu0 0.0
    %3299 = vmatprep.subr.mxu0 0.0
    %3300 = vmatpush1.msra.mxu0 0.0
    %3301 = vmatprep.subr.mxu0 0.0
    %3302 = vmatpush1.msra.mxu0 0.0
    %3303 = vmatprep.subr.mxu0 0.0
    %3304 = vmatpush1.msra.mxu0 0.0
    %3305 = vmatprep.subr.mxu0 0.0
    %3306 = vmatpush1.msra.mxu0 0.0
    %3307 = vmatprep.subr.mxu0 0.0
    %3308 = vmatpush1.msra.mxu0 0.0
    %3309 = vmatprep.subr.mxu0 0.0
    %3310 = vmatpush1.msra.mxu0 0.0
    %3311 = vmatprep.subr.mxu0 0.0
    %3312 = vmatpush1.msra.mxu0 0.0
    %3313 = vmatprep.subr.mxu0 0.0
    %3314 = vmatpush1.msra.mxu0 0.0
    %3315 = vmatprep.subr.mxu0 0.0
    %3316 = vmatpush1.msra.mxu0 0.0
    %3317 = vmatprep.mubr.f32.mxu0 0.0
    %3318 = vmatmul.mubr.f32.gmra.mrb[0].mxu0 %v3251
    %v3319 = vpop.f32.mrb[0].mxu0
    %v3320 = vadd.f32 %v3176, %v3319
    %v3321 = vpop.f32.mrb[0].mxu0
    %3322 = vdwg.mxu0
    %v3324 = vsel %vm939, %v3090, 0
    %3326 = vmatprep.subr.mxu0 0.0
    %3327 = vmatpush1.msra.mxu0 %v3171
    %3328 = vmatprep.subr.mxu0 0.0
    %3329 = vmatpush1.msra.mxu0 %v3172
    %3330 = vmatprep.subr.mxu0 0.0
    %3331 = vmatpush1.msra.mxu0 %v3173
    %3332 = vmatprep.subr.mxu0 0.0
    %3333 = vmatpush1.msra.mxu0 %v3174
    %3334 = vmatprep.subr.mxu0 0.0
    %3335 = vmatpush1.msra.mxu0 0.0
    %3336 = vmatprep.subr.mxu0 0.0
    %3337 = vmatpush1.msra.mxu0 0.0
    %3338 = vmatprep.subr.mxu0 0.0
    %3339 = vmatpush1.msra.mxu0 0.0
    %3340 = vmatprep.subr.mxu0 0.0
    %3341 = vmatpush1.msra.mxu0 0.0
    %3342 = vmatprep.subr.mxu0 0.0
    %3343 = vmatpush1.msra.mxu0 0.0
    %3344 = vmatprep.subr.mxu0 0.0
    %3345 = vmatpush1.msra.mxu0 0.0
    %3346 = vmatprep.subr.mxu0 0.0
    %3347 = vmatpush1.msra.mxu0 0.0
    %3348 = vmatprep.subr.mxu0 0.0
    %3349 = vmatpush1.msra.mxu0 0.0
    %3350 = vmatprep.subr.mxu0 0.0
    %3351 = vmatpush1.msra.mxu0 0.0
    %3352 = vmatprep.subr.mxu0 0.0
    %3353 = vmatpush1.msra.mxu0 0.0
    %3354 = vmatprep.subr.mxu0 0.0
    %3355 = vmatpush1.msra.mxu0 0.0
    %3356 = vmatprep.subr.mxu0 0.0
    %3357 = vmatpush1.msra.mxu0 0.0
    %3358 = vmatprep.subr.mxu0 0.0
    %3359 = vmatpush1.msra.mxu0 0.0
    %3360 = vmatprep.subr.mxu0 0.0
    %3361 = vmatpush1.msra.mxu0 0.0
    %3362 = vmatprep.subr.mxu0 0.0
    %3363 = vmatpush1.msra.mxu0 0.0
    %3364 = vmatprep.subr.mxu0 0.0
    %3365 = vmatpush1.msra.mxu0 0.0
    %3366 = vmatprep.subr.mxu0 0.0
    %3367 = vmatpush1.msra.mxu0 0.0
    %3368 = vmatprep.subr.mxu0 0.0
    %3369 = vmatpush1.msra.mxu0 0.0
    %3370 = vmatprep.subr.mxu0 0.0
    %3371 = vmatpush1.msra.mxu0 0.0
    %3372 = vmatprep.subr.mxu0 0.0
    %3373 = vmatpush1.msra.mxu0 0.0
    %3374 = vmatprep.subr.mxu0 0.0
    %3375 = vmatpush1.msra.mxu0 0.0
    %3376 = vmatprep.subr.mxu0 0.0
    %3377 = vmatpush1.msra.mxu0 0.0
    %3378 = vmatprep.subr.mxu0 0.0
    %3379 = vmatpush1.msra.mxu0 0.0
    %3380 = vmatprep.subr.mxu0 0.0
    %3381 = vmatpush1.msra.mxu0 0.0
    %3382 = vmatprep.subr.mxu0 0.0
    %3383 = vmatpush1.msra.mxu0 0.0
    %3384 = vmatprep.subr.mxu0 0.0
    %3385 = vmatpush1.msra.mxu0 0.0
    %3386 = vmatprep.subr.mxu0 0.0
    %3387 = vmatpush1.msra.mxu0 0.0
    %3388 = vmatprep.subr.mxu0 0.0
    %3389 = vmatpush1.msra.mxu0 0.0
    %3390 = vmatprep.mubr.f32.mxu0 0.0
    %3391 = vmatmul.mubr.f32.gmra.mrb[0].mxu0 %v3324
    %v3392 = vpop.f32.mrb[0].mxu0
    %v3393 = vadd.f32 %v3176, %v3392
    %v3394 = vpop.f32.mrb[0].mxu0
    %3395 = vdwg.mxu0
    %v3397 = vsel %vm939, %v3167, 0
    %3399 = vmatprep.subr.mxu0 0.0
    %3400 = vmatpush1.msra.mxu0 %v3171
    %3401 = vmatprep.subr.mxu0 0.0
    %3402 = vmatpush1.msra.mxu0 %v3172
    %3403 = vmatprep.subr.mxu0 0.0
    %3404 = vmatpush1.msra.mxu0 %v3173
    %3405 = vmatprep.subr.mxu0 0.0
    %3406 = vmatpush1.msra.mxu0 %v3174
    %3407 = vmatprep.subr.mxu0 0.0
    %3408 = vmatpush1.msra.mxu0 0.0
    %3409 = vmatprep.subr.mxu0 0.0
    %3410 = vmatpush1.msra.mxu0 0.0
    %3411 = vmatprep.subr.mxu0 0.0
    %3412 = vmatpush1.msra.mxu0 0.0
    %3413 = vmatprep.subr.mxu0 0.0
    %3414 = vmatpush1.msra.mxu0 0.0
    %3415 = vmatprep.subr.mxu0 0.0
    %3416 = vmatpush1.msra.mxu0 0.0
    %3417 = vmatprep.subr.mxu0 0.0
    %3418 = vmatpush1.msra.mxu0 0.0
    %3419 = vmatprep.subr.mxu0 0.0
    %3420 = vmatpush1.msra.mxu0 0.0
    %3421 = vmatprep.subr.mxu0 0.0
    %3422 = vmatpush1.msra.mxu0 0.0
    %3423 = vmatprep.subr.mxu0 0.0
    %3424 = vmatpush1.msra.mxu0 0.0
    %3425 = vmatprep.subr.mxu0 0.0
    %3426 = vmatpush1.msra.mxu0 0.0
    %3427 = vmatprep.subr.mxu0 0.0
    %3428 = vmatpush1.msra.mxu0 0.0
    %3429 = vmatprep.subr.mxu0 0.0
    %3430 = vmatpush1.msra.mxu0 0.0
    %3431 = vmatprep.subr.mxu0 0.0
    %3432 = vmatpush1.msra.mxu0 0.0
    %3433 = vmatprep.subr.mxu0 0.0
    %3434 = vmatpush1.msra.mxu0 0.0
    %3435 = vmatprep.subr.mxu0 0.0
    %3436 = vmatpush1.msra.mxu0 0.0
    %3437 = vmatprep.subr.mxu0 0.0
    %3438 = vmatpush1.msra.mxu0 0.0
    %3439 = vmatprep.subr.mxu0 0.0
    %3440 = vmatpush1.msra.mxu0 0.0
    %3441 = vmatprep.subr.mxu0 0.0
    %3442 = vmatpush1.msra.mxu0 0.0
    %3443 = vmatprep.subr.mxu0 0.0
    %3444 = vmatpush1.msra.mxu0 0.0
    %3445 = vmatprep.subr.mxu0 0.0
    %3446 = vmatpush1.msra.mxu0 0.0
    %3447 = vmatprep.subr.mxu0 0.0
    %3448 = vmatpush1.msra.mxu0 0.0
    %3449 = vmatprep.subr.mxu0 0.0
    %3450 = vmatpush1.msra.mxu0 0.0
    %3451 = vmatprep.subr.mxu0 0.0
    %3452 = vmatpush1.msra.mxu0 0.0
    %3453 = vmatprep.subr.mxu0 0.0
    %3454 = vmatpush1.msra.mxu0 0.0
    %3455 = vmatprep.subr.mxu0 0.0
    %3456 = vmatpush1.msra.mxu0 0.0
    %3457 = vmatprep.subr.mxu0 0.0
    %3458 = vmatpush1.msra.mxu0 0.0
    %3459 = vmatprep.subr.mxu0 0.0
    %3460 = vmatpush1.msra.mxu0 0.0
    %3461 = vmatprep.subr.mxu0 0.0
    %3462 = vmatpush1.msra.mxu0 0.0
    %3463 = vmatprep.mubr.f32.mxu0 0.0
    %3464 = vmatmul.mubr.f32.gmra.mrb[0].mxu0 %v3397
    %v3465 = vpop.f32.mrb[0].mxu0
    %v3466 = vadd.f32 %v3176, %v3465
    %v3467 = vpop.f32.mrb[0].mxu0
    %3468 = vdwg.mxu0
    %vm3469 = vcmp.gt.f32.partialorder %v3247, 0.0
    %vm3470 = vcmp.gt.f32.partialorder %v3320, 0.0
    %vm3471 = vcmp.gt.f32.partialorder %v3393, 0.0
    %vm3472 = vcmp.gt.f32.partialorder %v3466, 0.0
    %v3473 = vmul.f32 %v3247, 0.22916667
    %v3474 = vmul.f32 %v3320, 0.22916667
    %v3475 = vmul.f32 %v3393, 0.22916667
    %v3476 = vmul.f32 %v3466, 0.22916667
    %v3477 = vsel %vm3469, %v3247, %v3473
    %v3478 = vsel %vm3470, %v3320, %v3474
    %v3479 = vsel %vm3471, %v3393, %v3475
    %v3480 = vsel %vm3472, %v3466, %v3476
    %s3481 = scalar_lea.vmem [#allocation11], 32
    %v3482 = vld [vmem:[%s3481] sm:$0xff]
    %v3483 = vld [vmem:[%s3481 + $0x8] sm:$0xff]
    %v3484 = vld [vmem:[%s3481 + $0x10] sm:$0xff]
    %v3485 = vld [vmem:[%s3481 + $0x18] sm:$0xff]
    %v3487 = vsel %vm939, %v3477, 0
    %3489 = vmatprep.subr.mxu0 0.0
    %3490 = vmatpush1.msra.mxu0 %v3482
    %3491 = vmatprep.subr.mxu0 0.0
    %3492 = vmatpush1.msra.mxu0 %v3483
    %3493 = vmatprep.subr.mxu0 0.0
    %3494 = vmatpush1.msra.mxu0 %v3484
    %3495 = vmatprep.subr.mxu0 0.0
    %3496 = vmatpush1.msra.mxu0 %v3485
    %3497 = vmatprep.subr.mxu0 0.0
    %3498 = vmatpush1.msra.mxu0 0.0
    %3499 = vmatprep.subr.mxu0 0.0
    %3500 = vmatpush1.msra.mxu0 0.0
    %3501 = vmatprep.subr.mxu0 0.0
    %3502 = vmatpush1.msra.mxu0 0.0
    %3503 = vmatprep.subr.mxu0 0.0
    %3504 = vmatpush1.msra.mxu0 0.0
    %3505 = vmatprep.subr.mxu0 0.0
    %3506 = vmatpush1.msra.mxu0 0.0
    %3507 = vmatprep.subr.mxu0 0.0
    %3508 = vmatpush1.msra.mxu0 0.0
    %3509 = vmatprep.subr.mxu0 0.0
    %3510 = vmatpush1.msra.mxu0 0.0
    %3511 = vmatprep.subr.mxu0 0.0
    %3512 = vmatpush1.msra.mxu0 0.0
    %3513 = vmatprep.subr.mxu0 0.0
    %3514 = vmatpush1.msra.mxu0 0.0
    %3515 = vmatprep.subr.mxu0 0.0
    %3516 = vmatpush1.msra.mxu0 0.0
    %3517 = vmatprep.subr.mxu0 0.0
    %3518 = vmatpush1.msra.mxu0 0.0
    %3519 = vmatprep.subr.mxu0 0.0
    %3520 = vmatpush1.msra.mxu0 0.0
    %3521 = vmatprep.subr.mxu0 0.0
    %3522 = vmatpush1.msra.mxu0 0.0
    %3523 = vmatprep.subr.mxu0 0.0
    %3524 = vmatpush1.msra.mxu0 0.0
    %3525 = vmatprep.subr.mxu0 0.0
    %3526 = vmatpush1.msra.mxu0 0.0
    %3527 = vmatprep.subr.mxu0 0.0
    %3528 = vmatpush1.msra.mxu0 0.0
    %3529 = vmatprep.subr.mxu0 0.0
    %3530 = vmatpush1.msra.mxu0 0.0
    %3531 = vmatprep.subr.mxu0 0.0
    %3532 = vmatpush1.msra.mxu0 0.0
    %3533 = vmatprep.subr.mxu0 0.0
    %3534 = vmatpush1.msra.mxu0 0.0
    %3535 = vmatprep.subr.mxu0 0.0
    %3536 = vmatpush1.msra.mxu0 0.0
    %3537 = vmatprep.subr.mxu0 0.0
    %3538 = vmatpush1.msra.mxu0 0.0
    %3539 = vmatprep.subr.mxu0 0.0
    %3540 = vmatpush1.msra.mxu0 0.0
    %3541 = vmatprep.subr.mxu0 0.0
    %3542 = vmatpush1.msra.mxu0 0.0
    %3543 = vmatprep.subr.mxu0 0.0
    %3544 = vmatpush1.msra.mxu0 0.0
    %3545 = vmatprep.subr.mxu0 0.0
    %3546 = vmatpush1.msra.mxu0 0.0
    %3547 = vmatprep.subr.mxu0 0.0
    %3548 = vmatpush1.msra.mxu0 0.0
    %3549 = vmatprep.subr.mxu0 0.0
    %3550 = vmatpush1.msra.mxu0 0.0
    %3551 = vmatprep.subr.mxu0 0.0
    %3552 = vmatpush1.msra.mxu0 0.0
    %3553 = vmatprep.mubr.f32.mxu0 0.0
    %3554 = vmatmul.mubr.f32.gmra.mrb[0].mxu0 %v3487
    %v3555 = vpop.f32.mrb[0].mxu0
    %v3556 = vadd.f32 0.0, %v3555
    %v3557 = vpop.f32.mrb[0].mxu0
    %3558 = vdwg.mxu0
    %v3560 = vsel %vm939, %v3478, 0
    %3562 = vmatprep.subr.mxu0 0.0
    %3563 = vmatpush1.msra.mxu0 %v3482
    %3564 = vmatprep.subr.mxu0 0.0
    %3565 = vmatpush1.msra.mxu0 %v3483
    %3566 = vmatprep.subr.mxu0 0.0
    %3567 = vmatpush1.msra.mxu0 %v3484
    %3568 = vmatprep.subr.mxu0 0.0
    %3569 = vmatpush1.msra.mxu0 %v3485
    %3570 = vmatprep.subr.mxu0 0.0
    %3571 = vmatpush1.msra.mxu0 0.0
    %3572 = vmatprep.subr.mxu0 0.0
    %3573 = vmatpush1.msra.mxu0 0.0
    %3574 = vmatprep.subr.mxu0 0.0
    %3575 = vmatpush1.msra.mxu0 0.0
    %3576 = vmatprep.subr.mxu0 0.0
    %3577 = vmatpush1.msra.mxu0 0.0
    %3578 = vmatprep.subr.mxu0 0.0
    %3579 = vmatpush1.msra.mxu0 0.0
    %3580 = vmatprep.subr.mxu0 0.0
    %3581 = vmatpush1.msra.mxu0 0.0
    %3582 = vmatprep.subr.mxu0 0.0
    %3583 = vmatpush1.msra.mxu0 0.0
    %3584 = vmatprep.subr.mxu0 0.0
    %3585 = vmatpush1.msra.mxu0 0.0
    %3586 = vmatprep.subr.mxu0 0.0
    %3587 = vmatpush1.msra.mxu0 0.0
    %3588 = vmatprep.subr.mxu0 0.0
    %3589 = vmatpush1.msra.mxu0 0.0
    %3590 = vmatprep.subr.mxu0 0.0
    %3591 = vmatpush1.msra.mxu0 0.0
    %3592 = vmatprep.subr.mxu0 0.0
    %3593 = vmatpush1.msra.mxu0 0.0
    %3594 = vmatprep.subr.mxu0 0.0
    %3595 = vmatpush1.msra.mxu0 0.0
    %3596 = vmatprep.subr.mxu0 0.0
    %3597 = vmatpush1.msra.mxu0 0.0
    %3598 = vmatprep.subr.mxu0 0.0
    %3599 = vmatpush1.msra.mxu0 0.0
    %3600 = vmatprep.subr.mxu0 0.0
    %3601 = vmatpush1.msra.mxu0 0.0
    %3602 = vmatprep.subr.mxu0 0.0
    %3603 = vmatpush1.msra.mxu0 0.0
    %3604 = vmatprep.subr.mxu0 0.0
    %3605 = vmatpush1.msra.mxu0 0.0
    %3606 = vmatprep.subr.mxu0 0.0
    %3607 = vmatpush1.msra.mxu0 0.0
    %3608 = vmatprep.subr.mxu0 0.0
    %3609 = vmatpush1.msra.mxu0 0.0
    %3610 = vmatprep.subr.mxu0 0.0
    %3611 = vmatpush1.msra.mxu0 0.0
    %3612 = vmatprep.subr.mxu0 0.0
    %3613 = vmatpush1.msra.mxu0 0.0
    %3614 = vmatprep.subr.mxu0 0.0
    %3615 = vmatpush1.msra.mxu0 0.0
    %3616 = vmatprep.subr.mxu0 0.0
    %3617 = vmatpush1.msra.mxu0 0.0
    %3618 = vmatprep.subr.mxu0 0.0
    %3619 = vmatpush1.msra.mxu0 0.0
    %3620 = vmatprep.subr.mxu0 0.0
    %3621 = vmatpush1.msra.mxu0 0.0
    %3622 = vmatprep.subr.mxu0 0.0
    %3623 = vmatpush1.msra.mxu0 0.0
    %3624 = vmatprep.subr.mxu0 0.0
    %3625 = vmatpush1.msra.mxu0 0.0
    %3626 = vmatprep.mubr.f32.mxu0 0.0
    %3627 = vmatmul.mubr.f32.gmra.mrb[0].mxu0 %v3560
    %v3628 = vpop.f32.mrb[0].mxu0
    %v3629 = vadd.f32 0.0, %v3628
    %v3630 = vpop.f32.mrb[0].mxu0
    %3631 = vdwg.mxu0
    %v3633 = vsel %vm939, %v3479, 0
    %3635 = vmatprep.subr.mxu0 0.0
    %3636 = vmatpush1.msra.mxu0 %v3482
    %3637 = vmatprep.subr.mxu0 0.0
    %3638 = vmatpush1.msra.mxu0 %v3483
    %3639 = vmatprep.subr.mxu0 0.0
    %3640 = vmatpush1.msra.mxu0 %v3484
    %3641 = vmatprep.subr.mxu0 0.0
    %3642 = vmatpush1.msra.mxu0 %v3485
    %3643 = vmatprep.subr.mxu0 0.0
    %3644 = vmatpush1.msra.mxu0 0.0
    %3645 = vmatprep.subr.mxu0 0.0
    %3646 = vmatpush1.msra.mxu0 0.0
    %3647 = vmatprep.subr.mxu0 0.0
    %3648 = vmatpush1.msra.mxu0 0.0
    %3649 = vmatprep.subr.mxu0 0.0
    %3650 = vmatpush1.msra.mxu0 0.0
    %3651 = vmatprep.subr.mxu0 0.0
    %3652 = vmatpush1.msra.mxu0 0.0
    %3653 = vmatprep.subr.mxu0 0.0
    %3654 = vmatpush1.msra.mxu0 0.0
    %3655 = vmatprep.subr.mxu0 0.0
    %3656 = vmatpush1.msra.mxu0 0.0
    %3657 = vmatprep.subr.mxu0 0.0
    %3658 = vmatpush1.msra.mxu0 0.0
    %3659 = vmatprep.subr.mxu0 0.0
    %3660 = vmatpush1.msra.mxu0 0.0
    %3661 = vmatprep.subr.mxu0 0.0
    %3662 = vmatpush1.msra.mxu0 0.0
    %3663 = vmatprep.subr.mxu0 0.0
    %3664 = vmatpush1.msra.mxu0 0.0
    %3665 = vmatprep.subr.mxu0 0.0
    %3666 = vmatpush1.msra.mxu0 0.0
    %3667 = vmatprep.subr.mxu0 0.0
    %3668 = vmatpush1.msra.mxu0 0.0
    %3669 = vmatprep.subr.mxu0 0.0
    %3670 = vmatpush1.msra.mxu0 0.0
    %3671 = vmatprep.subr.mxu0 0.0
    %3672 = vmatpush1.msra.mxu0 0.0
    %3673 = vmatprep.subr.mxu0 0.0
    %3674 = vmatpush1.msra.mxu0 0.0
    %3675 = vmatprep.subr.mxu0 0.0
    %3676 = vmatpush1.msra.mxu0 0.0
    %3677 = vmatprep.subr.mxu0 0.0
    %3678 = vmatpush1.msra.mxu0 0.0
    %3679 = vmatprep.subr.mxu0 0.0
    %3680 = vmatpush1.msra.mxu0 0.0
    %3681 = vmatprep.subr.mxu0 0.0
    %3682 = vmatpush1.msra.mxu0 0.0
    %3683 = vmatprep.subr.mxu0 0.0
    %3684 = vmatpush1.msra.mxu0 0.0
    %3685 = vmatprep.subr.mxu0 0.0
    %3686 = vmatpush1.msra.mxu0 0.0
    %3687 = vmatprep.subr.mxu0 0.0
    %3688 = vmatpush1.msra.mxu0 0.0
    %3689 = vmatprep.subr.mxu0 0.0
    %3690 = vmatpush1.msra.mxu0 0.0
    %3691 = vmatprep.subr.mxu0 0.0
    %3692 = vmatpush1.msra.mxu0 0.0
    %3693 = vmatprep.subr.mxu0 0.0
    %3694 = vmatpush1.msra.mxu0 0.0
    %3695 = vmatprep.subr.mxu0 0.0
    %3696 = vmatpush1.msra.mxu0 0.0
    %3697 = vmatprep.subr.mxu0 0.0
    %3698 = vmatpush1.msra.mxu0 0.0
    %3699 = vmatprep.mubr.f32.mxu0 0.0
    %3700 = vmatmul.mubr.f32.gmra.mrb[0].mxu0 %v3633
    %v3701 = vpop.f32.mrb[0].mxu0
    %v3702 = vadd.f32 0.0, %v3701
    %v3703 = vpop.f32.mrb[0].mxu0
    %3704 = vdwg.mxu0
    %v3706 = vsel %vm939, %v3480, 0
    %3708 = vmatprep.subr.mxu0 0.0
    %3709 = vmatpush1.msra.mxu0 %v3482
    %3710 = vmatprep.subr.mxu0 0.0
    %3711 = vmatpush1.msra.mxu0 %v3483
    %3712 = vmatprep.subr.mxu0 0.0
    %3713 = vmatpush1.msra.mxu0 %v3484
    %3714 = vmatprep.subr.mxu0 0.0
    %3715 = vmatpush1.msra.mxu0 %v3485
    %3716 = vmatprep.subr.mxu0 0.0
    %3717 = vmatpush1.msra.mxu0 0.0
    %3718 = vmatprep.subr.mxu0 0.0
    %3719 = vmatpush1.msra.mxu0 0.0
    %3720 = vmatprep.subr.mxu0 0.0
    %3721 = vmatpush1.msra.mxu0 0.0
    %3722 = vmatprep.subr.mxu0 0.0
    %3723 = vmatpush1.msra.mxu0 0.0
    %3724 = vmatprep.subr.mxu0 0.0
    %3725 = vmatpush1.msra.mxu0 0.0
    %3726 = vmatprep.subr.mxu0 0.0
    %3727 = vmatpush1.msra.mxu0 0.0
    %3728 = vmatprep.subr.mxu0 0.0
    %3729 = vmatpush1.msra.mxu0 0.0
    %3730 = vmatprep.subr.mxu0 0.0
    %3731 = vmatpush1.msra.mxu0 0.0
    %3732 = vmatprep.subr.mxu0 0.0
    %3733 = vmatpush1.msra.mxu0 0.0
    %3734 = vmatprep.subr.mxu0 0.0
    %3735 = vmatpush1.msra.mxu0 0.0
    %3736 = vmatprep.subr.mxu0 0.0
    %3737 = vmatpush1.msra.mxu0 0.0
    %3738 = vmatprep.subr.mxu0 0.0
    %3739 = vmatpush1.msra.mxu0 0.0
    %3740 = vmatprep.subr.mxu0 0.0
    %3741 = vmatpush1.msra.mxu0 0.0
    %3742 = vmatprep.subr.mxu0 0.0
    %3743 = vmatpush1.msra.mxu0 0.0
    %3744 = vmatprep.subr.mxu0 0.0
    %3745 = vmatpush1.msra.mxu0 0.0
    %3746 = vmatprep.subr.mxu0 0.0
    %3747 = vmatpush1.msra.mxu0 0.0
    %3748 = vmatprep.subr.mxu0 0.0
    %3749 = vmatpush1.msra.mxu0 0.0
    %3750 = vmatprep.subr.mxu0 0.0
    %3751 = vmatpush1.msra.mxu0 0.0
    %3752 = vmatprep.subr.mxu0 0.0
    %3753 = vmatpush1.msra.mxu0 0.0
    %3754 = vmatprep.subr.mxu0 0.0
    %3755 = vmatpush1.msra.mxu0 0.0
    %3756 = vmatprep.subr.mxu0 0.0
    %3757 = vmatpush1.msra.mxu0 0.0
    %3758 = vmatprep.subr.mxu0 0.0
    %3759 = vmatpush1.msra.mxu0 0.0
    %3760 = vmatprep.subr.mxu0 0.0
    %3761 = vmatpush1.msra.mxu0 0.0
    %3762 = vmatprep.subr.mxu0 0.0
    %3763 = vmatpush1.msra.mxu0 0.0
    %3764 = vmatprep.subr.mxu0 0.0
    %3765 = vmatpush1.msra.mxu0 0.0
    %3766 = vmatprep.subr.mxu0 0.0
    %3767 = vmatpush1.msra.mxu0 0.0
    %3768 = vmatprep.subr.mxu0 0.0
    %3769 = vmatpush1.msra.mxu0 0.0
    %3770 = vmatprep.subr.mxu0 0.0
    %3771 = vmatpush1.msra.mxu0 0.0
    %3772 = vmatprep.mubr.f32.mxu0 0.0
    %3773 = vmatmul.mubr.f32.gmra.mrb[0].mxu0 %v3706
    %v3774 = vpop.f32.mrb[0].mxu0
    %v3775 = vadd.f32 0.0, %v3774
    %v3776 = vpop.f32.mrb[0].mxu0
    %3777 = vdwg.mxu0
    %v3778 = vadd.f32 %v2214, %v3556
    %v3779 = vadd.f32 %v2215, %v3629
    %v3780 = vadd.f32 %v2216, %v3702
    %v3781 = vadd.f32 %v2217, %v3775
    %3782 = vmatprep.subr.mxu0 0.0
    %3783 = vmatpush1.msra.mxu0 %v130
    %3784 = vmatprep.subr.mxu0 0.0
    %3785 = vmatpush1.msra.mxu0 0.0
    %3786 = vmatprep.subr.mxu0 0.0
    %3787 = vmatpush1.msra.mxu0 0.0
    %3788 = vmatprep.subr.mxu0 0.0
    %3789 = vmatpush1.msra.mxu0 0.0
    %3790 = vmatprep.subr.mxu0 0.0
    %3791 = vmatpush1.msra.mxu0 0.0
    %3792 = vmatprep.subr.mxu0 0.0
    %3793 = vmatpush1.msra.mxu0 0.0
    %3794 = vmatprep.subr.mxu0 0.0
    %3795 = vmatpush1.msra.mxu0 0.0
    %3796 = vmatprep.subr.mxu0 0.0
    %3797 = vmatpush1.msra.mxu0 0.0
    %3798 = vmatprep.subr.mxu0 0.0
    %3799 = vmatpush1.msra.mxu0 0.0
    %3800 = vmatprep.subr.mxu0 0.0
    %3801 = vmatpush1.msra.mxu0 0.0
    %3802 = vmatprep.subr.mxu0 0.0
    %3803 = vmatpush1.msra.mxu0 0.0
    %3804 = vmatprep.subr.mxu0 0.0
    %3805 = vmatpush1.msra.mxu0 0.0
    %3806 = vmatprep.subr.mxu0 0.0
    %3807 = vmatpush1.msra.mxu0 0.0
    %3808 = vmatprep.subr.mxu0 0.0
    %3809 = vmatpush1.msra.mxu0 0.0
    %3810 = vmatprep.subr.mxu0 0.0
    %3811 = vmatpush1.msra.mxu0 0.0
    %3812 = vmatprep.subr.mxu0 0.0
    %3813 = vmatpush1.msra.mxu0 0.0
    %3814 = vmatprep.subr.mxu0 0.0
    %3815 = vmatpush1.msra.mxu0 0.0
    %3816 = vmatprep.subr.mxu0 0.0
    %3817 = vmatpush1.msra.mxu0 0.0
    %3818 = vmatprep.subr.mxu0 0.0
    %3819 = vmatpush1.msra.mxu0 0.0
    %3820 = vmatprep.subr.mxu0 0.0
    %3821 = vmatpush1.msra.mxu0 0.0
    %3822 = vmatprep.subr.mxu0 0.0
    %3823 = vmatpush1.msra.mxu0 0.0
    %3824 = vmatprep.subr.mxu0 0.0
    %3825 = vmatpush1.msra.mxu0 0.0
    %3826 = vmatprep.subr.mxu0 0.0
    %3827 = vmatpush1.msra.mxu0 0.0
    %3828 = vmatprep.subr.mxu0 0.0
    %3829 = vmatpush1.msra.mxu0 0.0
    %3830 = vmatprep.subr.mxu0 0.0
    %3831 = vmatpush1.msra.mxu0 0.0
    %3832 = vmatprep.subr.mxu0 0.0
    %3833 = vmatpush1.msra.mxu0 0.0
    %3834 = vmatprep.subr.mxu0 0.0
    %3835 = vmatpush1.msra.mxu0 0.0
    %3836 = vmatprep.subr.mxu0 0.0
    %3837 = vmatpush1.msra.mxu0 0.0
    %3838 = vmatprep.subr.mxu0 0.0
    %3839 = vmatpush1.msra.mxu0 0.0
    %3840 = vmatprep.subr.mxu0 0.0
    %3841 = vmatpush1.msra.mxu0 0.0
    %3842 = vmatprep.subr.mxu0 0.0
    %3843 = vmatpush1.msra.mxu0 0.0
    %3844 = vmatprep.subr.mxu0 0.0
    %3845 = vmatpush1.msra.mxu0 0.0
    %3846 = vmatprep.mubr.f32.mxu0 0.0
    %3847 = vmatmul.mubr.f32.gmra.mrb[0].mxu0 %v636
    %v3848 = vpop.f32.mrb[0].mxu0
    %v3849 = vadd.f32 0.0, %v3848
    %v3850 = vpop.f32.mrb[0].mxu0
    %3851 = vdwg.mxu0
    %3852 = vmatprep.subr.mxu0 0.0
    %3853 = vmatpush1.msra.mxu0 %v131
    %3854 = vmatprep.subr.mxu0 0.0
    %3855 = vmatpush1.msra.mxu0 0.0
    %3856 = vmatprep.subr.mxu0 0.0
    %3857 = vmatpush1.msra.mxu0 0.0
    %3858 = vmatprep.subr.mxu0 0.0
    %3859 = vmatpush1.msra.mxu0 0.0
    %3860 = vmatprep.subr.mxu0 0.0
    %3861 = vmatpush1.msra.mxu0 0.0
    %3862 = vmatprep.subr.mxu0 0.0
    %3863 = vmatpush1.msra.mxu0 0.0
    %3864 = vmatprep.subr.mxu0 0.0
    %3865 = vmatpush1.msra.mxu0 0.0
    %3866 = vmatprep.subr.mxu0 0.0
    %3867 = vmatpush1.msra.mxu0 0.0
    %3868 = vmatprep.subr.mxu0 0.0
    %3869 = vmatpush1.msra.mxu0 0.0
    %3870 = vmatprep.subr.mxu0 0.0
    %3871 = vmatpush1.msra.mxu0 0.0
    %3872 = vmatprep.subr.mxu0 0.0
    %3873 = vmatpush1.msra.mxu0 0.0
    %3874 = vmatprep.subr.mxu0 0.0
    %3875 = vmatpush1.msra.mxu0 0.0
    %3876 = vmatprep.subr.mxu0 0.0
    %3877 = vmatpush1.msra.mxu0 0.0
    %3878 = vmatprep.subr.mxu0 0.0
    %3879 = vmatpush1.msra.mxu0 0.0
    %3880 = vmatprep.subr.mxu0 0.0
    %3881 = vmatpush1.msra.mxu0 0.0
    %3882 = vmatprep.subr.mxu0 0.0
    %3883 = vmatpush1.msra.mxu0 0.0
    %3884 = vmatprep.subr.mxu0 0.0
    %3885 = vmatpush1.msra.mxu0 0.0
    %3886 = vmatprep.subr.mxu0 0.0
    %3887 = vmatpush1.msra.mxu0 0.0
    %3888 = vmatprep.subr.mxu0 0.0
    %3889 = vmatpush1.msra.mxu0 0.0
    %3890 = vmatprep.subr.mxu0 0.0
    %3891 = vmatpush1.msra.mxu0 0.0
    %3892 = vmatprep.subr.mxu0 0.0
    %3893 = vmatpush1.msra.mxu0 0.0
    %3894 = vmatprep.subr.mxu0 0.0
    %3895 = vmatpush1.msra.mxu0 0.0
    %3896 = vmatprep.subr.mxu0 0.0
    %3897 = vmatpush1.msra.mxu0 0.0
    %3898 = vmatprep.subr.mxu0 0.0
    %3899 = vmatpush1.msra.mxu0 0.0
    %3900 = vmatprep.subr.mxu0 0.0
    %3901 = vmatpush1.msra.mxu0 0.0
    %3902 = vmatprep.subr.mxu0 0.0
    %3903 = vmatpush1.msra.mxu0 0.0
    %3904 = vmatprep.subr.mxu0 0.0
    %3905 = vmatpush1.msra.mxu0 0.0
    %3906 = vmatprep.subr.mxu0 0.0
    %3907 = vmatpush1.msra.mxu0 0.0
    %3908 = vmatprep.subr.mxu0 0.0
    %3909 = vmatpush1.msra.mxu0 0.0
    %3910 = vmatprep.subr.mxu0 0.0
    %3911 = vmatpush1.msra.mxu0 0.0
    %3912 = vmatprep.subr.mxu0 0.0
    %3913 = vmatpush1.msra.mxu0 0.0
    %3914 = vmatprep.subr.mxu0 0.0
    %3915 = vmatpush1.msra.mxu0 0.0
    %3916 = vmatprep.mubr.f32.mxu0 0.0
    %3917 = vmatmul.mubr.f32.gmra.mrb[0].mxu0 %v713
    %v3918 = vpop.f32.mrb[0].mxu0
    %v3919 = vadd.f32 0.0, %v3918
    %v3920 = vpop.f32.mrb[0].mxu0
    %3921 = vdwg.mxu0
    %3922 = vmatprep.subr.mxu0 0.0
    %3923 = vmatpush1.msra.mxu0 %v132
    %3924 = vmatprep.subr.mxu0 0.0
    %3925 = vmatpush1.msra.mxu0 0.0
    %3926 = vmatprep.subr.mxu0 0.0
    %3927 = vmatpush1.msra.mxu0 0.0
    %3928 = vmatprep.subr.mxu0 0.0
    %3929 = vmatpush1.msra.mxu0 0.0
    %3930 = vmatprep.subr.mxu0 0.0
    %3931 = vmatpush1.msra.mxu0 0.0
    %3932 = vmatprep.subr.mxu0 0.0
    %3933 = vmatpush1.msra.mxu0 0.0
    %3934 = vmatprep.subr.mxu0 0.0
    %3935 = vmatpush1.msra.mxu0 0.0
    %3936 = vmatprep.subr.mxu0 0.0
    %3937 = vmatpush1.msra.mxu0 0.0
    %3938 = vmatprep.subr.mxu0 0.0
    %3939 = vmatpush1.msra.mxu0 0.0
    %3940 = vmatprep.subr.mxu0 0.0
    %3941 = vmatpush1.msra.mxu0 0.0
    %3942 = vmatprep.subr.mxu0 0.0
    %3943 = vmatpush1.msra.mxu0 0.0
    %3944 = vmatprep.subr.mxu0 0.0
    %3945 = vmatpush1.msra.mxu0 0.0
    %3946 = vmatprep.subr.mxu0 0.0
    %3947 = vmatpush1.msra.mxu0 0.0
    %3948 = vmatprep.subr.mxu0 0.0
    %3949 = vmatpush1.msra.mxu0 0.0
    %3950 = vmatprep.subr.mxu0 0.0
    %3951 = vmatpush1.msra.mxu0 0.0
    %3952 = vmatprep.subr.mxu0 0.0
    %3953 = vmatpush1.msra.mxu0 0.0
    %3954 = vmatprep.subr.mxu0 0.0
    %3955 = vmatpush1.msra.mxu0 0.0
    %3956 = vmatprep.subr.mxu0 0.0
    %3957 = vmatpush1.msra.mxu0 0.0
    %3958 = vmatprep.subr.mxu0 0.0
    %3959 = vmatpush1.msra.mxu0 0.0
    %3960 = vmatprep.subr.mxu0 0.0
    %3961 = vmatpush1.msra.mxu0 0.0
    %3962 = vmatprep.subr.mxu0 0.0
    %3963 = vmatpush1.msra.mxu0 0.0
    %3964 = vmatprep.subr.mxu0 0.0
    %3965 = vmatpush1.msra.mxu0 0.0
    %3966 = vmatprep.subr.mxu0 0.0
    %3967 = vmatpush1.msra.mxu0 0.0
    %3968 = vmatprep.subr.mxu0 0.0
    %3969 = vmatpush1.msra.mxu0 0.0
    %3970 = vmatprep.subr.mxu0 0.0
    %3971 = vmatpush1.msra.mxu0 0.0
    %3972 = vmatprep.subr.mxu0 0.0
    %3973 = vmatpush1.msra.mxu0 0.0
    %3974 = vmatprep.subr.mxu0 0.0
    %3975 = vmatpush1.msra.mxu0 0.0
    %3976 = vmatprep.subr.mxu0 0.0
    %3977 = vmatpush1.msra.mxu0 0.0
    %3978 = vmatprep.subr.mxu0 0.0
    %3979 = vmatpush1.msra.mxu0 0.0
    %3980 = vmatprep.subr.mxu0 0.0
    %3981 = vmatpush1.msra.mxu0 0.0
    %3982 = vmatprep.subr.mxu0 0.0
    %3983 = vmatpush1.msra.mxu0 0.0
    %3984 = vmatprep.subr.mxu0 0.0
    %3985 = vmatpush1.msra.mxu0 0.0
    %3986 = vmatprep.mubr.f32.mxu0 0.0
    %3987 = vmatmul.mubr.f32.gmra.mrb[0].mxu0 %v790
    %v3988 = vpop.f32.mrb[0].mxu0
    %v3989 = vadd.f32 0.0, %v3988
    %v3990 = vpop.f32.mrb[0].mxu0
    %3991 = vdwg.mxu0
    %3992 = vmatprep.subr.mxu0 0.0
    %3993 = vmatpush1.msra.mxu0 %v133
    %3994 = vmatprep.subr.mxu0 0.0
    %3995 = vmatpush1.msra.mxu0 0.0
    %3996 = vmatprep.subr.mxu0 0.0
    %3997 = vmatpush1.msra.mxu0 0.0
    %3998 = vmatprep.subr.mxu0 0.0
    %3999 = vmatpush1.msra.mxu0 0.0
    %4000 = vmatprep.subr.mxu0 0.0
    %4001 = vmatpush1.msra.mxu0 0.0
    %4002 = vmatprep.subr.mxu0 0.0
    %4003 = vmatpush1.msra.mxu0 0.0
    %4004 = vmatprep.subr.mxu0 0.0
    %4005 = vmatpush1.msra.mxu0 0.0
    %4006 = vmatprep.subr.mxu0 0.0
    %4007 = vmatpush1.msra.mxu0 0.0
    %4008 = vmatprep.subr.mxu0 0.0
    %4009 = vmatpush1.msra.mxu0 0.0
    %4010 = vmatprep.subr.mxu0 0.0
    %4011 = vmatpush1.msra.mxu0 0.0
    %4012 = vmatprep.subr.mxu0 0.0
    %4013 = vmatpush1.msra.mxu0 0.0
    %4014 = vmatprep.subr.mxu0 0.0
    %4015 = vmatpush1.msra.mxu0 0.0
    %4016 = vmatprep.subr.mxu0 0.0
    %4017 = vmatpush1.msra.mxu0 0.0
    %4018 = vmatprep.subr.mxu0 0.0
    %4019 = vmatpush1.msra.mxu0 0.0
    %4020 = vmatprep.subr.mxu0 0.0
    %4021 = vmatpush1.msra.mxu0 0.0
    %4022 = vmatprep.subr.mxu0 0.0
    %4023 = vmatpush1.msra.mxu0 0.0
    %4024 = vmatprep.subr.mxu0 0.0
    %4025 = vmatpush1.msra.mxu0 0.0
    %4026 = vmatprep.subr.mxu0 0.0
    %4027 = vmatpush1.msra.mxu0 0.0
    %4028 = vmatprep.subr.mxu0 0.0
    %4029 = vmatpush1.msra.mxu0 0.0
    %4030 = vmatprep.subr.mxu0 0.0
    %4031 = vmatpush1.msra.mxu0 0.0
    %4032 = vmatprep.subr.mxu0 0.0
    %4033 = vmatpush1.msra.mxu0 0.0
    %4034 = vmatprep.subr.mxu0 0.0
    %4035 = vmatpush1.msra.mxu0 0.0
    %4036 = vmatprep.subr.mxu0 0.0
    %4037 = vmatpush1.msra.mxu0 0.0
    %4038 = vmatprep.subr.mxu0 0.0
    %4039 = vmatpush1.msra.mxu0 0.0
    %4040 = vmatprep.subr.mxu0 0.0
    %4041 = vmatpush1.msra.mxu0 0.0
    %4042 = vmatprep.subr.mxu0 0.0
    %4043 = vmatpush1.msra.mxu0 0.0
    %4044 = vmatprep.subr.mxu0 0.0
    %4045 = vmatpush1.msra.mxu0 0.0
    %4046 = vmatprep.subr.mxu0 0.0
    %4047 = vmatpush1.msra.mxu0 0.0
    %4048 = vmatprep.subr.mxu0 0.0
    %4049 = vmatpush1.msra.mxu0 0.0
    %4050 = vmatprep.subr.mxu0 0.0
    %4051 = vmatpush1.msra.mxu0 0.0
    %4052 = vmatprep.subr.mxu0 0.0
    %4053 = vmatpush1.msra.mxu0 0.0
    %4054 = vmatprep.subr.mxu0 0.0
    %4055 = vmatpush1.msra.mxu0 0.0
    %4056 = vmatprep.mubr.f32.mxu0 0.0
    %4057 = vmatmul.mubr.f32.gmra.mrb[0].mxu0 %v867
    %v4058 = vpop.f32.mrb[0].mxu0
    %v4059 = vadd.f32 0.0, %v4058
    %v4060 = vpop.f32.mrb[0].mxu0
    %4061 = vdwg.mxu0
    %v4062 = vld [vmem:[%s9] sm:$0xff]
    %v4063 = vld [vmem:[%s9 + $0x8] sm:$0xff]
    %v4065 = vsel %vm150, %v3849, 0
    %4067 = vmatprep.subr.mxu0 0.0
    %4068 = vmatpush1.msra.mxu0 %v4062
    %4069 = vmatprep.subr.mxu0 0.0
    %4070 = vmatpush1.msra.mxu0 %v4063
    %4071 = vmatprep.subr.mxu0 0.0
    %4072 = vmatpush1.msra.mxu0 0.0
    %4073 = vmatprep.subr.mxu0 0.0
    %4074 = vmatpush1.msra.mxu0 0.0
    %4075 = vmatprep.subr.mxu0 0.0
    %4076 = vmatpush1.msra.mxu0 0.0
    %4077 = vmatprep.subr.mxu0 0.0
    %4078 = vmatpush1.msra.mxu0 0.0
    %4079 = vmatprep.subr.mxu0 0.0
    %4080 = vmatpush1.msra.mxu0 0.0
    %4081 = vmatprep.subr.mxu0 0.0
    %4082 = vmatpush1.msra.mxu0 0.0
    %4083 = vmatprep.subr.mxu0 0.0
    %4084 = vmatpush1.msra.mxu0 0.0
    %4085 = vmatprep.subr.mxu0 0.0
    %4086 = vmatpush1.msra.mxu0 0.0
    %4087 = vmatprep.subr.mxu0 0.0
    %4088 = vmatpush1.msra.mxu0 0.0
    %4089 = vmatprep.subr.mxu0 0.0
    %4090 = vmatpush1.msra.mxu0 0.0
    %4091 = vmatprep.subr.mxu0 0.0
    %4092 = vmatpush1.msra.mxu0 0.0
    %4093 = vmatprep.subr.mxu0 0.0
    %4094 = vmatpush1.msra.mxu0 0.0
    %4095 = vmatprep.subr.mxu0 0.0
    %4096 = vmatpush1.msra.mxu0 0.0
    %4097 = vmatprep.subr.mxu0 0.0
    %4098 = vmatpush1.msra.mxu0 0.0
    %4099 = vmatprep.subr.mxu0 0.0
    %4100 = vmatpush1.msra.mxu0 0.0
    %4101 = vmatprep.subr.mxu0 0.0
    %4102 = vmatpush1.msra.mxu0 0.0
    %4103 = vmatprep.subr.mxu0 0.0
    %4104 = vmatpush1.msra.mxu0 0.0
    %4105 = vmatprep.subr.mxu0 0.0
    %4106 = vmatpush1.msra.mxu0 0.0
    %4107 = vmatprep.subr.mxu0 0.0
    %4108 = vmatpush1.msra.mxu0 0.0
    %4109 = vmatprep.subr.mxu0 0.0
    %4110 = vmatpush1.msra.mxu0 0.0
    %4111 = vmatprep.subr.mxu0 0.0
    %4112 = vmatpush1.msra.mxu0 0.0
    %4113 = vmatprep.subr.mxu0 0.0
    %4114 = vmatpush1.msra.mxu0 0.0
    %4115 = vmatprep.subr.mxu0 0.0
    %4116 = vmatpush1.msra.mxu0 0.0
    %4117 = vmatprep.subr.mxu0 0.0
    %4118 = vmatpush1.msra.mxu0 0.0
    %4119 = vmatprep.subr.mxu0 0.0
    %4120 = vmatpush1.msra.mxu0 0.0
    %4121 = vmatprep.subr.mxu0 0.0
    %4122 = vmatpush1.msra.mxu0 0.0
    %4123 = vmatprep.subr.mxu0 0.0
    %4124 = vmatpush1.msra.mxu0 0.0
    %4125 = vmatprep.subr.mxu0 0.0
    %4126 = vmatpush1.msra.mxu0 0.0
    %4127 = vmatprep.subr.mxu0 0.0
    %4128 = vmatpush1.msra.mxu0 0.0
    %4129 = vmatprep.subr.mxu0 0.0
    %4130 = vmatpush1.msra.mxu0 0.0
    %4131 = vmatprep.mubr.f32.mxu0 0.0
    %4132 = vmatmul.mubr.f32.gmra.mrb[0].mxu0 %v4065
    %v4133 = vpop.f32.mrb[0].mxu0
    %v4134 = vadd.f32 0.0, %v4133
    %v4135 = vpop.f32.mrb[0].mxu0
    %4136 = vdwg.mxu0
    %v4138 = vsel %vm150, %v3919, 0
    %4140 = vmatprep.subr.mxu0 0.0
    %4141 = vmatpush1.msra.mxu0 %v4062
    %4142 = vmatprep.subr.mxu0 0.0
    %4143 = vmatpush1.msra.mxu0 %v4063
    %4144 = vmatprep.subr.mxu0 0.0
    %4145 = vmatpush1.msra.mxu0 0.0
    %4146 = vmatprep.subr.mxu0 0.0
    %4147 = vmatpush1.msra.mxu0 0.0
    %4148 = vmatprep.subr.mxu0 0.0
    %4149 = vmatpush1.msra.mxu0 0.0
    %4150 = vmatprep.subr.mxu0 0.0
    %4151 = vmatpush1.msra.mxu0 0.0
    %4152 = vmatprep.subr.mxu0 0.0
    %4153 = vmatpush1.msra.mxu0 0.0
    %4154 = vmatprep.subr.mxu0 0.0
    %4155 = vmatpush1.msra.mxu0 0.0
    %4156 = vmatprep.subr.mxu0 0.0
    %4157 = vmatpush1.msra.mxu0 0.0
    %4158 = vmatprep.subr.mxu0 0.0
    %4159 = vmatpush1.msra.mxu0 0.0
    %4160 = vmatprep.subr.mxu0 0.0
    %4161 = vmatpush1.msra.mxu0 0.0
    %4162 = vmatprep.subr.mxu0 0.0
    %4163 = vmatpush1.msra.mxu0 0.0
    %4164 = vmatprep.subr.mxu0 0.0
    %4165 = vmatpush1.msra.mxu0 0.0
    %4166 = vmatprep.subr.mxu0 0.0
    %4167 = vmatpush1.msra.mxu0 0.0
    %4168 = vmatprep.subr.mxu0 0.0
    %4169 = vmatpush1.msra.mxu0 0.0
    %4170 = vmatprep.subr.mxu0 0.0
    %4171 = vmatpush1.msra.mxu0 0.0
    %4172 = vmatprep.subr.mxu0 0.0
    %4173 = vmatpush1.msra.mxu0 0.0
    %4174 = vmatprep.subr.mxu0 0.0
    %4175 = vmatpush1.msra.mxu0 0.0
    %4176 = vmatprep.subr.mxu0 0.0
    %4177 = vmatpush1.msra.mxu0 0.0
    %4178 = vmatprep.subr.mxu0 0.0
    %4179 = vmatpush1.msra.mxu0 0.0
    %4180 = vmatprep.subr.mxu0 0.0
    %4181 = vmatpush1.msra.mxu0 0.0
    %4182 = vmatprep.subr.mxu0 0.0
    %4183 = vmatpush1.msra.mxu0 0.0
    %4184 = vmatprep.subr.mxu0 0.0
    %4185 = vmatpush1.msra.mxu0 0.0
    %4186 = vmatprep.subr.mxu0 0.0
    %4187 = vmatpush1.msra.mxu0 0.0
    %4188 = vmatprep.subr.mxu0 0.0
    %4189 = vmatpush1.msra.mxu0 0.0
    %4190 = vmatprep.subr.mxu0 0.0
    %4191 = vmatpush1.msra.mxu0 0.0
    %4192 = vmatprep.subr.mxu0 0.0
    %4193 = vmatpush1.msra.mxu0 0.0
    %4194 = vmatprep.subr.mxu0 0.0
    %4195 = vmatpush1.msra.mxu0 0.0
    %4196 = vmatprep.subr.mxu0 0.0
    %4197 = vmatpush1.msra.mxu0 0.0
    %4198 = vmatprep.subr.mxu0 0.0
    %4199 = vmatpush1.msra.mxu0 0.0
    %4200 = vmatprep.subr.mxu0 0.0
    %4201 = vmatpush1.msra.mxu0 0.0
    %4202 = vmatprep.subr.mxu0 0.0
    %4203 = vmatpush1.msra.mxu0 0.0
    %4204 = vmatprep.mubr.f32.mxu0 0.0
    %4205 = vmatmul.mubr.f32.gmra.mrb[0].mxu0 %v4138
    %v4206 = vpop.f32.mrb[0].mxu0
    %v4207 = vadd.f32 0.0, %v4206
    %v4208 = vpop.f32.mrb[0].mxu0
    %4209 = vdwg.mxu0
    %v4211 = vsel %vm150, %v3989, 0
    %4213 = vmatprep.subr.mxu0 0.0
    %4214 = vmatpush1.msra.mxu0 %v4062
    %4215 = vmatprep.subr.mxu0 0.0
    %4216 = vmatpush1.msra.mxu0 %v4063
    %4217 = vmatprep.subr.mxu0 0.0
    %4218 = vmatpush1.msra.mxu0 0.0
    %4219 = vmatprep.subr.mxu0 0.0
    %4220 = vmatpush1.msra.mxu0 0.0
    %4221 = vmatprep.subr.mxu0 0.0
    %4222 = vmatpush1.msra.mxu0 0.0
    %4223 = vmatprep.subr.mxu0 0.0
    %4224 = vmatpush1.msra.mxu0 0.0
    %4225 = vmatprep.subr.mxu0 0.0
    %4226 = vmatpush1.msra.mxu0 0.0
    %4227 = vmatprep.subr.mxu0 0.0
    %4228 = vmatpush1.msra.mxu0 0.0
    %4229 = vmatprep.subr.mxu0 0.0
    %4230 = vmatpush1.msra.mxu0 0.0
    %4231 = vmatprep.subr.mxu0 0.0
    %4232 = vmatpush1.msra.mxu0 0.0
    %4233 = vmatprep.subr.mxu0 0.0
    %4234 = vmatpush1.msra.mxu0 0.0
    %4235 = vmatprep.subr.mxu0 0.0
    %4236 = vmatpush1.msra.mxu0 0.0
    %4237 = vmatprep.subr.mxu0 0.0
    %4238 = vmatpush1.msra.mxu0 0.0
    %4239 = vmatprep.subr.mxu0 0.0
    %4240 = vmatpush1.msra.mxu0 0.0
    %4241 = vmatprep.subr.mxu0 0.0
    %4242 = vmatpush1.msra.mxu0 0.0
    %4243 = vmatprep.subr.mxu0 0.0
    %4244 = vmatpush1.msra.mxu0 0.0
    %4245 = vmatprep.subr.mxu0 0.0
    %4246 = vmatpush1.msra.mxu0 0.0
    %4247 = vmatprep.subr.mxu0 0.0
    %4248 = vmatpush1.msra.mxu0 0.0
    %4249 = vmatprep.subr.mxu0 0.0
    %4250 = vmatpush1.msra.mxu0 0.0
    %4251 = vmatprep.subr.mxu0 0.0
    %4252 = vmatpush1.msra.mxu0 0.0
    %4253 = vmatprep.subr.mxu0 0.0
    %4254 = vmatpush1.msra.mxu0 0.0
    %4255 = vmatprep.subr.mxu0 0.0
    %4256 = vmatpush1.msra.mxu0 0.0
    %4257 = vmatprep.subr.mxu0 0.0
    %4258 = vmatpush1.msra.mxu0 0.0
    %4259 = vmatprep.subr.mxu0 0.0
    %4260 = vmatpush1.msra.mxu0 0.0
    %4261 = vmatprep.subr.mxu0 0.0
    %4262 = vmatpush1.msra.mxu0 0.0
    %4263 = vmatprep.subr.mxu0 0.0
    %4264 = vmatpush1.msra.mxu0 0.0
    %4265 = vmatprep.subr.mxu0 0.0
    %4266 = vmatpush1.msra.mxu0 0.0
    %4267 = vmatprep.subr.mxu0 0.0
    %4268 = vmatpush1.msra.mxu0 0.0
    %4269 = vmatprep.subr.mxu0 0.0
    %4270 = vmatpush1.msra.mxu0 0.0
    %4271 = vmatprep.subr.mxu0 0.0
    %4272 = vmatpush1.msra.mxu0 0.0
    %4273 = vmatprep.subr.mxu0 0.0
    %4274 = vmatpush1.msra.mxu0 0.0
    %4275 = vmatprep.subr.mxu0 0.0
    %4276 = vmatpush1.msra.mxu0 0.0
    %4277 = vmatprep.mubr.f32.mxu0 0.0
    %4278 = vmatmul.mubr.f32.gmra.mrb[0].mxu0 %v4211
    %v4279 = vpop.f32.mrb[0].mxu0
    %v4280 = vadd.f32 0.0, %v4279
    %v4281 = vpop.f32.mrb[0].mxu0
    %4282 = vdwg.mxu0
    %v4284 = vsel %vm150, %v4059, 0
    %4286 = vmatprep.subr.mxu0 0.0
    %4287 = vmatpush1.msra.mxu0 %v4062
    %4288 = vmatprep.subr.mxu0 0.0
    %4289 = vmatpush1.msra.mxu0 %v4063
    %4290 = vmatprep.subr.mxu0 0.0
    %4291 = vmatpush1.msra.mxu0 0.0
    %4292 = vmatprep.subr.mxu0 0.0
    %4293 = vmatpush1.msra.mxu0 0.0
    %4294 = vmatprep.subr.mxu0 0.0
    %4295 = vmatpush1.msra.mxu0 0.0
    %4296 = vmatprep.subr.mxu0 0.0
    %4297 = vmatpush1.msra.mxu0 0.0
    %4298 = vmatprep.subr.mxu0 0.0
    %4299 = vmatpush1.msra.mxu0 0.0
    %4300 = vmatprep.subr.mxu0 0.0
    %4301 = vmatpush1.msra.mxu0 0.0
    %4302 = vmatprep.subr.mxu0 0.0
    %4303 = vmatpush1.msra.mxu0 0.0
    %4304 = vmatprep.subr.mxu0 0.0
    %4305 = vmatpush1.msra.mxu0 0.0
    %4306 = vmatprep.subr.mxu0 0.0
    %4307 = vmatpush1.msra.mxu0 0.0
    %4308 = vmatprep.subr.mxu0 0.0
    %4309 = vmatpush1.msra.mxu0 0.0
    %4310 = vmatprep.subr.mxu0 0.0
    %4311 = vmatpush1.msra.mxu0 0.0
    %4312 = vmatprep.subr.mxu0 0.0
    %4313 = vmatpush1.msra.mxu0 0.0
    %4314 = vmatprep.subr.mxu0 0.0
    %4315 = vmatpush1.msra.mxu0 0.0
    %4316 = vmatprep.subr.mxu0 0.0
    %4317 = vmatpush1.msra.mxu0 0.0
    %4318 = vmatprep.subr.mxu0 0.0
    %4319 = vmatpush1.msra.mxu0 0.0
    %4320 = vmatprep.subr.mxu0 0.0
    %4321 = vmatpush1.msra.mxu0 0.0
    %4322 = vmatprep.subr.mxu0 0.0
    %4323 = vmatpush1.msra.mxu0 0.0
    %4324 = vmatprep.subr.mxu0 0.0
    %4325 = vmatpush1.msra.mxu0 0.0
    %4326 = vmatprep.subr.mxu0 0.0
    %4327 = vmatpush1.msra.mxu0 0.0
    %4328 = vmatprep.subr.mxu0 0.0
    %4329 = vmatpush1.msra.mxu0 0.0
    %4330 = vmatprep.subr.mxu0 0.0
    %4331 = vmatpush1.msra.mxu0 0.0
    %4332 = vmatprep.subr.mxu0 0.0
    %4333 = vmatpush1.msra.mxu0 0.0
    %4334 = vmatprep.subr.mxu0 0.0
    %4335 = vmatpush1.msra.mxu0 0.0
    %4336 = vmatprep.subr.mxu0 0.0
    %4337 = vmatpush1.msra.mxu0 0.0
    %4338 = vmatprep.subr.mxu0 0.0
    %4339 = vmatpush1.msra.mxu0 0.0
    %4340 = vmatprep.subr.mxu0 0.0
    %4341 = vmatpush1.msra.mxu0 0.0
    %4342 = vmatprep.subr.mxu0 0.0
    %4343 = vmatpush1.msra.mxu0 0.0
    %4344 = vmatprep.subr.mxu0 0.0
    %4345 = vmatpush1.msra.mxu0 0.0
    %4346 = vmatprep.subr.mxu0 0.0
    %4347 = vmatpush1.msra.mxu0 0.0
    %4348 = vmatprep.subr.mxu0 0.0
    %4349 = vmatpush1.msra.mxu0 0.0
    %4350 = vmatprep.mubr.f32.mxu0 0.0
    %4351 = vmatmul.mubr.f32.gmra.mrb[0].mxu0 %v4284
    %v4352 = vpop.f32.mrb[0].mxu0
    %v4353 = vadd.f32 0.0, %v4352
    %v4354 = vpop.f32.mrb[0].mxu0
    %4355 = vdwg.mxu0
    %v4356 = vadd.f32 %v3778, %v4134
    %v4357 = vadd.f32 %v3779, %v4207
    %v4358 = vadd.f32 %v3780, %v4280
    %v4359 = vadd.f32 %v3781, %v4353
    %vm4360 = vcmp.gt.f32.partialorder %v4356, 0.0
    %vm4361 = vcmp.gt.f32.partialorder %v4357, 0.0
    %vm4362 = vcmp.gt.f32.partialorder %v4358, 0.0
    %vm4363 = vcmp.gt.f32.partialorder %v4359, 0.0
    %v4364 = vmul.f32 %v4356, 0.22916667
    %v4365 = vmul.f32 %v4357, 0.22916667
    %v4366 = vmul.f32 %v4358, 0.22916667
    %v4367 = vmul.f32 %v4359, 0.22916667
    %v4368 = vsel %vm4360, %v4356, %v4364
    %v4369 = vsel %vm4361, %v4357, %v4365
    %v4370 = vsel %vm4362, %v4358, %v4366
    %v4371 = vsel %vm4363, %v4359, %v4367
    %vm4372 = vcmask 253952
    %4373 = vst.msk [vmem:[#allocation13] sm:$0x1] %vm4372, %v4368
    %4374 = vst.msk [vmem:[#allocation13 + $0x1] sm:$0x1] %vm4372, %v4369
    %4375 = vst.msk [vmem:[#allocation13 + $0x2] sm:$0x1] %vm4372, %v4370
    %4376 = vst.msk [vmem:[#allocation13 + $0x3] sm:$0x1] %vm4372, %v4371
    // Predicated region
    $region70: #{tpu_custom_call.1} parent=1 // pred_check
      _
    $region71: #{tpu_custom_call.1} parent=1 // pred_check_branch
      %4378 = sbr.rel (0) target = $region73
    $region72: #{tpu_custom_call.1} parent=1 // pred_region
      %s4380 = ssub.s32 64, 64
      %4381 = vsyncadd [#allocation4], %s4380
      %s4382 = sshll.u32 [#allocation13], 4
      %s4383 = int_to_ptr.vmem [resolvable:$true] %s4382
      %4388 = dma.vmem_to_hbm [thread:$0]  %s4383, 64, %s11, [#allocation4], 16, 16, 1
    $region73: #{tpu_custom_call.1} parent=1 // pred_fallthru
      _
    // Predicated region
    $region74: #{tpu_custom_call.1} parent=1 // pred_check
      _
    $region75: #{tpu_custom_call.1} parent=1 // pred_check_branch
      %4390 = sbr.rel (0) target = $region77
    $region76: #{tpu_custom_call.1} parent=1 // pred_region
      %4391 = dma.done [#allocation4], 64
    $region77: #{tpu_custom_call.1} parent=1 // pred_fallthru
      _
    %4392 = vsyncpa [#allocation3], 1
    %4393 = vsyncpa [#allocation6], 1
    %4394 = vsyncpa [#allocation9], 1
    %4395 = vsyncpa [#allocation12], 1
    %4396 = vsyncpa [#allocation4], 1

</llo_original>
